<compile_context>
chip_gen: v5e
topology: v5e:2x2
jax: 0.10.0
libtpu: 0.0.40
codegen_flags: <defaults>
</compile_context>

<pallas_src>
import jax
import jax.numpy as jnp
from jax import lax
from jax.experimental import pallas as pl
from jax.experimental.pallas import tpu as pltpu

# Geometry fixed by the module (28x28 mono input -> 320 flattened features).
K = 5
H0, W0 = 28, 28     # input
H1, W1 = 24, 24     # conv1 output
HP1, WP1 = 12, 12   # after pool1
H2, W2 = 8, 8       # conv2 output
HP2, WP2 = 4, 4     # after pool2

C1P = 16            # conv1 out-channel padding (10 -> 16)
C2P = 32            # conv2 out-channel padding (20 -> 32)
NHP = 128           # fc1 hidden padding (50 -> 128)
NCP = 128           # logits padding (lane-dense output)

K1 = K * W0              # 140  conv1 contraction: (kh, iw)
N1 = 2 * WP1 * C1P       # 384  conv1 output cols: (parity, x, c)
K2 = K * WP1 * C1P       # 960  conv2 contraction: (kh, iw, cin)
N2 = 2 * WP2 * C2P       # 256  conv2 output cols: (parity, x, c)
NF = HP2 * WP2 * C2P     # 512  flattened classifier features

TB_DEFAULT = 32          # images per grid step


def _round_up(n, m):
    return ((n + m - 1) // m) * m


# ------------------------------- fused kernel ------------------------------- #

def _cnn_fused_kernel(x_ref, w1_ref, b1_ref, w2_ref, b2_ref,
                      fc1w_ref, fc1b_ref, fc2w_ref, fc2b_ref, out_ref):
    tb = x_ref.shape[0]
    x = x_ref[...]                                              # (tb, 28, 28) f32

    # ---- conv1: 5x5, Cin=1 -> 10(pad 16); kh taps folded into contraction ----
    # LHS rows = (n, oh); contraction cols = (kh, iw); weight is banded over width
    # with output columns ordered (parity, ow_pair, cout) for cheap pooling.
    slabs1 = [x[:, kh:kh + H1, :].reshape(tb * H1, W0) for kh in range(K)]
    lhs1 = jnp.concatenate(slabs1, axis=1)                      # (tb*24, 140)
    acc1 = jnp.dot(lhs1, w1_ref[...],
                   preferred_element_type=jnp.float32)          # (tb*24, 384)

    # ---- maxpool 2x2 + bias + ReLU (bias/ReLU after pool == before: monotone) --
    half1 = WP1 * C1P                                           # 192
    pw = jnp.maximum(acc1[:, :half1], acc1[:, half1:])          # width pool  (tb*24, 192)
    ph = pw.reshape(tb * HP1, 2, half1)
    p1 = jnp.maximum(ph[:, 0, :], ph[:, 1, :])                  # height pool (tb*12, 192)
    p1 = jnp.maximum(p1 + b1_ref[...], 0.0)                     # bias (tiled per x) + ReLU
    p1 = p1.reshape(tb, HP1, half1)                             # rows=(n,y), cols=(x,c)

    # ---- conv2: 5x5, 10(pad16) -> 20(pad32); (kh,kw,cin) folded into contraction
    slabs2 = [p1[:, kh:kh + H2, :].reshape(tb * H2, half1) for kh in range(K)]
    lhs2 = jnp.concatenate(slabs2, axis=1)                      # (tb*8, 960)
    acc2 = jnp.dot(lhs2, w2_ref[...],
                   preferred_element_type=jnp.float32)          # (tb*8, 256)
    # TODO(synk): Dropout2d is identity in eval mode; training-mode masking omitted.

    # ---- maxpool 2x2 + bias + ReLU --------------------------------------------
    half2 = WP2 * C2P                                           # 128
    qw = jnp.maximum(acc2[:, :half2], acc2[:, half2:])          # width pool  (tb*8, 128)
    qh = qw.reshape(tb * HP2, 2, half2)
    p2 = jnp.maximum(qh[:, 0, :], qh[:, 1, :])                  # height pool (tb*4, 128)
    p2 = jnp.maximum(p2 + b2_ref[...], 0.0)

    # ---- classifier: fc1 + ReLU + fc2 (torch NCHW flatten folded into fc1 rows) -
    feat = p2.reshape(tb, NF)                                   # (tb, 512)
    h = jnp.dot(feat, fc1w_ref[...], preferred_element_type=jnp.float32)
    h = jnp.maximum(h + fc1b_ref[...], 0.0)                     # (tb, 128)
    # TODO(synk): Dropout is identity in eval mode.
    o = jnp.dot(h, fc2w_ref[...], preferred_element_type=jnp.float32)
    out_ref[...] = (o + fc2b_ref[...]).astype(out_ref.dtype)


# ------------------------------ pallas wrapper ------------------------------ #

def _fused_pallas_forward(x, prepped, tb):
    w1b, b1r, w2b, b2r, fc1wp, fc1bp, fc2wp, fc2bp = prepped
    n_pad = x.shape[0]
    grid = (n_pad // tb,)
    flops = grid[0] * 2 * ((tb * H1) * K1 * N1          # conv1 matmul
                           + (tb * H2) * K2 * N2        # conv2 matmul
                           + tb * NF * NHP              # fc1
                           + tb * NHP * NCP)            # fc2
    bytes_accessed = 4 * (x.size + sum(a.size for a in prepped) + n_pad * NCP)
    return pl.pallas_call(
        _cnn_fused_kernel,
        out_shape=jax.ShapeDtypeStruct((n_pad, NCP), jnp.float32),
        grid=grid,
        in_specs=[
            pl.BlockSpec((tb, H0, W0), lambda i: (i, 0, 0)),   # batch tile
            pl.BlockSpec(w1b.shape, lambda i: (0, 0)),         # VMEM-resident weights
            pl.BlockSpec(b1r.shape, lambda i: (0, 0)),
            pl.BlockSpec(w2b.shape, lambda i: (0, 0)),
            pl.BlockSpec(b2r.shape, lambda i: (0, 0)),
            pl.BlockSpec(fc1wp.shape, lambda i: (0, 0)),
            pl.BlockSpec(fc1bp.shape, lambda i: (0, 0)),
            pl.BlockSpec(fc2wp.shape, lambda i: (0, 0)),
            pl.BlockSpec(fc2bp.shape, lambda i: (0, 0)),
        ],
        out_specs=pl.BlockSpec((tb, NCP), lambda i: (i, 0)),   # lane-dense output
        compiler_params=pltpu.CompilerParams(
            dimension_semantics=("parallel",),
            vmem_limit_bytes=32 * 1024 * 1024),
        cost_estimate=pl.CostEstimate(flops=flops, transcendentals=0,
                                      bytes_accessed=bytes_accessed),
    )(x, w1b, b1r, w2b, b2r, fc1wp, fc1bp, fc2wp, fc2bp)


def _prep_params(params):
    """Trace-time repack of PyTorch-layout weights into banded / lane-padded matrices."""
    w1, b1 = params["w1"], params["b1"]              # (10,1,5,5), (10,)
    w2, b2 = params["w2"], params["b2"]              # (20,10,5,5), (20,)
    fc1w, fc1b = params["fc1_w"], params["fc1_b"]    # (320,50), (50,)
    fc2w, fc2b = params["fc2_w"], params["fc2_b"]    # (50,nc), (nc,)
    c1 = w1.shape[0]
    cin2, cout2 = w2.shape[1], w2.shape[0]
    nh = fc1w.shape[1]
    nc = fc2w.shape[1]
    assert c1 <= C1P and cin2 <= C1P and cout2 <= C2P and nh <= NHP and nc <= NCP

    # conv1 banded weight (K*W0, 2*WP1*C1P): row=(kh,iw), col=(parity,x,cout)
    w1_k = jnp.pad(jnp.transpose(w1[:, 0], (1, 2, 0)),            # (kh, kw, cout)
                   ((0, 0), (0, 0), (0, C1P - c1)))               # (5, 5, 16)
    iw = jnp.arange(W0)[:, None]                                  # (28, 1)
    ow = jnp.arange(W1)[None, :]                                  # (1, 24)
    kw = iw - ow
    valid = ((kw >= 0) & (kw < K)).astype(w1_k.dtype)             # (28, 24)
    band1 = w1_k[:, jnp.clip(kw, 0, K - 1), :] * valid[None, :, :, None]  # (5,28,24,16)
    band1 = band1.reshape(K, W0, WP1, 2, C1P)                     # ow -> (x, parity)
    band1 = jnp.transpose(band1, (0, 1, 3, 2, 4))                 # (kh,iw,parity,x,c)
    w1_band = band1.reshape(K1, N1)                               # (140, 384)
    b1_r = jnp.tile(jnp.pad(b1, (0, C1P - c1)), WP1).reshape(1, WP1 * C1P)

    # conv2 banded weight (K*WP1*C1P, 2*WP2*C2P): row=(kh,iw,cin), col=(parity,x,cout)
    w2_t = jnp.pad(jnp.transpose(w2, (2, 3, 1, 0)),               # (kh, kw, cin, cout)
                   ((0, 0), (0, 0), (0, C1P - cin2), (0, C2P - cout2)))   # (5,5,16,32)
    iw2 = jnp.arange(WP1)[:, None]                                # (12, 1)
    ow2 = jnp.arange(W2)[None, :]                                 # (1, 8)
    kw2 = iw2 - ow2
    valid2 = ((kw2 >= 0) & (kw2 < K)).astype(w2_t.dtype)          # (12, 8)
    band2 = w2_t[:, jnp.clip(kw2, 0, K - 1), :, :] * valid2[None, :, :, None, None]
    band2 = band2.reshape(K, WP1, WP2, 2, C1P, C2P)               # (kh,iw,x,parity,cin,cout)
    band2 = jnp.transpose(band2, (0, 1, 4, 3, 2, 5))              # (kh,iw,cin,parity,x,cout)
    w2_band = band2.reshape(K2, N2)                               # (960, 256)
    b2_r = jnp.tile(jnp.pad(b2, (0, C2P - cout2)), WP2).reshape(1, WP2 * C2P)

    # fc1: fold torch's NCHW flatten into a row permutation; pad to lane-dense
    fc1w_r = jnp.transpose(fc1w.reshape(cout2, HP2, WP2, nh), (1, 2, 0, 3))  # (y,x,c,:)
    fc1w_p = jnp.pad(fc1w_r, ((0, 0), (0, 0), (0, C2P - cout2), (0, NHP - nh)))
    fc1w_p = fc1w_p.reshape(NF, NHP)                              # (512, 128)
    fc1b_p = jnp.pad(fc1b, (0, NHP - nh)).reshape(1, NHP)

    fc2w_p = jnp.pad(fc2w, ((0, NHP - nh), (0, NCP - nc)))        # (128, 128)
    fc2b_p = jnp.pad(fc2b, (0, NCP - nc)).reshape(1, NCP)
    return w1_band, b1_r, w2_band, b2_r, fc1w_p, fc1b_p, fc2w_p, fc2b_p


def cnn_classifier_forward(x_nchw, params, tb=TB_DEFAULT):
    """x_nchw: (N, 1, 28, 28) float32 -> logits (N, n_classes)."""
    n = x_nchw.shape[0]
    n_classes = params["fc2_w"].shape[1]
    x = x_nchw[:, 0, :, :].astype(jnp.float32)                   # (N, 28, 28)
    tb_eff = min(tb, _round_up(n, 8))                            # clamp tile for tiny batches
    n_pad = _round_up(n, tb_eff)
    if n_pad != n:
        x = jnp.pad(x, ((0, n_pad - n), (0, 0), (0, 0)))
    prepped = _prep_params(params)
    out = _fused_pallas_forward(x, prepped, tb_eff)              # (n_pad, 128)
    return out[:n, :n_classes]


# ------------------------------ params & reference -------------------------- #

def init_params(key, n_classes):
    ks = jax.random.split(key, 8)
    scale = 0.1
    return {
        "w1": jax.random.normal(ks[0], (10, 1, 5, 5), jnp.float32) * scale,
        "b1": jax.random.normal(ks[1], (10,), jnp.float32) * scale,
        "w2": jax.random.normal(ks[2], (20, 10, 5, 5), jnp.float32) * scale,
        "b2": jax.random.normal(ks[3], (20,), jnp.float32) * scale,
        # Linear weights stored as (in_features, out_features)
        "fc1_w": jax.random.normal(ks[4], (320, 50), jnp.float32) * scale,
        "fc1_b": jax.random.normal(ks[5], (50,), jnp.float32) * scale,
        "fc2_w": jax.random.normal(ks[6], (50, n_classes), jnp.float32) * scale,
        "fc2_b": jax.random.normal(ks[7], (n_classes,), jnp.float32) * scale,
    }


def _reference_forward(x_nchw, params):
    """Pure-JAX (XLA) eval-mode reference mirroring the PyTorch module."""
    y = lax.conv_general_dilated(x_nchw, params["w1"], (1, 1), "VALID",
                                 dimension_numbers=("NCHW", "OIHW", "NCHW"))
    y = y + params["b1"][None, :, None, None]
    y = lax.reduce_window(y, -jnp.inf, lax.max, (1, 1, 2, 2), (1, 1, 2, 2), "VALID")
    y = jnp.maximum(y, 0.0)
    y = lax.conv_general_dilated(y, params["w2"], (1, 1), "VALID",
                                 dimension_numbers=("NCHW", "OIHW", "NCHW"))
    y = y + params["b2"][None, :, None, None]
    y = lax.reduce_window(y, -jnp.inf, lax.max, (1, 1, 2, 2), (1, 1, 2, 2), "VALID")
    y = jnp.maximum(y, 0.0)
    feat = y.reshape(y.shape[0], -1)                             # torch NCHW flatten
    h = jnp.maximum(feat @ params["fc1_w"] + params["fc1_b"], 0.0)
    return h @ params["fc2_w"] + params["fc2_b"]


if __name__ == "__main__":
    n_classes = 10
    batch = 2
    # Input must be 28x28 mono so the flattened features are 20*4*4 = 320.
    x = jax.random.normal(jax.random.PRNGKey(0), (batch, 1, 28, 28), jnp.float32)
    params = init_params(jax.random.PRNGKey(42), n_classes)

    fwd = jax.jit(cnn_classifier_forward)
    logits = fwd(x, params)
    jax.block_until_ready(logits)

    assert logits.shape == (batch, n_classes), logits.shape
    assert logits.dtype == jnp.float32

    ref = _reference_forward(x, params)
    err = float(jnp.max(jnp.abs(logits - ref)))
    assert err < 1e-3, f"max abs error vs reference = {err}"
    print("KERNEL_OK")
</pallas_src>

<mosaic_0001>
module attributes {stable_mosaic.version = 11 : i64} {
  func.func @_cnn_fused_kernel(%arg0: i32, %arg1: memref<8x28x28xf32, #tpu.memory_space<vmem>>, %arg2: memref<140x384xf32, #tpu.memory_space<vmem>>, %arg3: memref<1x192xf32, #tpu.memory_space<vmem>>, %arg4: memref<960x256xf32, #tpu.memory_space<vmem>>, %arg5: memref<1x128xf32, #tpu.memory_space<vmem>>, %arg6: memref<512x128xf32, #tpu.memory_space<vmem>>, %arg7: memref<1x128xf32, #tpu.memory_space<vmem>>, %arg8: memref<128x128xf32, #tpu.memory_space<vmem>>, %arg9: memref<1x128xf32, #tpu.memory_space<vmem>>, %arg10: memref<8x128xf32, #tpu.memory_space<vmem>>) attributes {dimension_semantics = [#tpu.dimension_semantics<parallel>], iteration_bounds = array<i64: 1>, scalar_prefetch = 0 : i64, scratch_operands = 0 : i64, tpu.core_type = #tpu.core_type<tc>, window_params = [{transform_indices = @transform_0, window_bounds = array<i64: 8, 28, 28>}, {pipeline_mode = #tpu.pipeline_mode<synchronous>, transform_indices = @transform_1, window_bounds = array<i64: 140, 384>}, {pipeline_mode = #tpu.pipeline_mode<synchronous>, transform_indices = @transform_2, window_bounds = array<i64: 1, 192>}, {pipeline_mode = #tpu.pipeline_mode<synchronous>, transform_indices = @transform_3, window_bounds = array<i64: 960, 256>}, {pipeline_mode = #tpu.pipeline_mode<synchronous>, transform_indices = @transform_4, window_bounds = array<i64: 1, 128>}, {pipeline_mode = #tpu.pipeline_mode<synchronous>, transform_indices = @transform_5, window_bounds = array<i64: 512, 128>}, {pipeline_mode = #tpu.pipeline_mode<synchronous>, transform_indices = @transform_6, window_bounds = array<i64: 1, 128>}, {pipeline_mode = #tpu.pipeline_mode<synchronous>, transform_indices = @transform_7, window_bounds = array<i64: 128, 128>}, {pipeline_mode = #tpu.pipeline_mode<synchronous>, transform_indices = @transform_8, window_bounds = array<i64: 1, 128>}, {transform_indices = @transform_9, window_bounds = array<i64: 8, 128>}]} {
    %c0 = arith.constant 0 : index
    %c0_0 = arith.constant 0 : index
    %c0_1 = arith.constant 0 : index
    %0 = vector.load %arg1[%c0, %c0_0, %c0_1] : memref<8x28x28xf32, #tpu.memory_space<vmem>>, vector<8x28x28xf32>
    %1 = vector.extract_strided_slice %0 {offsets = [0, 0, 0], sizes = [8, 24, 28], strides = [1, 1, 1]} : vector<8x28x28xf32> to vector<8x24x28xf32>
    %2 = vector.shape_cast %1 : vector<8x24x28xf32> to vector<192x28xf32>
    %3 = vector.extract_strided_slice %0 {offsets = [0, 1, 0], sizes = [8, 24, 28], strides = [1, 1, 1]} : vector<8x28x28xf32> to vector<8x24x28xf32>
    %4 = vector.shape_cast %3 : vector<8x24x28xf32> to vector<192x28xf32>
    %5 = vector.extract_strided_slice %0 {offsets = [0, 2, 0], sizes = [8, 24, 28], strides = [1, 1, 1]} : vector<8x28x28xf32> to vector<8x24x28xf32>
    %6 = vector.shape_cast %5 : vector<8x24x28xf32> to vector<192x28xf32>
    %7 = vector.extract_strided_slice %0 {offsets = [0, 3, 0], sizes = [8, 24, 28], strides = [1, 1, 1]} : vector<8x28x28xf32> to vector<8x24x28xf32>
    %8 = vector.shape_cast %7 : vector<8x24x28xf32> to vector<192x28xf32>
    %9 = vector.extract_strided_slice %0 {offsets = [0, 4, 0], sizes = [8, 24, 28], strides = [1, 1, 1]} : vector<8x28x28xf32> to vector<8x24x28xf32>
    %10 = vector.shape_cast %9 : vector<8x24x28xf32> to vector<192x28xf32>
    %11 = tpu.concatenate %2, %4, %6, %8, %10 in 1 : vector<192x28xf32>, vector<192x28xf32>, vector<192x28xf32>, vector<192x28xf32>, vector<192x28xf32> -> vector<192x140xf32>
    %c0_2 = arith.constant 0 : index
    %c0_3 = arith.constant 0 : index
    %12 = vector.load %arg2[%c0_2, %c0_3] : memref<140x384xf32, #tpu.memory_space<vmem>>, vector<140x384xf32>
    %cst = arith.constant dense<0.000000e+00> : vector<192x384xf32>
    %13 = tpu.matmul %11, %12, %cst {dimension_numbers = #tpu.dot_dimension_numbers<[1], [0], [0], [1], [0, 0, 1, 1], [], []>} : vector<192x140xf32>, vector<140x384xf32>, vector<192x384xf32> -> vector<192x384xf32>
    %14 = vector.extract_strided_slice %13 {offsets = [0, 0], sizes = [192, 192], strides = [1, 1]} : vector<192x384xf32> to vector<192x192xf32>
    %15 = vector.extract_strided_slice %13 {offsets = [0, 192], sizes = [192, 192], strides = [1, 1]} : vector<192x384xf32> to vector<192x192xf32>
    %16 = arith.maximumf %14, %15 : vector<192x192xf32>
    %17 = vector.shape_cast %16 : vector<192x192xf32> to vector<96x2x192xf32>
    %18 = vector.extract_strided_slice %17 {offsets = [0, 0, 0], sizes = [96, 1, 192], strides = [1, 1, 1]} : vector<96x2x192xf32> to vector<96x1x192xf32>
    %19 = vector.shape_cast %18 : vector<96x1x192xf32> to vector<96x192xf32>
    %20 = vector.extract_strided_slice %17 {offsets = [0, 1, 0], sizes = [96, 1, 192], strides = [1, 1, 1]} : vector<96x2x192xf32> to vector<96x1x192xf32>
    %21 = vector.shape_cast %20 : vector<96x1x192xf32> to vector<96x192xf32>
    %22 = arith.maximumf %19, %21 : vector<96x192xf32>
    %c0_4 = arith.constant 0 : index
    %c0_5 = arith.constant 0 : index
    %23 = vector.load %arg3[%c0_4, %c0_5] : memref<1x192xf32, #tpu.memory_space<vmem>>, vector<1x192xf32>
    %24 = vector.broadcast %23 : vector<1x192xf32> to vector<96x192xf32>
    %25 = arith.addf %22, %24 : vector<96x192xf32>
    %cst_6 = arith.constant 0.000000e+00 : f32
    %26 = vector.broadcast %cst_6 : f32 to vector<96x192xf32>
    %27 = arith.maximumf %25, %26 : vector<96x192xf32>
    %28 = vector.shape_cast %27 : vector<96x192xf32> to vector<8x12x192xf32>
    %29 = vector.extract_strided_slice %28 {offsets = [0, 0, 0], sizes = [8, 8, 192], strides = [1, 1, 1]} : vector<8x12x192xf32> to vector<8x8x192xf32>
    %30 = vector.shape_cast %29 : vector<8x8x192xf32> to vector<64x192xf32>
    %31 = vector.extract_strided_slice %28 {offsets = [0, 1, 0], sizes = [8, 8, 192], strides = [1, 1, 1]} : vector<8x12x192xf32> to vector<8x8x192xf32>
    %32 = vector.shape_cast %31 : vector<8x8x192xf32> to vector<64x192xf32>
    %33 = vector.extract_strided_slice %28 {offsets = [0, 2, 0], sizes = [8, 8, 192], strides = [1, 1, 1]} : vector<8x12x192xf32> to vector<8x8x192xf32>
    %34 = vector.shape_cast %33 : vector<8x8x192xf32> to vector<64x192xf32>
    %35 = vector.extract_strided_slice %28 {offsets = [0, 3, 0], sizes = [8, 8, 192], strides = [1, 1, 1]} : vector<8x12x192xf32> to vector<8x8x192xf32>
    %36 = vector.shape_cast %35 : vector<8x8x192xf32> to vector<64x192xf32>
    %37 = vector.extract_strided_slice %28 {offsets = [0, 4, 0], sizes = [8, 8, 192], strides = [1, 1, 1]} : vector<8x12x192xf32> to vector<8x8x192xf32>
    %38 = vector.shape_cast %37 : vector<8x8x192xf32> to vector<64x192xf32>
    %39 = tpu.concatenate %30, %32, %34, %36, %38 in 1 : vector<64x192xf32>, vector<64x192xf32>, vector<64x192xf32>, vector<64x192xf32>, vector<64x192xf32> -> vector<64x960xf32>
    %c0_7 = arith.constant 0 : index
    %c0_8 = arith.constant 0 : index
    %40 = vector.load %arg4[%c0_7, %c0_8] : memref<960x256xf32, #tpu.memory_space<vmem>>, vector<960x256xf32>
    %cst_9 = arith.constant dense<0.000000e+00> : vector<64x256xf32>
    %41 = tpu.matmul %39, %40, %cst_9 {dimension_numbers = #tpu.dot_dimension_numbers<[1], [0], [0], [1], [0, 0, 1, 1], [], []>} : vector<64x960xf32>, vector<960x256xf32>, vector<64x256xf32> -> vector<64x256xf32>
    %42 = vector.extract_strided_slice %41 {offsets = [0, 0], sizes = [64, 128], strides = [1, 1]} : vector<64x256xf32> to vector<64x128xf32>
    %43 = vector.extract_strided_slice %41 {offsets = [0, 128], sizes = [64, 128], strides = [1, 1]} : vector<64x256xf32> to vector<64x128xf32>
    %44 = arith.maximumf %42, %43 : vector<64x128xf32>
    %45 = vector.shape_cast %44 : vector<64x128xf32> to vector<32x2x128xf32>
    %46 = vector.extract_strided_slice %45 {offsets = [0, 0, 0], sizes = [32, 1, 128], strides = [1, 1, 1]} : vector<32x2x128xf32> to vector<32x1x128xf32>
    %47 = vector.shape_cast %46 : vector<32x1x128xf32> to vector<32x128xf32>
    %48 = vector.extract_strided_slice %45 {offsets = [0, 1, 0], sizes = [32, 1, 128], strides = [1, 1, 1]} : vector<32x2x128xf32> to vector<32x1x128xf32>
    %49 = vector.shape_cast %48 : vector<32x1x128xf32> to vector<32x128xf32>
    %50 = arith.maximumf %47, %49 : vector<32x128xf32>
    %c0_10 = arith.constant 0 : index
    %c0_11 = arith.constant 0 : index
    %51 = vector.load %arg5[%c0_10, %c0_11] : memref<1x128xf32, #tpu.memory_space<vmem>>, vector<1x128xf32>
    %52 = vector.broadcast %51 : vector<1x128xf32> to vector<32x128xf32>
    %53 = arith.addf %50, %52 : vector<32x128xf32>
    %cst_12 = arith.constant 0.000000e+00 : f32
    %54 = vector.broadcast %cst_12 : f32 to vector<32x128xf32>
    %55 = arith.maximumf %53, %54 : vector<32x128xf32>
    %56 = vector.shape_cast %55 : vector<32x128xf32> to vector<8x512xf32>
    %c0_13 = arith.constant 0 : index
    %c0_14 = arith.constant 0 : index
    %57 = vector.load %arg6[%c0_13, %c0_14] : memref<512x128xf32, #tpu.memory_space<vmem>>, vector<512x128xf32>
    %cst_15 = arith.constant dense<0.000000e+00> : vector<8x128xf32>
    %58 = tpu.matmul %56, %57, %cst_15 {dimension_numbers = #tpu.dot_dimension_numbers<[1], [0], [0], [1], [0, 0, 1, 1], [], []>} : vector<8x512xf32>, vector<512x128xf32>, vector<8x128xf32> -> vector<8x128xf32>
    %c0_16 = arith.constant 0 : index
    %c0_17 = arith.constant 0 : index
    %59 = vector.load %arg7[%c0_16, %c0_17] : memref<1x128xf32, #tpu.memory_space<vmem>>, vector<1x128xf32>
    %60 = vector.broadcast %59 : vector<1x128xf32> to vector<8x128xf32>
    %61 = arith.addf %58, %60 : vector<8x128xf32>
    %cst_18 = arith.constant 0.000000e+00 : f32
    %62 = vector.broadcast %cst_18 : f32 to vector<8x128xf32>
    %63 = arith.maximumf %61, %62 : vector<8x128xf32>
    %c0_19 = arith.constant 0 : index
    %c0_20 = arith.constant 0 : index
    %64 = vector.load %arg8[%c0_19, %c0_20] : memref<128x128xf32, #tpu.memory_space<vmem>>, vector<128x128xf32>
    %cst_21 = arith.constant dense<0.000000e+00> : vector<8x128xf32>
    %65 = tpu.matmul %63, %64, %cst_21 {dimension_numbers = #tpu.dot_dimension_numbers<[1], [0], [0], [1], [0, 0, 1, 1], [], []>} : vector<8x128xf32>, vector<128x128xf32>, vector<8x128xf32> -> vector<8x128xf32>
    %c0_22 = arith.constant 0 : index
    %c0_23 = arith.constant 0 : index
    %66 = vector.load %arg9[%c0_22, %c0_23] : memref<1x128xf32, #tpu.memory_space<vmem>>, vector<1x128xf32>
    %67 = vector.broadcast %66 : vector<1x128xf32> to vector<8x128xf32>
    %68 = arith.addf %65, %67 : vector<8x128xf32>
    %c0_24 = arith.constant 0 : index
    %c0_25 = arith.constant 0 : index
    %69 = vector.load %arg10[%c0_24, %c0_25] : memref<8x128xf32, #tpu.memory_space<vmem>>, vector<8x128xf32>
    tpu.vector_store %arg10[%c0_24, %c0_25], %68 {strides = array<i32>} : memref<8x128xf32, #tpu.memory_space<vmem>>, vector<8x128xf32>,
    return
  }
  func.func @transform_0(%arg0: i32) -> (i32, i32, i32) {
    %c0_i32 = arith.constant 0 : i32
    %c0_i32_0 = arith.constant 0 : i32
    %c0_i32_1 = arith.constant 0 : i32
    return %arg0, %c0_i32, %c0_i32_0 : i32, i32, i32
  }
  func.func @transform_1(%arg0: i32) -> (i32, i32) {
    %c0_i32 = arith.constant 0 : i32
    %c0_i32_0 = arith.constant 0 : i32
    %c0_i32_1 = arith.constant 0 : i32
    return %c0_i32, %c0_i32_0 : i32, i32
  }
  func.func @transform_2(%arg0: i32) -> (i32, i32) {
    %c0_i32 = arith.constant 0 : i32
    %c0_i32_0 = arith.constant 0 : i32
    %c0_i32_1 = arith.constant 0 : i32
    return %c0_i32, %c0_i32_0 : i32, i32
  }
  func.func @transform_3(%arg0: i32) -> (i32, i32) {
    %c0_i32 = arith.constant 0 : i32
    %c0_i32_0 = arith.constant 0 : i32
    %c0_i32_1 = arith.constant 0 : i32
    return %c0_i32, %c0_i32_0 : i32, i32
  }
  func.func @transform_4(%arg0: i32) -> (i32, i32) {
    %c0_i32 = arith.constant 0 : i32
    %c0_i32_0 = arith.constant 0 : i32
    %c0_i32_1 = arith.constant 0 : i32
    return %c0_i32, %c0_i32_0 : i32, i32
  }
  func.func @transform_5(%arg0: i32) -> (i32, i32) {
    %c0_i32 = arith.constant 0 : i32
    %c0_i32_0 = arith.constant 0 : i32
    %c0_i32_1 = arith.constant 0 : i32
    return %c0_i32, %c0_i32_0 : i32, i32
  }
  func.func @transform_6(%arg0: i32) -> (i32, i32) {
    %c0_i32 = arith.constant 0 : i32
    %c0_i32_0 = arith.constant 0 : i32
    %c0_i32_1 = arith.constant 0 : i32
    return %c0_i32, %c0_i32_0 : i32, i32
  }
  func.func @transform_7(%arg0: i32) -> (i32, i32) {
    %c0_i32 = arith.constant 0 : i32
    %c0_i32_0 = arith.constant 0 : i32
    %c0_i32_1 = arith.constant 0 : i32
    return %c0_i32, %c0_i32_0 : i32, i32
  }
  func.func @transform_8(%arg0: i32) -> (i32, i32) {
    %c0_i32 = arith.constant 0 : i32
    %c0_i32_0 = arith.constant 0 : i32
    %c0_i32_1 = arith.constant 0 : i32
    return %c0_i32, %c0_i32_0 : i32, i32
  }
  func.func @transform_9(%arg0: i32) -> (i32, i32) {
    %c0_i32 = arith.constant 0 : i32
    %c0_i32_0 = arith.constant 0 : i32
    return %arg0, %c0_i32 : i32, i32
  }
}

</mosaic_0001>

<llo_original>
// kernel: tile.13
$region0: #{tile.13}
  #allocation0 [shape = 's32[1]{0}', space=sflag, size = 0x4, scoped, tag = 'scoped memory for tile.13']
  %s0 = inlined_call_operand.vmem [shape: f32[16], index: 0, kind: input, shape index: {}]
  %s1 = inlined_call_operand.vmem [shape: f32[12,16], index: 1, kind: output, shape index: {}]
  // Predicated region
  $region2: #{tile.13} parent=0 // pred_check
    _
  $region3: #{tile.13} parent=0 // pred_check_branch
    %3 = sbr.rel (0) target = $region5
  $region4: #{tile.13} parent=0 // pred_region
    _
  $region5: #{tile.13} parent=0 // pred_fallthru
    _
  %v4 = vld [vmem:[%s0] ss:$0 sm:$0xff]
  %5 = vst [vmem:[%s1] sm:$0xff] %v4
  %s6 = scalar_lea.vmem %s1, 8
  %7 = vst [vmem:[%s6] sm:$0xff] %v4

// kernel: tile.14
$region0: #{tile.14}
  %s0 = inlined_call_operand.vmem [shape: f32[12,16], index: 0, kind: input, shape index: {}]
  %s1 = inlined_call_operand.vmem [shape: f32[1,192], index: 1, kind: output, shape index: {}]
  $region1: #{tile.14} parent=0
    #allocation0 [shape = 'u8[8192]{0}', space=vmem, size = 0x2000, scoped, tag = 'scoped mem for output reshape']
    %s2 = smov 3
    %v3 = vld [vmem:[%s0] ss:$8 sm:%s2]
    %vm4 = vcmask 130048
    %5 = vst.msk [vmem:[#allocation0] ss:$8 sm:$0x3] %vm4, %v3
    %s6 = scalar_lea.vmem %s0, 7
    %v7 = vld [vmem:[%s6] sm:$0x1]
    %8 = vrot.lane.b32.xlu0 %v7, 112
    %v9 = vpop.permute.xlu0 %8
    %vm10 = vcmask 1048448
    %11 = vst.msk [vmem:[#allocation0] sm:$0x1] %vm10, %v9
    %s12 = scalar_lea.vmem %s0, 6
    %v13 = vld [vmem:[%s12] sm:$0x1]
    %14 = vrot.lane.b32.xlu0 %v13, 96
    %v15 = vpop.permute.xlu0 %14
    %vm16 = vcmask 917248
    %17 = vst.msk [vmem:[#allocation0] sm:$0x1] %vm16, %v15
    %s18 = scalar_lea.vmem %s0, 5
    %v19 = vld [vmem:[%s18] sm:$0x1]
    %20 = vrot.lane.b32.xlu0 %v19, 80
    %v21 = vpop.permute.xlu0 %20
    %vm22 = vcmask 786048
    %23 = vst.msk [vmem:[#allocation0] sm:$0x1] %vm22, %v21
    %s24 = scalar_lea.vmem %s0, 4
    %v25 = vld [vmem:[%s24] sm:$0x1]
    %26 = vrot.lane.b32.xlu0 %v25, 64
    %v27 = vpop.permute.xlu0 %26
    %vm28 = vcmask 654848
    %29 = vst.msk [vmem:[#allocation0] sm:$0x1] %vm28, %v27
    %s30 = scalar_lea.vmem %s0, 3
    %s31 = smov 3
    %v32 = vld [vmem:[%s30] ss:$8 sm:%s31]
    %33 = vrot.lane.b32.xlu0 %v32, 48
    %v34 = vpop.permute.xlu0 %33
    %vm35 = vcmask 523648
    %36 = vst.msk [vmem:[#allocation0] ss:$8 sm:$0x3] %vm35, %v34
    %s37 = scalar_lea.vmem %s0, 2
    %s38 = smov 3
    %v39 = vld [vmem:[%s37] ss:$8 sm:%s38]
    %40 = vrot.lane.b32.xlu0 %v39, 32
    %v41 = vpop.permute.xlu0 %40
    %vm42 = vcmask 392448
    %43 = vst.msk [vmem:[#allocation0] ss:$8 sm:$0x3] %vm42, %v41
    %s44 = scalar_lea.vmem %s0, 1
    %s45 = smov 3
    %v46 = vld [vmem:[%s44] ss:$8 sm:%s45]
    %47 = vrot.lane.b32.xlu0 %v46, 16
    %v48 = vpop.permute.xlu0 %47
    %vm49 = vcmask 261248
    %50 = vst.msk [vmem:[#allocation0] ss:$8 sm:$0x3] %vm49, %v48
    %s52 = ssub.s32 2, 1
    %v53 = vld [vmem:[#allocation0] sm:%s52]
    %s55 = ssub.s32 2, 1
    %56 = vst [vmem:[%s1] sm:%s55] %v53
    %s57 = scalar_lea.vmem [#allocation0], 8
    %v58 = vld [vmem:[%s57] sm:%s52]
    %s60 = ssub.s32 2, 1
    %s61 = scalar_lea.vmem %s1, 1
    %62 = vst [vmem:[%s61] sm:%s60] %v58

// kernel: tile.18
$region0: #{tile.18}
  #allocation0 [shape = 's32[1]{0}', space=sflag, size = 0x4, scoped, tag = 'scoped memory for tile.18']
  %s0 = inlined_call_operand.vmem [shape: f32[32], index: 0, kind: input, shape index: {}]
  %s1 = inlined_call_operand.vmem [shape: f32[4,32], index: 1, kind: output, shape index: {}]
  // Predicated region
  $region2: #{tile.18} parent=0 // pred_check
    _
  $region3: #{tile.18} parent=0 // pred_check_branch
    %3 = sbr.rel (0) target = $region5
  $region4: #{tile.18} parent=0 // pred_region
    _
  $region5: #{tile.18} parent=0 // pred_fallthru
    _
  %v4 = vld [vmem:[%s0] ss:$0 sm:$0xff]
  %5 = vst [vmem:[%s1] sm:$0xf] %v4

// kernel: tile.19
$region0: #{tile.19}
  %s0 = inlined_call_operand.vmem [shape: f32[4,32], index: 0, kind: input, shape index: {}]
  %s1 = inlined_call_operand.vmem [shape: f32[1,128], index: 1, kind: output, shape index: {}]
  $region1: #{tile.19} parent=0
    #allocation0 [shape = 'u8[4096]{0}', space=vmem, size = 0x1000, scoped, tag = 'scoped mem for output reshape']
    #allocation1 [shape = 'u8[4096]{0}', space=vmem, size = 0x1000, scoped, tag = 'scoped mem for input reshape']
    %s3 = ssub.s32 16, 1
    %v4 = vld [vmem:[%s0] sm:%s3]
    %5 = vst [vmem:[#allocation1] sm:%s3] %v4
    %v6 = vld [vmem:[#allocation1] sm:$0x1]
    %vm7 = vcmask 261120
    %8 = vst.msk [vmem:[#allocation0] sm:$0x1] %vm7, %v6
    %s9 = scalar_lea.vmem [#allocation1], 3
    %v10 = vld [vmem:[%s9] sm:$0x1]
    %11 = vrot.lane.b32.xlu0 %v10, 96
    %v12 = vpop.permute.xlu0 %11
    %vm13 = vcmask 1048320
    %14 = vst.msk [vmem:[#allocation0] sm:$0x1] %vm13, %v12
    %s15 = scalar_lea.vmem [#allocation1], 2
    %v16 = vld [vmem:[%s15] sm:$0x1]
    %17 = vrot.lane.b32.xlu0 %v16, 64
    %v18 = vpop.permute.xlu0 %17
    %vm19 = vcmask 785920
    %20 = vst.msk [vmem:[#allocation0] sm:$0x1] %vm19, %v18
    %s21 = scalar_lea.vmem [#allocation1], 1
    %v22 = vld [vmem:[%s21] sm:$0x1]
    %23 = vrot.lane.b32.xlu0 %v22, 32
    %v24 = vpop.permute.xlu0 %23
    %vm25 = vcmask 523520
    %26 = vst.msk [vmem:[#allocation0] sm:$0x1] %vm25, %v24
    %s28 = ssub.s32 2, 1
    %v29 = vld [vmem:[#allocation0] sm:%s28]
    %s31 = ssub.s32 2, 1
    %32 = vst [vmem:[%s1] sm:%s31] %v29

// kernel: cnn_classifier_forward.1
$region0: #{cnn_classifier_forward.1}
  #allocation0 [shape = 'u32[]', space=smem, size = 0x4, offset = 0x4, fixed_abs, tag = 'smem constant byte address 0x4 - core index']
  #allocation1 [shape = 'u32[72,128]{1,0:T(1,128)}', space=vmem, size = 0x9000, scoped, tag = 'internal scratch']
  %s0 = inlined_call_operand.vmem [shape: f32[8,28,28], index: 0, kind: input, shape index: {}]
  %s1 = inlined_call_operand.vmem [shape: f32[140,384], index: 1, kind: input, shape index: {}]
  %s2 = inlined_call_operand.vmem [shape: f32[1,192], index: 2, kind: input, shape index: {}]
  %s3 = inlined_call_operand.vmem [shape: f32[960,256], index: 3, kind: input, shape index: {}]
  %s4 = inlined_call_operand.vmem [shape: f32[1,128], index: 4, kind: input, shape index: {}]
  %s5 = inlined_call_operand.vmem [shape: f32[512,128], index: 5, kind: input, shape index: {}]
  %s6 = inlined_call_operand.vmem [shape: f32[1,128], index: 6, kind: input, shape index: {}]
  %s7 = inlined_call_operand.vmem [shape: f32[128,128], index: 7, kind: input, shape index: {}]
  %s8 = inlined_call_operand.vmem [shape: f32[1,128], index: 8, kind: input, shape index: {}]
  %s9 = inlined_call_operand.vmem [shape: f32[8,128], index: 9, kind: output, shape index: {}]
  %s10 = sld [smem:[#allocation0]]
  $region46: #{cnn_classifier_forward.1} parent=0
    _
  %s12 = ssub.s32 1, %s10
  %s13 = scalar_select 0, %s12, %s10
  // Predicated region
  $region2: #{cnn_classifier_forward.1} parent=0 // pred_check
    _
  $region3: #{cnn_classifier_forward.1} parent=0 // pred_check_branch
    %15 = sbr.rel (0) target = $region5
  $region4: #{cnn_classifier_forward.1} parent=0 // pred_region
    _
  $region5: #{cnn_classifier_forward.1} parent=0 // pred_fallthru
    _
  // Predicated region
  $region6: #{cnn_classifier_forward.1} parent=0 // pred_check
    _
  $region7: #{cnn_classifier_forward.1} parent=0 // pred_check_branch
    %17 = sbr.rel (0) target = $region9
  $region8: #{cnn_classifier_forward.1} parent=0 // pred_region
    _
  $region9: #{cnn_classifier_forward.1} parent=0 // pred_fallthru
    _
  // Predicated region
  $region10: #{cnn_classifier_forward.1} parent=0 // pred_check
    _
  $region11: #{cnn_classifier_forward.1} parent=0 // pred_check_branch
    %19 = sbr.rel (0) target = $region13
  $region12: #{cnn_classifier_forward.1} parent=0 // pred_region
    _
  $region13: #{cnn_classifier_forward.1} parent=0 // pred_fallthru
    _
  // Predicated region
  $region14: #{cnn_classifier_forward.1} parent=0 // pred_check
    _
  $region15: #{cnn_classifier_forward.1} parent=0 // pred_check_branch
    %21 = sbr.rel (0) target = $region17
  $region16: #{cnn_classifier_forward.1} parent=0 // pred_region
    _
  $region17: #{cnn_classifier_forward.1} parent=0 // pred_fallthru
    _
  // Predicated region
  $region18: #{cnn_classifier_forward.1} parent=0 // pred_check
    _
  $region19: #{cnn_classifier_forward.1} parent=0 // pred_check_branch
    %23 = sbr.rel (0) target = $region21
  $region20: #{cnn_classifier_forward.1} parent=0 // pred_region
    _
  $region21: #{cnn_classifier_forward.1} parent=0 // pred_fallthru
    _
  // Predicated region
  $region22: #{cnn_classifier_forward.1} parent=0 // pred_check
    _
  $region23: #{cnn_classifier_forward.1} parent=0 // pred_check_branch
    %25 = sbr.rel (0) target = $region25
  $region24: #{cnn_classifier_forward.1} parent=0 // pred_region
    _
  $region25: #{cnn_classifier_forward.1} parent=0 // pred_fallthru
    _
  // Predicated region
  $region26: #{cnn_classifier_forward.1} parent=0 // pred_check
    _
  $region27: #{cnn_classifier_forward.1} parent=0 // pred_check_branch
    %27 = sbr.rel (0) target = $region29
  $region28: #{cnn_classifier_forward.1} parent=0 // pred_region
    _
  $region29: #{cnn_classifier_forward.1} parent=0 // pred_fallthru
    _
  // Predicated region
  $region30: #{cnn_classifier_forward.1} parent=0 // pred_check
    _
  $region31: #{cnn_classifier_forward.1} parent=0 // pred_check_branch
    %29 = sbr.rel (0) target = $region33
  $region32: #{cnn_classifier_forward.1} parent=0 // pred_region
    _
  $region33: #{cnn_classifier_forward.1} parent=0 // pred_fallthru
    _
  // Predicated region
  $region34: #{cnn_classifier_forward.1} parent=0 // pred_check
    _
  $region35: #{cnn_classifier_forward.1} parent=0 // pred_check_branch
    %31 = sbr.rel (0) target = $region37
  $region36: #{cnn_classifier_forward.1} parent=0 // pred_region
    _
  $region37: #{cnn_classifier_forward.1} parent=0 // pred_fallthru
    _
  %v32 = vld [vmem:[%s0] sm:$0xff]
  %v33 = vld [vmem:[%s0 + $0x8] sm:$0xff]
  %v34 = vld [vmem:[%s0 + $0x10] sm:$0xff]
  %v35 = vld [vmem:[%s0 + $0x18] sm:$0xf]
  %v36 = vld [vmem:[%s0 + $0x20] sm:$0xff]
  %v37 = vld [vmem:[%s0 + $0x28] sm:$0xff]
  %v38 = vld [vmem:[%s0 + $0x30] sm:$0xff]
  %v39 = vld [vmem:[%s0 + $0x38] sm:$0xf]
  %v40 = vld [vmem:[%s0 + $0x40] sm:$0xff]
  %v41 = vld [vmem:[%s0 + $0x48] sm:$0xff]
  %v42 = vld [vmem:[%s0 + $0x50] sm:$0xff]
  %v43 = vld [vmem:[%s0 + $0x58] sm:$0xf]
  %v44 = vld [vmem:[%s0 + $0x60] sm:$0xff]
  %v45 = vld [vmem:[%s0 + $0x68] sm:$0xff]
  %v46 = vld [vmem:[%s0 + $0x70] sm:$0xff]
  %v47 = vld [vmem:[%s0 + $0x78] sm:$0xf]
  %v48 = vld [vmem:[%s0 + $0x80] sm:$0xff]
  %v49 = vld [vmem:[%s0 + $0x88] sm:$0xff]
  %v50 = vld [vmem:[%s0 + $0x90] sm:$0xff]
  %v51 = vld [vmem:[%s0 + $0x98] sm:$0xf]
  %v52 = vld [vmem:[%s0 + $0xa0] sm:$0xff]
  %v53 = vld [vmem:[%s0 + $0xa8] sm:$0xff]
  %v54 = vld [vmem:[%s0 + $0xb0] sm:$0xff]
  %v55 = vld [vmem:[%s0 + $0xb8] sm:$0xf]
  %v56 = vld [vmem:[%s0 + $0xc0] sm:$0xff]
  %v57 = vld [vmem:[%s0 + $0xc8] sm:$0xff]
  %v58 = vld [vmem:[%s0 + $0xd0] sm:$0xff]
  %v59 = vld [vmem:[%s0 + $0xd8] sm:$0xf]
  %v60 = vld [vmem:[%s0 + $0xe0] sm:$0xff]
  %v61 = vld [vmem:[%s0 + $0xe8] sm:$0xff]
  %v62 = vld [vmem:[%s0 + $0xf0] sm:$0xff]
  %v63 = vld [vmem:[%s0 + $0xf8] sm:$0xf]
  %vm96 = vcmask 1046528
  %v97 = vrot.slane %v32, 1
  %v98 = vrot.slane %v33, 1
  %v99 = vsel %vm96, %v97, %v98
  %v100 = vrot.slane %v34, 1
  %v101 = vsel %vm96, %v98, %v100
  %v102 = vrot.slane %v35, 1
  %v103 = vsel %vm96, %v100, %v102
  %v104 = vrot.slane %v36, 1
  %v105 = vrot.slane %v37, 1
  %v106 = vsel %vm96, %v104, %v105
  %v107 = vrot.slane %v38, 1
  %v108 = vsel %vm96, %v105, %v107
  %v109 = vrot.slane %v39, 1
  %v110 = vsel %vm96, %v107, %v109
  %v111 = vrot.slane %v40, 1
  %v112 = vrot.slane %v41, 1
  %v113 = vsel %vm96, %v111, %v112
  %v114 = vrot.slane %v42, 1
  %v115 = vsel %vm96, %v112, %v114
  %v116 = vrot.slane %v43, 1
  %v117 = vsel %vm96, %v114, %v116
  %v118 = vrot.slane %v44, 1
  %v119 = vrot.slane %v45, 1
  %v120 = vsel %vm96, %v118, %v119
  %v121 = vrot.slane %v46, 1
  %v122 = vsel %vm96, %v119, %v121
  %v123 = vrot.slane %v47, 1
  %v124 = vsel %vm96, %v121, %v123
  %v125 = vrot.slane %v48, 1
  %v126 = vrot.slane %v49, 1
  %v127 = vsel %vm96, %v125, %v126
  %v128 = vrot.slane %v50, 1
  %v129 = vsel %vm96, %v126, %v128
  %v130 = vrot.slane %v51, 1
  %v131 = vsel %vm96, %v128, %v130
  %v132 = vrot.slane %v52, 1
  %v133 = vrot.slane %v53, 1
  %v134 = vsel %vm96, %v132, %v133
  %v135 = vrot.slane %v54, 1
  %v136 = vsel %vm96, %v133, %v135
  %v137 = vrot.slane %v55, 1
  %v138 = vsel %vm96, %v135, %v137
  %v139 = vrot.slane %v56, 1
  %v140 = vrot.slane %v57, 1
  %v141 = vsel %vm96, %v139, %v140
  %v142 = vrot.slane %v58, 1
  %v143 = vsel %vm96, %v140, %v142
  %v144 = vrot.slane %v59, 1
  %v145 = vsel %vm96, %v142, %v144
  %v146 = vrot.slane %v60, 1
  %v147 = vrot.slane %v61, 1
  %v148 = vsel %vm96, %v146, %v147
  %v149 = vrot.slane %v62, 1
  %v150 = vsel %vm96, %v147, %v149
  %v151 = vrot.slane %v63, 1
  %v152 = vsel %vm96, %v149, %v151
  %vm153 = vcmask 1045504
  %v154 = vrot.slane %v32, 2
  %v155 = vrot.slane %v33, 2
  %v156 = vsel %vm153, %v154, %v155
  %v157 = vrot.slane %v34, 2
  %v158 = vsel %vm153, %v155, %v157
  %v159 = vrot.slane %v35, 2
  %v160 = vsel %vm153, %v157, %v159
  %v161 = vrot.slane %v36, 2
  %v162 = vrot.slane %v37, 2
  %v163 = vsel %vm153, %v161, %v162
  %v164 = vrot.slane %v38, 2
  %v165 = vsel %vm153, %v162, %v164
  %v166 = vrot.slane %v39, 2
  %v167 = vsel %vm153, %v164, %v166
  %v168 = vrot.slane %v40, 2
  %v169 = vrot.slane %v41, 2
  %v170 = vsel %vm153, %v168, %v169
  %v171 = vrot.slane %v42, 2
  %v172 = vsel %vm153, %v169, %v171
  %v173 = vrot.slane %v43, 2
  %v174 = vsel %vm153, %v171, %v173
  %v175 = vrot.slane %v44, 2
  %v176 = vrot.slane %v45, 2
  %v177 = vsel %vm153, %v175, %v176
  %v178 = vrot.slane %v46, 2
  %v179 = vsel %vm153, %v176, %v178
  %v180 = vrot.slane %v47, 2
  %v181 = vsel %vm153, %v178, %v180
  %v182 = vrot.slane %v48, 2
  %v183 = vrot.slane %v49, 2
  %v184 = vsel %vm153, %v182, %v183
  %v185 = vrot.slane %v50, 2
  %v186 = vsel %vm153, %v183, %v185
  %v187 = vrot.slane %v51, 2
  %v188 = vsel %vm153, %v185, %v187
  %v189 = vrot.slane %v52, 2
  %v190 = vrot.slane %v53, 2
  %v191 = vsel %vm153, %v189, %v190
  %v192 = vrot.slane %v54, 2
  %v193 = vsel %vm153, %v190, %v192
  %v194 = vrot.slane %v55, 2
  %v195 = vsel %vm153, %v192, %v194
  %v196 = vrot.slane %v56, 2
  %v197 = vrot.slane %v57, 2
  %v198 = vsel %vm153, %v196, %v197
  %v199 = vrot.slane %v58, 2
  %v200 = vsel %vm153, %v197, %v199
  %v201 = vrot.slane %v59, 2
  %v202 = vsel %vm153, %v199, %v201
  %v203 = vrot.slane %v60, 2
  %v204 = vrot.slane %v61, 2
  %v205 = vsel %vm153, %v203, %v204
  %v206 = vrot.slane %v62, 2
  %v207 = vsel %vm153, %v204, %v206
  %v208 = vrot.slane %v63, 2
  %v209 = vsel %vm153, %v206, %v208
  %vm210 = vcmask 1044480
  %v211 = vrot.slane %v32, 3
  %v212 = vrot.slane %v33, 3
  %v213 = vsel %vm210, %v211, %v212
  %v214 = vrot.slane %v34, 3
  %v215 = vsel %vm210, %v212, %v214
  %v216 = vrot.slane %v35, 3
  %v217 = vsel %vm210, %v214, %v216
  %v218 = vrot.slane %v36, 3
  %v219 = vrot.slane %v37, 3
  %v220 = vsel %vm210, %v218, %v219
  %v221 = vrot.slane %v38, 3
  %v222 = vsel %vm210, %v219, %v221
  %v223 = vrot.slane %v39, 3
  %v224 = vsel %vm210, %v221, %v223
  %v225 = vrot.slane %v40, 3
  %v226 = vrot.slane %v41, 3
  %v227 = vsel %vm210, %v225, %v226
  %v228 = vrot.slane %v42, 3
  %v229 = vsel %vm210, %v226, %v228
  %v230 = vrot.slane %v43, 3
  %v231 = vsel %vm210, %v228, %v230
  %v232 = vrot.slane %v44, 3
  %v233 = vrot.slane %v45, 3
  %v234 = vsel %vm210, %v232, %v233
  %v235 = vrot.slane %v46, 3
  %v236 = vsel %vm210, %v233, %v235
  %v237 = vrot.slane %v47, 3
  %v238 = vsel %vm210, %v235, %v237
  %v239 = vrot.slane %v48, 3
  %v240 = vrot.slane %v49, 3
  %v241 = vsel %vm210, %v239, %v240
  %v242 = vrot.slane %v50, 3
  %v243 = vsel %vm210, %v240, %v242
  %v244 = vrot.slane %v51, 3
  %v245 = vsel %vm210, %v242, %v244
  %v246 = vrot.slane %v52, 3
  %v247 = vrot.slane %v53, 3
  %v248 = vsel %vm210, %v246, %v247
  %v249 = vrot.slane %v54, 3
  %v250 = vsel %vm210, %v247, %v249
  %v251 = vrot.slane %v55, 3
  %v252 = vsel %vm210, %v249, %v251
  %v253 = vrot.slane %v56, 3
  %v254 = vrot.slane %v57, 3
  %v255 = vsel %vm210, %v253, %v254
  %v256 = vrot.slane %v58, 3
  %v257 = vsel %vm210, %v254, %v256
  %v258 = vrot.slane %v59, 3
  %v259 = vsel %vm210, %v256, %v258
  %v260 = vrot.slane %v60, 3
  %v261 = vrot.slane %v61, 3
  %v262 = vsel %vm210, %v260, %v261
  %v263 = vrot.slane %v62, 3
  %v264 = vsel %vm210, %v261, %v263
  %v265 = vrot.slane %v63, 3
  %v266 = vsel %vm210, %v263, %v265
  %vm267 = vcmask 1043456
  %v268 = vrot.slane %v32, 4
  %v269 = vrot.slane %v33, 4
  %v270 = vsel %vm267, %v268, %v269
  %v271 = vrot.slane %v34, 4
  %v272 = vsel %vm267, %v269, %v271
  %v273 = vrot.slane %v35, 4
  %v274 = vsel %vm267, %v271, %v273
  %v275 = vrot.slane %v36, 4
  %v276 = vrot.slane %v37, 4
  %v277 = vsel %vm267, %v275, %v276
  %v278 = vrot.slane %v38, 4
  %v279 = vsel %vm267, %v276, %v278
  %v280 = vrot.slane %v39, 4
  %v281 = vsel %vm267, %v278, %v280
  %v282 = vrot.slane %v40, 4
  %v283 = vrot.slane %v41, 4
  %v284 = vsel %vm267, %v282, %v283
  %v285 = vrot.slane %v42, 4
  %v286 = vsel %vm267, %v283, %v285
  %v287 = vrot.slane %v43, 4
  %v288 = vsel %vm267, %v285, %v287
  %v289 = vrot.slane %v44, 4
  %v290 = vrot.slane %v45, 4
  %v291 = vsel %vm267, %v289, %v290
  %v292 = vrot.slane %v46, 4
  %v293 = vsel %vm267, %v290, %v292
  %v294 = vrot.slane %v47, 4
  %v295 = vsel %vm267, %v292, %v294
  %v296 = vrot.slane %v48, 4
  %v297 = vrot.slane %v49, 4
  %v298 = vsel %vm267, %v296, %v297
  %v299 = vrot.slane %v50, 4
  %v300 = vsel %vm267, %v297, %v299
  %v301 = vrot.slane %v51, 4
  %v302 = vsel %vm267, %v299, %v301
  %v303 = vrot.slane %v52, 4
  %v304 = vrot.slane %v53, 4
  %v305 = vsel %vm267, %v303, %v304
  %v306 = vrot.slane %v54, 4
  %v307 = vsel %vm267, %v304, %v306
  %v308 = vrot.slane %v55, 4
  %v309 = vsel %vm267, %v306, %v308
  %v310 = vrot.slane %v56, 4
  %v311 = vrot.slane %v57, 4
  %v312 = vsel %vm267, %v310, %v311
  %v313 = vrot.slane %v58, 4
  %v314 = vsel %vm267, %v311, %v313
  %v315 = vrot.slane %v59, 4
  %v316 = vsel %vm267, %v313, %v315
  %v317 = vrot.slane %v60, 4
  %v318 = vrot.slane %v61, 4
  %v319 = vsel %vm267, %v317, %v318
  %v320 = vrot.slane %v62, 4
  %v321 = vsel %vm267, %v318, %v320
  %v322 = vrot.slane %v63, 4
  %v323 = vsel %vm267, %v320, %v322
  %324 = vrot.lane.b32.xlu0 %v99, 28
  %v325 = vpop.permute.xlu0 %324
  %326 = vrot.lane.b32.xlu0 %v101, 28
  %v327 = vpop.permute.xlu0 %326
  %328 = vrot.lane.b32.xlu0 %v103, 28
  %v329 = vpop.permute.xlu0 %328
  %330 = vrot.lane.b32.xlu0 %v106, 28
  %v331 = vpop.permute.xlu0 %330
  %332 = vrot.lane.b32.xlu0 %v108, 28
  %v333 = vpop.permute.xlu0 %332
  %334 = vrot.lane.b32.xlu0 %v110, 28
  %v335 = vpop.permute.xlu0 %334
  %336 = vrot.lane.b32.xlu0 %v113, 28
  %v337 = vpop.permute.xlu0 %336
  %338 = vrot.lane.b32.xlu0 %v115, 28
  %v339 = vpop.permute.xlu0 %338
  %340 = vrot.lane.b32.xlu0 %v117, 28
  %v341 = vpop.permute.xlu0 %340
  %342 = vrot.lane.b32.xlu0 %v120, 28
  %v343 = vpop.permute.xlu0 %342
  %344 = vrot.lane.b32.xlu0 %v122, 28
  %v345 = vpop.permute.xlu0 %344
  %346 = vrot.lane.b32.xlu0 %v124, 28
  %v347 = vpop.permute.xlu0 %346
  %348 = vrot.lane.b32.xlu0 %v127, 28
  %v349 = vpop.permute.xlu0 %348
  %350 = vrot.lane.b32.xlu0 %v129, 28
  %v351 = vpop.permute.xlu0 %350
  %352 = vrot.lane.b32.xlu0 %v131, 28
  %v353 = vpop.permute.xlu0 %352
  %354 = vrot.lane.b32.xlu0 %v134, 28
  %v355 = vpop.permute.xlu0 %354
  %356 = vrot.lane.b32.xlu0 %v136, 28
  %v357 = vpop.permute.xlu0 %356
  %358 = vrot.lane.b32.xlu0 %v138, 28
  %v359 = vpop.permute.xlu0 %358
  %360 = vrot.lane.b32.xlu0 %v141, 28
  %v361 = vpop.permute.xlu0 %360
  %362 = vrot.lane.b32.xlu0 %v143, 28
  %v363 = vpop.permute.xlu0 %362
  %364 = vrot.lane.b32.xlu0 %v145, 28
  %v365 = vpop.permute.xlu0 %364
  %366 = vrot.lane.b32.xlu0 %v148, 28
  %v367 = vpop.permute.xlu0 %366
  %368 = vrot.lane.b32.xlu0 %v150, 28
  %v369 = vpop.permute.xlu0 %368
  %370 = vrot.lane.b32.xlu0 %v152, 28
  %v371 = vpop.permute.xlu0 %370
  %396 = vrot.lane.b32.xlu0 %v156, 56
  %v397 = vpop.permute.xlu0 %396
  %398 = vrot.lane.b32.xlu0 %v158, 56
  %v399 = vpop.permute.xlu0 %398
  %400 = vrot.lane.b32.xlu0 %v160, 56
  %v401 = vpop.permute.xlu0 %400
  %402 = vrot.lane.b32.xlu0 %v163, 56
  %v403 = vpop.permute.xlu0 %402
  %404 = vrot.lane.b32.xlu0 %v165, 56
  %v405 = vpop.permute.xlu0 %404
  %406 = vrot.lane.b32.xlu0 %v167, 56
  %v407 = vpop.permute.xlu0 %406
  %408 = vrot.lane.b32.xlu0 %v170, 56
  %v409 = vpop.permute.xlu0 %408
  %410 = vrot.lane.b32.xlu0 %v172, 56
  %v411 = vpop.permute.xlu0 %410
  %412 = vrot.lane.b32.xlu0 %v174, 56
  %v413 = vpop.permute.xlu0 %412
  %414 = vrot.lane.b32.xlu0 %v177, 56
  %v415 = vpop.permute.xlu0 %414
  %416 = vrot.lane.b32.xlu0 %v179, 56
  %v417 = vpop.permute.xlu0 %416
  %418 = vrot.lane.b32.xlu0 %v181, 56
  %v419 = vpop.permute.xlu0 %418
  %420 = vrot.lane.b32.xlu0 %v184, 56
  %v421 = vpop.permute.xlu0 %420
  %422 = vrot.lane.b32.xlu0 %v186, 56
  %v423 = vpop.permute.xlu0 %422
  %424 = vrot.lane.b32.xlu0 %v188, 56
  %v425 = vpop.permute.xlu0 %424
  %426 = vrot.lane.b32.xlu0 %v191, 56
  %v427 = vpop.permute.xlu0 %426
  %428 = vrot.lane.b32.xlu0 %v193, 56
  %v429 = vpop.permute.xlu0 %428
  %430 = vrot.lane.b32.xlu0 %v195, 56
  %v431 = vpop.permute.xlu0 %430
  %432 = vrot.lane.b32.xlu0 %v198, 56
  %v433 = vpop.permute.xlu0 %432
  %434 = vrot.lane.b32.xlu0 %v200, 56
  %v435 = vpop.permute.xlu0 %434
  %436 = vrot.lane.b32.xlu0 %v202, 56
  %v437 = vpop.permute.xlu0 %436
  %438 = vrot.lane.b32.xlu0 %v205, 56
  %v439 = vpop.permute.xlu0 %438
  %440 = vrot.lane.b32.xlu0 %v207, 56
  %v441 = vpop.permute.xlu0 %440
  %442 = vrot.lane.b32.xlu0 %v209, 56
  %v443 = vpop.permute.xlu0 %442
  %468 = vrot.lane.b32.xlu0 %v213, 84
  %v469 = vpop.permute.xlu0 %468
  %470 = vrot.lane.b32.xlu0 %v215, 84
  %v471 = vpop.permute.xlu0 %470
  %472 = vrot.lane.b32.xlu0 %v217, 84
  %v473 = vpop.permute.xlu0 %472
  %474 = vrot.lane.b32.xlu0 %v220, 84
  %v475 = vpop.permute.xlu0 %474
  %476 = vrot.lane.b32.xlu0 %v222, 84
  %v477 = vpop.permute.xlu0 %476
  %478 = vrot.lane.b32.xlu0 %v224, 84
  %v479 = vpop.permute.xlu0 %478
  %480 = vrot.lane.b32.xlu0 %v227, 84
  %v481 = vpop.permute.xlu0 %480
  %482 = vrot.lane.b32.xlu0 %v229, 84
  %v483 = vpop.permute.xlu0 %482
  %484 = vrot.lane.b32.xlu0 %v231, 84
  %v485 = vpop.permute.xlu0 %484
  %486 = vrot.lane.b32.xlu0 %v234, 84
  %v487 = vpop.permute.xlu0 %486
  %488 = vrot.lane.b32.xlu0 %v236, 84
  %v489 = vpop.permute.xlu0 %488
  %490 = vrot.lane.b32.xlu0 %v238, 84
  %v491 = vpop.permute.xlu0 %490
  %492 = vrot.lane.b32.xlu0 %v241, 84
  %v493 = vpop.permute.xlu0 %492
  %494 = vrot.lane.b32.xlu0 %v243, 84
  %v495 = vpop.permute.xlu0 %494
  %496 = vrot.lane.b32.xlu0 %v245, 84
  %v497 = vpop.permute.xlu0 %496
  %498 = vrot.lane.b32.xlu0 %v248, 84
  %v499 = vpop.permute.xlu0 %498
  %500 = vrot.lane.b32.xlu0 %v250, 84
  %v501 = vpop.permute.xlu0 %500
  %502 = vrot.lane.b32.xlu0 %v252, 84
  %v503 = vpop.permute.xlu0 %502
  %504 = vrot.lane.b32.xlu0 %v255, 84
  %v505 = vpop.permute.xlu0 %504
  %506 = vrot.lane.b32.xlu0 %v257, 84
  %v507 = vpop.permute.xlu0 %506
  %508 = vrot.lane.b32.xlu0 %v259, 84
  %v509 = vpop.permute.xlu0 %508
  %510 = vrot.lane.b32.xlu0 %v262, 84
  %v511 = vpop.permute.xlu0 %510
  %512 = vrot.lane.b32.xlu0 %v264, 84
  %v513 = vpop.permute.xlu0 %512
  %514 = vrot.lane.b32.xlu0 %v266, 84
  %v515 = vpop.permute.xlu0 %514
  %540 = vrot.lane.b32.xlu0 %v270, 112
  %v541 = vpop.permute.xlu0 %540
  %542 = vrot.lane.b32.xlu0 %v272, 112
  %v543 = vpop.permute.xlu0 %542
  %544 = vrot.lane.b32.xlu0 %v274, 112
  %v545 = vpop.permute.xlu0 %544
  %546 = vrot.lane.b32.xlu0 %v277, 112
  %v547 = vpop.permute.xlu0 %546
  %548 = vrot.lane.b32.xlu0 %v279, 112
  %v549 = vpop.permute.xlu0 %548
  %550 = vrot.lane.b32.xlu0 %v281, 112
  %v551 = vpop.permute.xlu0 %550
  %552 = vrot.lane.b32.xlu0 %v284, 112
  %v553 = vpop.permute.xlu0 %552
  %554 = vrot.lane.b32.xlu0 %v286, 112
  %v555 = vpop.permute.xlu0 %554
  %556 = vrot.lane.b32.xlu0 %v288, 112
  %v557 = vpop.permute.xlu0 %556
  %558 = vrot.lane.b32.xlu0 %v291, 112
  %v559 = vpop.permute.xlu0 %558
  %560 = vrot.lane.b32.xlu0 %v293, 112
  %v561 = vpop.permute.xlu0 %560
  %562 = vrot.lane.b32.xlu0 %v295, 112
  %v563 = vpop.permute.xlu0 %562
  %564 = vrot.lane.b32.xlu0 %v298, 112
  %v565 = vpop.permute.xlu0 %564
  %566 = vrot.lane.b32.xlu0 %v300, 112
  %v567 = vpop.permute.xlu0 %566
  %568 = vrot.lane.b32.xlu0 %v302, 112
  %v569 = vpop.permute.xlu0 %568
  %570 = vrot.lane.b32.xlu0 %v305, 112
  %v571 = vpop.permute.xlu0 %570
  %572 = vrot.lane.b32.xlu0 %v307, 112
  %v573 = vpop.permute.xlu0 %572
  %574 = vrot.lane.b32.xlu0 %v309, 112
  %v575 = vpop.permute.xlu0 %574
  %576 = vrot.lane.b32.xlu0 %v312, 112
  %v577 = vpop.permute.xlu0 %576
  %578 = vrot.lane.b32.xlu0 %v314, 112
  %v579 = vpop.permute.xlu0 %578
  %580 = vrot.lane.b32.xlu0 %v316, 112
  %v581 = vpop.permute.xlu0 %580
  %582 = vrot.lane.b32.xlu0 %v319, 112
  %v583 = vpop.permute.xlu0 %582
  %584 = vrot.lane.b32.xlu0 %v321, 112
  %v585 = vpop.permute.xlu0 %584
  %586 = vrot.lane.b32.xlu0 %v323, 112
  %v587 = vpop.permute.xlu0 %586
  %vm612 = vcmask 228352
  %v613 = vsel %vm612, %v32, %v325
  %v614 = vsel %vm612, %v33, %v327
  %v615 = vsel %vm612, %v34, %v329
  %v616 = vsel %vm612, %v36, %v331
  %v617 = vsel %vm612, %v37, %v333
  %v618 = vsel %vm612, %v38, %v335
  %v619 = vsel %vm612, %v40, %v337
  %v620 = vsel %vm612, %v41, %v339
  %v621 = vsel %vm612, %v42, %v341
  %v622 = vsel %vm612, %v44, %v343
  %v623 = vsel %vm612, %v45, %v345
  %v624 = vsel %vm612, %v46, %v347
  %v625 = vsel %vm612, %v48, %v349
  %v626 = vsel %vm612, %v49, %v351
  %v627 = vsel %vm612, %v50, %v353
  %v628 = vsel %vm612, %v52, %v355
  %v629 = vsel %vm612, %v53, %v357
  %v630 = vsel %vm612, %v54, %v359
  %v631 = vsel %vm612, %v56, %v361
  %v632 = vsel %vm612, %v57, %v363
  %v633 = vsel %vm612, %v58, %v365
  %v634 = vsel %vm612, %v60, %v367
  %v635 = vsel %vm612, %v61, %v369
  %v636 = vsel %vm612, %v62, %v371
  %vm637 = vcmask 457728
  %v638 = vsel %vm637, %v613, %v397
  %v639 = vsel %vm637, %v614, %v399
  %v640 = vsel %vm637, %v615, %v401
  %v641 = vsel %vm637, %v616, %v403
  %v642 = vsel %vm637, %v617, %v405
  %v643 = vsel %vm637, %v618, %v407
  %v644 = vsel %vm637, %v619, %v409
  %v645 = vsel %vm637, %v620, %v411
  %v646 = vsel %vm637, %v621, %v413
  %v647 = vsel %vm637, %v622, %v415
  %v648 = vsel %vm637, %v623, %v417
  %v649 = vsel %vm637, %v624, %v419
  %v650 = vsel %vm637, %v625, %v421
  %v651 = vsel %vm637, %v626, %v423
  %v652 = vsel %vm637, %v627, %v425
  %v653 = vsel %vm637, %v628, %v427
  %v654 = vsel %vm637, %v629, %v429
  %v655 = vsel %vm637, %v630, %v431
  %v656 = vsel %vm637, %v631, %v433
  %v657 = vsel %vm637, %v632, %v435
  %v658 = vsel %vm637, %v633, %v437
  %v659 = vsel %vm637, %v634, %v439
  %v660 = vsel %vm637, %v635, %v441
  %v661 = vsel %vm637, %v636, %v443
  %vm662 = vcmask 687104
  %v663 = vsel %vm662, %v638, %v469
  %v664 = vsel %vm662, %v639, %v471
  %v665 = vsel %vm662, %v640, %v473
  %v666 = vsel %vm662, %v641, %v475
  %v667 = vsel %vm662, %v642, %v477
  %v668 = vsel %vm662, %v643, %v479
  %v669 = vsel %vm662, %v644, %v481
  %v670 = vsel %vm662, %v645, %v483
  %v671 = vsel %vm662, %v646, %v485
  %v672 = vsel %vm662, %v647, %v487
  %v673 = vsel %vm662, %v648, %v489
  %v674 = vsel %vm662, %v649, %v491
  %v675 = vsel %vm662, %v650, %v493
  %v676 = vsel %vm662, %v651, %v495
  %v677 = vsel %vm662, %v652, %v497
  %v678 = vsel %vm662, %v653, %v499
  %v679 = vsel %vm662, %v654, %v501
  %v680 = vsel %vm662, %v655, %v503
  %v681 = vsel %vm662, %v656, %v505
  %v682 = vsel %vm662, %v657, %v507
  %v683 = vsel %vm662, %v658, %v509
  %v684 = vsel %vm662, %v659, %v511
  %v685 = vsel %vm662, %v660, %v513
  %v686 = vsel %vm662, %v661, %v515
  %vm687 = vcmask 916480
  %v688 = vsel %vm687, %v663, %v541
  %v689 = vsel %vm687, %v664, %v543
  %v690 = vsel %vm687, %v665, %v545
  %v691 = vsel %vm687, %v666, %v547
  %v692 = vsel %vm687, %v667, %v549
  %v693 = vsel %vm687, %v668, %v551
  %v694 = vsel %vm687, %v669, %v553
  %v695 = vsel %vm687, %v670, %v555
  %v696 = vsel %vm687, %v671, %v557
  %v697 = vsel %vm687, %v672, %v559
  %v698 = vsel %vm687, %v673, %v561
  %v699 = vsel %vm687, %v674, %v563
  %v700 = vsel %vm687, %v675, %v565
  %v701 = vsel %vm687, %v676, %v567
  %v702 = vsel %vm687, %v677, %v569
  %v703 = vsel %vm687, %v678, %v571
  %v704 = vsel %vm687, %v679, %v573
  %v705 = vsel %vm687, %v680, %v575
  %v706 = vsel %vm687, %v681, %v577
  %v707 = vsel %vm687, %v682, %v579
  %v708 = vsel %vm687, %v683, %v581
  %v709 = vsel %vm687, %v684, %v583
  %v710 = vsel %vm687, %v685, %v585
  %v711 = vsel %vm687, %v686, %v587
  %v712 = vld [vmem:[%s1] sm:$0xff]
  %v713 = vld [vmem:[%s1 + $0x8] sm:$0xff]
  %v714 = vld [vmem:[%s1 + $0x10] sm:$0xff]
  %v715 = vld [vmem:[%s1 + $0x18] sm:$0xff]
  %v716 = vld [vmem:[%s1 + $0x20] sm:$0xff]
  %v717 = vld [vmem:[%s1 + $0x28] sm:$0xff]
  %v718 = vld [vmem:[%s1 + $0x30] sm:$0xff]
  %v719 = vld [vmem:[%s1 + $0x38] sm:$0xff]
  %v720 = vld [vmem:[%s1 + $0x40] sm:$0xff]
  %v721 = vld [vmem:[%s1 + $0x48] sm:$0xff]
  %v722 = vld [vmem:[%s1 + $0x50] sm:$0xff]
  %v723 = vld [vmem:[%s1 + $0x58] sm:$0xff]
  %v724 = vld [vmem:[%s1 + $0x60] sm:$0xff]
  %v725 = vld [vmem:[%s1 + $0x68] sm:$0xff]
  %v726 = vld [vmem:[%s1 + $0x70] sm:$0xff]
  %v727 = vld [vmem:[%s1 + $0x78] sm:$0xff]
  %v728 = vld [vmem:[%s1 + $0x80] sm:$0xff]
  %v729 = vld [vmem:[%s1 + $0x88] sm:$0xff]
  %v730 = vld [vmem:[%s1 + $0x90] sm:$0xff]
  %v731 = vld [vmem:[%s1 + $0x98] sm:$0xff]
  %v732 = vld [vmem:[%s1 + $0xa0] sm:$0xff]
  %v733 = vld [vmem:[%s1 + $0xa8] sm:$0xff]
  %v734 = vld [vmem:[%s1 + $0xb0] sm:$0xff]
  %v735 = vld [vmem:[%s1 + $0xb8] sm:$0xff]
  %v736 = vld [vmem:[%s1 + $0xc0] sm:$0xff]
  %v737 = vld [vmem:[%s1 + $0xc8] sm:$0xff]
  %v738 = vld [vmem:[%s1 + $0xd0] sm:$0xff]
  %v739 = vld [vmem:[%s1 + $0xd8] sm:$0xff]
  %v740 = vld [vmem:[%s1 + $0xe0] sm:$0xff]
  %v741 = vld [vmem:[%s1 + $0xe8] sm:$0xff]
  %v742 = vld [vmem:[%s1 + $0xf0] sm:$0xff]
  %v743 = vld [vmem:[%s1 + $0xf8] sm:$0xff]
  %v744 = vld [vmem:[%s1 + $0x100] sm:$0xff]
  %v745 = vld [vmem:[%s1 + $0x108] sm:$0xff]
  %v746 = vld [vmem:[%s1 + $0x110] sm:$0xff]
  %v747 = vld [vmem:[%s1 + $0x118] sm:$0xff]
  %v748 = vld [vmem:[%s1 + $0x120] sm:$0xff]
  %v749 = vld [vmem:[%s1 + $0x128] sm:$0xff]
  %v750 = vld [vmem:[%s1 + $0x130] sm:$0xff]
  %v751 = vld [vmem:[%s1 + $0x138] sm:$0xff]
  %v752 = vld [vmem:[%s1 + $0x140] sm:$0xff]
  %v753 = vld [vmem:[%s1 + $0x148] sm:$0xff]
  %v754 = vld [vmem:[%s1 + $0x150] sm:$0xff]
  %v755 = vld [vmem:[%s1 + $0x158] sm:$0xff]
  %v756 = vld [vmem:[%s1 + $0x160] sm:$0xff]
  %v757 = vld [vmem:[%s1 + $0x168] sm:$0xff]
  %v758 = vld [vmem:[%s1 + $0x170] sm:$0xff]
  %v759 = vld [vmem:[%s1 + $0x178] sm:$0xff]
  %v760 = vld [vmem:[%s1 + $0x180] sm:$0xff]
  %v761 = vld [vmem:[%s1 + $0x188] sm:$0xff]
  %v762 = vld [vmem:[%s1 + $0x190] sm:$0xff]
  %v763 = vld [vmem:[%s1 + $0x198] sm:$0xf]
  %v764 = vld [vmem:[%s1 + $0x1a0] sm:$0xf]
  %v765 = vld [vmem:[%s1 + $0x1a8] sm:$0xf]
  %vm766 = vcmask 97280
  %v767 = vsel %vm766, %v541, 0
  %v769 = vsel %vm766, %v543, 0
  %v771 = vsel %vm766, %v545, 0
  %v773 = vsel %vm766, %v547, 0
  %v775 = vsel %vm766, %v549, 0
  %v777 = vsel %vm766, %v551, 0
  %v779 = vsel %vm766, %v553, 0
  %v781 = vsel %vm766, %v555, 0
  %v783 = vsel %vm766, %v557, 0
  %v785 = vsel %vm766, %v559, 0
  %v787 = vsel %vm766, %v561, 0
  %v789 = vsel %vm766, %v563, 0
  %v791 = vsel %vm766, %v565, 0
  %v793 = vsel %vm766, %v567, 0
  %v795 = vsel %vm766, %v569, 0
  %v797 = vsel %vm766, %v571, 0
  %v799 = vsel %vm766, %v573, 0
  %v801 = vsel %vm766, %v575, 0
  %v803 = vsel %vm766, %v577, 0
  %v805 = vsel %vm766, %v579, 0
  %v807 = vsel %vm766, %v581, 0
  %v809 = vsel %vm766, %v583, 0
  %v811 = vsel %vm766, %v585, 0
  %v813 = vsel %vm766, %v587, 0
  %v816 = vsel %vm267, %v763, 0
  %v819 = vsel %vm267, %v764, 0
  %v822 = vsel %vm267, %v765, 0
  %824 = vmatpush.msra.mxu0 %v757
  %825 = vmatpush.msra.mxu0 %v754
  %826 = vmatpush.msra.mxu0 %v751
  %827 = vmatpush.msra.mxu0 %v748
  %828 = vmatpush.msra.mxu0 %v745
  %829 = vmatpush.msra.mxu0 %v742
  %830 = vmatpush.msra.mxu0 %v739
  %831 = vmatpush.msra.mxu0 %v736
  %832 = vmatpush.msra.mxu0 %v733
  %833 = vmatpush.msra.mxu0 %v730
  %834 = vmatpush.msra.mxu0 %v727
  %835 = vmatpush.msra.mxu0 %v724
  %836 = vmatpush.msra.mxu0 %v721
  %837 = vmatpush.msra.mxu0 %v718
  %838 = vmatpush.msra.mxu0 %v715
  %839 = vmatpush.msra.mxu0 %v712
  %840 = vmatmul.f32.gmra.mxu0 %v688
  %v841 = vpop.f32.mrf.mxu0
  %v842 = vadd.f32 0.0, %v841
  %843 = vmatmul.f32.gmra.mxu0 %v689
  %v844 = vpop.f32.mrf.mxu0
  %v845 = vadd.f32 0.0, %v844
  %846 = vmatmul.f32.gmra.mxu0 %v690
  %v847 = vpop.f32.mrf.mxu0
  %v848 = vadd.f32 0.0, %v847
  %849 = vmatmul.f32.gmra.mxu0 %v691
  %v850 = vpop.f32.mrf.mxu0
  %v851 = vadd.f32 0.0, %v850
  %852 = vmatmul.f32.gmra.mxu0 %v692
  %v853 = vpop.f32.mrf.mxu0
  %v854 = vadd.f32 0.0, %v853
  %855 = vmatmul.f32.gmra.mxu0 %v693
  %v856 = vpop.f32.mrf.mxu0
  %v857 = vadd.f32 0.0, %v856
  %858 = vmatmul.f32.gmra.mxu0 %v694
  %v859 = vpop.f32.mrf.mxu0
  %v860 = vadd.f32 0.0, %v859
  %861 = vmatmul.f32.gmra.mxu0 %v695
  %v862 = vpop.f32.mrf.mxu0
  %v863 = vadd.f32 0.0, %v862
  %864 = vmatmul.f32.gmra.mxu0 %v696
  %v865 = vpop.f32.mrf.mxu0
  %v866 = vadd.f32 0.0, %v865
  %867 = vmatmul.f32.gmra.mxu0 %v697
  %v868 = vpop.f32.mrf.mxu0
  %v869 = vadd.f32 0.0, %v868
  %870 = vmatmul.f32.gmra.mxu0 %v698
  %v871 = vpop.f32.mrf.mxu0
  %v872 = vadd.f32 0.0, %v871
  %873 = vmatmul.f32.gmra.mxu0 %v699
  %v874 = vpop.f32.mrf.mxu0
  %v875 = vadd.f32 0.0, %v874
  %876 = vmatmul.f32.gmra.mxu0 %v700
  %v877 = vpop.f32.mrf.mxu0
  %v878 = vadd.f32 0.0, %v877
  %879 = vmatmul.f32.gmra.mxu0 %v701
  %v880 = vpop.f32.mrf.mxu0
  %v881 = vadd.f32 0.0, %v880
  %882 = vmatmul.f32.gmra.mxu0 %v702
  %v883 = vpop.f32.mrf.mxu0
  %v884 = vadd.f32 0.0, %v883
  %885 = vmatmul.f32.gmra.mxu0 %v703
  %v886 = vpop.f32.mrf.mxu0
  %v887 = vadd.f32 0.0, %v886
  %888 = vmatmul.f32.gmra.mxu0 %v704
  %v889 = vpop.f32.mrf.mxu0
  %v890 = vadd.f32 0.0, %v889
  %891 = vmatmul.f32.gmra.mxu0 %v705
  %v892 = vpop.f32.mrf.mxu0
  %v893 = vadd.f32 0.0, %v892
  %894 = vmatmul.f32.gmra.mxu0 %v706
  %v895 = vpop.f32.mrf.mxu0
  %v896 = vadd.f32 0.0, %v895
  %897 = vmatmul.f32.gmra.mxu0 %v707
  %v898 = vpop.f32.mrf.mxu0
  %v899 = vadd.f32 0.0, %v898
  %900 = vmatmul.f32.gmra.mxu0 %v708
  %v901 = vpop.f32.mrf.mxu0
  %v902 = vadd.f32 0.0, %v901
  %903 = vmatmul.f32.gmra.mxu0 %v709
  %v904 = vpop.f32.mrf.mxu0
  %v905 = vadd.f32 0.0, %v904
  %906 = vmatmul.f32.gmra.mxu0 %v710
  %v907 = vpop.f32.mrf.mxu0
  %v908 = vadd.f32 0.0, %v907
  %909 = vmatmul.f32.gmra.mxu0 %v711
  %v910 = vpop.f32.mrf.mxu0
  %v911 = vadd.f32 0.0, %v910
  %912 = vdwg.mxu0
  %913 = vmatpush.msra.mxu0 0.0
  %914 = vmatpush.msra.mxu0 0.0
  %915 = vmatpush.msra.mxu0 0.0
  %916 = vmatpush.msra.mxu0 0.0
  %917 = vmatpush.msra.mxu0 0.0
  %918 = vmatpush.msra.mxu0 0.0
  %919 = vmatpush.msra.mxu0 0.0
  %920 = vmatpush.msra.mxu0 0.0
  %921 = vmatpush.msra.mxu0 0.0
  %922 = vmatpush.msra.mxu0 0.0
  %923 = vmatpush.msra.mxu0 0.0
  %924 = vmatpush.msra.mxu0 0.0
  %925 = vmatpush.msra.mxu0 0.0
  %926 = vmatpush.msra.mxu0 0.0
  %927 = vmatpush.msra.mxu0 %v816
  %928 = vmatpush.msra.mxu0 %v760
  %929 = vmatmul.f32.gmra.mxu0 %v767
  %v930 = vpop.f32.mrf.mxu0
  %v931 = vadd.f32 %v842, %v930
  %932 = vmatmul.f32.gmra.mxu0 %v769
  %v933 = vpop.f32.mrf.mxu0
  %v934 = vadd.f32 %v845, %v933
  %935 = vmatmul.f32.gmra.mxu0 %v771
  %v936 = vpop.f32.mrf.mxu0
  %v937 = vadd.f32 %v848, %v936
  %938 = vmatmul.f32.gmra.mxu0 %v773
  %v939 = vpop.f32.mrf.mxu0
  %v940 = vadd.f32 %v851, %v939
  %941 = vmatmul.f32.gmra.mxu0 %v775
  %v942 = vpop.f32.mrf.mxu0
  %v943 = vadd.f32 %v854, %v942
  %944 = vmatmul.f32.gmra.mxu0 %v777
  %v945 = vpop.f32.mrf.mxu0
  %v946 = vadd.f32 %v857, %v945
  %947 = vmatmul.f32.gmra.mxu0 %v779
  %v948 = vpop.f32.mrf.mxu0
  %v949 = vadd.f32 %v860, %v948
  %950 = vmatmul.f32.gmra.mxu0 %v781
  %v951 = vpop.f32.mrf.mxu0
  %v952 = vadd.f32 %v863, %v951
  %953 = vmatmul.f32.gmra.mxu0 %v783
  %v954 = vpop.f32.mrf.mxu0
  %v955 = vadd.f32 %v866, %v954
  %956 = vmatmul.f32.gmra.mxu0 %v785
  %v957 = vpop.f32.mrf.mxu0
  %v958 = vadd.f32 %v869, %v957
  %959 = vmatmul.f32.gmra.mxu0 %v787
  %v960 = vpop.f32.mrf.mxu0
  %v961 = vadd.f32 %v872, %v960
  %962 = vmatmul.f32.gmra.mxu0 %v789
  %v963 = vpop.f32.mrf.mxu0
  %v964 = vadd.f32 %v875, %v963
  %965 = vmatmul.f32.gmra.mxu0 %v791
  %v966 = vpop.f32.mrf.mxu0
  %v967 = vadd.f32 %v878, %v966
  %968 = vmatmul.f32.gmra.mxu0 %v793
  %v969 = vpop.f32.mrf.mxu0
  %v970 = vadd.f32 %v881, %v969
  %971 = vmatmul.f32.gmra.mxu0 %v795
  %v972 = vpop.f32.mrf.mxu0
  %v973 = vadd.f32 %v884, %v972
  %974 = vmatmul.f32.gmra.mxu0 %v797
  %v975 = vpop.f32.mrf.mxu0
  %v976 = vadd.f32 %v887, %v975
  %977 = vmatmul.f32.gmra.mxu0 %v799
  %v978 = vpop.f32.mrf.mxu0
  %v979 = vadd.f32 %v890, %v978
  %980 = vmatmul.f32.gmra.mxu0 %v801
  %v981 = vpop.f32.mrf.mxu0
  %v982 = vadd.f32 %v893, %v981
  %983 = vmatmul.f32.gmra.mxu0 %v803
  %v984 = vpop.f32.mrf.mxu0
  %v985 = vadd.f32 %v896, %v984
  %986 = vmatmul.f32.gmra.mxu0 %v805
  %v987 = vpop.f32.mrf.mxu0
  %v988 = vadd.f32 %v899, %v987
  %989 = vmatmul.f32.gmra.mxu0 %v807
  %v990 = vpop.f32.mrf.mxu0
  %v991 = vadd.f32 %v902, %v990
  %992 = vmatmul.f32.gmra.mxu0 %v809
  %v993 = vpop.f32.mrf.mxu0
  %v994 = vadd.f32 %v905, %v993
  %995 = vmatmul.f32.gmra.mxu0 %v811
  %v996 = vpop.f32.mrf.mxu0
  %v997 = vadd.f32 %v908, %v996
  %998 = vmatmul.f32.gmra.mxu0 %v813
  %v999 = vpop.f32.mrf.mxu0
  %v1000 = vadd.f32 %v911, %v999
  %1001 = vdwg.mxu0
  %1002 = vmatpush.msra.mxu0 %v758
  %1003 = vmatpush.msra.mxu0 %v755
  %1004 = vmatpush.msra.mxu0 %v752
  %1005 = vmatpush.msra.mxu0 %v749
  %1006 = vmatpush.msra.mxu0 %v746
  %1007 = vmatpush.msra.mxu0 %v743
  %1008 = vmatpush.msra.mxu0 %v740
  %1009 = vmatpush.msra.mxu0 %v737
  %1010 = vmatpush.msra.mxu0 %v734
  %1011 = vmatpush.msra.mxu0 %v731
  %1012 = vmatpush.msra.mxu0 %v728
  %1013 = vmatpush.msra.mxu0 %v725
  %1014 = vmatpush.msra.mxu0 %v722
  %1015 = vmatpush.msra.mxu0 %v719
  %1016 = vmatpush.msra.mxu0 %v716
  %1017 = vmatpush.msra.mxu0 %v713
  %1018 = vmatmul.f32.gmra.mxu0 %v688
  %v1019 = vpop.f32.mrf.mxu0
  %v1020 = vadd.f32 0.0, %v1019
  %1021 = vmatmul.f32.gmra.mxu0 %v689
  %v1022 = vpop.f32.mrf.mxu0
  %v1023 = vadd.f32 0.0, %v1022
  %1024 = vmatmul.f32.gmra.mxu0 %v690
  %v1025 = vpop.f32.mrf.mxu0
  %v1026 = vadd.f32 0.0, %v1025
  %1027 = vmatmul.f32.gmra.mxu0 %v691
  %v1028 = vpop.f32.mrf.mxu0
  %v1029 = vadd.f32 0.0, %v1028
  %1030 = vmatmul.f32.gmra.mxu0 %v692
  %v1031 = vpop.f32.mrf.mxu0
  %v1032 = vadd.f32 0.0, %v1031
  %1033 = vmatmul.f32.gmra.mxu0 %v693
  %v1034 = vpop.f32.mrf.mxu0
  %v1035 = vadd.f32 0.0, %v1034
  %1036 = vmatmul.f32.gmra.mxu0 %v694
  %v1037 = vpop.f32.mrf.mxu0
  %v1038 = vadd.f32 0.0, %v1037
  %1039 = vmatmul.f32.gmra.mxu0 %v695
  %v1040 = vpop.f32.mrf.mxu0
  %v1041 = vadd.f32 0.0, %v1040
  %1042 = vmatmul.f32.gmra.mxu0 %v696
  %v1043 = vpop.f32.mrf.mxu0
  %v1044 = vadd.f32 0.0, %v1043
  %1045 = vmatmul.f32.gmra.mxu0 %v697
  %v1046 = vpop.f32.mrf.mxu0
  %v1047 = vadd.f32 0.0, %v1046
  %1048 = vmatmul.f32.gmra.mxu0 %v698
  %v1049 = vpop.f32.mrf.mxu0
  %v1050 = vadd.f32 0.0, %v1049
  %1051 = vmatmul.f32.gmra.mxu0 %v699
  %v1052 = vpop.f32.mrf.mxu0
  %v1053 = vadd.f32 0.0, %v1052
  %1054 = vmatmul.f32.gmra.mxu0 %v700
  %v1055 = vpop.f32.mrf.mxu0
  %v1056 = vadd.f32 0.0, %v1055
  %1057 = vmatmul.f32.gmra.mxu0 %v701
  %v1058 = vpop.f32.mrf.mxu0
  %v1059 = vadd.f32 0.0, %v1058
  %1060 = vmatmul.f32.gmra.mxu0 %v702
  %v1061 = vpop.f32.mrf.mxu0
  %v1062 = vadd.f32 0.0, %v1061
  %1063 = vmatmul.f32.gmra.mxu0 %v703
  %v1064 = vpop.f32.mrf.mxu0
  %v1065 = vadd.f32 0.0, %v1064
  %1066 = vmatmul.f32.gmra.mxu0 %v704
  %v1067 = vpop.f32.mrf.mxu0
  %v1068 = vadd.f32 0.0, %v1067
  %1069 = vmatmul.f32.gmra.mxu0 %v705
  %v1070 = vpop.f32.mrf.mxu0
  %v1071 = vadd.f32 0.0, %v1070
  %1072 = vmatmul.f32.gmra.mxu0 %v706
  %v1073 = vpop.f32.mrf.mxu0
  %v1074 = vadd.f32 0.0, %v1073
  %1075 = vmatmul.f32.gmra.mxu0 %v707
  %v1076 = vpop.f32.mrf.mxu0
  %v1077 = vadd.f32 0.0, %v1076
  %1078 = vmatmul.f32.gmra.mxu0 %v708
  %v1079 = vpop.f32.mrf.mxu0
  %v1080 = vadd.f32 0.0, %v1079
  %1081 = vmatmul.f32.gmra.mxu0 %v709
  %v1082 = vpop.f32.mrf.mxu0
  %v1083 = vadd.f32 0.0, %v1082
  %1084 = vmatmul.f32.gmra.mxu0 %v710
  %v1085 = vpop.f32.mrf.mxu0
  %v1086 = vadd.f32 0.0, %v1085
  %1087 = vmatmul.f32.gmra.mxu0 %v711
  %v1088 = vpop.f32.mrf.mxu0
  %v1089 = vadd.f32 0.0, %v1088
  %1090 = vdwg.mxu0
  %1091 = vmatpush.msra.mxu0 0.0
  %1092 = vmatpush.msra.mxu0 0.0
  %1093 = vmatpush.msra.mxu0 0.0
  %1094 = vmatpush.msra.mxu0 0.0
  %1095 = vmatpush.msra.mxu0 0.0
  %1096 = vmatpush.msra.mxu0 0.0
  %1097 = vmatpush.msra.mxu0 0.0
  %1098 = vmatpush.msra.mxu0 0.0
  %1099 = vmatpush.msra.mxu0 0.0
  %1100 = vmatpush.msra.mxu0 0.0
  %1101 = vmatpush.msra.mxu0 0.0
  %1102 = vmatpush.msra.mxu0 0.0
  %1103 = vmatpush.msra.mxu0 0.0
  %1104 = vmatpush.msra.mxu0 0.0
  %1105 = vmatpush.msra.mxu0 %v819
  %1106 = vmatpush.msra.mxu0 %v761
  %1107 = vmatmul.f32.gmra.mxu0 %v767
  %v1108 = vpop.f32.mrf.mxu0
  %v1109 = vadd.f32 %v1020, %v1108
  %1110 = vmatmul.f32.gmra.mxu0 %v769
  %v1111 = vpop.f32.mrf.mxu0
  %v1112 = vadd.f32 %v1023, %v1111
  %1113 = vmatmul.f32.gmra.mxu0 %v771
  %v1114 = vpop.f32.mrf.mxu0
  %v1115 = vadd.f32 %v1026, %v1114
  %1116 = vmatmul.f32.gmra.mxu0 %v773
  %v1117 = vpop.f32.mrf.mxu0
  %v1118 = vadd.f32 %v1029, %v1117
  %1119 = vmatmul.f32.gmra.mxu0 %v775
  %v1120 = vpop.f32.mrf.mxu0
  %v1121 = vadd.f32 %v1032, %v1120
  %1122 = vmatmul.f32.gmra.mxu0 %v777
  %v1123 = vpop.f32.mrf.mxu0
  %v1124 = vadd.f32 %v1035, %v1123
  %1125 = vmatmul.f32.gmra.mxu0 %v779
  %v1126 = vpop.f32.mrf.mxu0
  %v1127 = vadd.f32 %v1038, %v1126
  %1128 = vmatmul.f32.gmra.mxu0 %v781
  %v1129 = vpop.f32.mrf.mxu0
  %v1130 = vadd.f32 %v1041, %v1129
  %1131 = vmatmul.f32.gmra.mxu0 %v783
  %v1132 = vpop.f32.mrf.mxu0
  %v1133 = vadd.f32 %v1044, %v1132
  %1134 = vmatmul.f32.gmra.mxu0 %v785
  %v1135 = vpop.f32.mrf.mxu0
  %v1136 = vadd.f32 %v1047, %v1135
  %1137 = vmatmul.f32.gmra.mxu0 %v787
  %v1138 = vpop.f32.mrf.mxu0
  %v1139 = vadd.f32 %v1050, %v1138
  %1140 = vmatmul.f32.gmra.mxu0 %v789
  %v1141 = vpop.f32.mrf.mxu0
  %v1142 = vadd.f32 %v1053, %v1141
  %1143 = vmatmul.f32.gmra.mxu0 %v791
  %v1144 = vpop.f32.mrf.mxu0
  %v1145 = vadd.f32 %v1056, %v1144
  %1146 = vmatmul.f32.gmra.mxu0 %v793
  %v1147 = vpop.f32.mrf.mxu0
  %v1148 = vadd.f32 %v1059, %v1147
  %1149 = vmatmul.f32.gmra.mxu0 %v795
  %v1150 = vpop.f32.mrf.mxu0
  %v1151 = vadd.f32 %v1062, %v1150
  %1152 = vmatmul.f32.gmra.mxu0 %v797
  %v1153 = vpop.f32.mrf.mxu0
  %v1154 = vadd.f32 %v1065, %v1153
  %1155 = vmatmul.f32.gmra.mxu0 %v799
  %v1156 = vpop.f32.mrf.mxu0
  %v1157 = vadd.f32 %v1068, %v1156
  %1158 = vmatmul.f32.gmra.mxu0 %v801
  %v1159 = vpop.f32.mrf.mxu0
  %v1160 = vadd.f32 %v1071, %v1159
  %1161 = vmatmul.f32.gmra.mxu0 %v803
  %v1162 = vpop.f32.mrf.mxu0
  %v1163 = vadd.f32 %v1074, %v1162
  %1164 = vmatmul.f32.gmra.mxu0 %v805
  %v1165 = vpop.f32.mrf.mxu0
  %v1166 = vadd.f32 %v1077, %v1165
  %1167 = vmatmul.f32.gmra.mxu0 %v807
  %v1168 = vpop.f32.mrf.mxu0
  %v1169 = vadd.f32 %v1080, %v1168
  %1170 = vmatmul.f32.gmra.mxu0 %v809
  %v1171 = vpop.f32.mrf.mxu0
  %v1172 = vadd.f32 %v1083, %v1171
  %1173 = vmatmul.f32.gmra.mxu0 %v811
  %v1174 = vpop.f32.mrf.mxu0
  %v1175 = vadd.f32 %v1086, %v1174
  %1176 = vmatmul.f32.gmra.mxu0 %v813
  %v1177 = vpop.f32.mrf.mxu0
  %v1178 = vadd.f32 %v1089, %v1177
  %1179 = vdwg.mxu0
  %1180 = vmatpush.msra.mxu0 %v759
  %1181 = vmatpush.msra.mxu0 %v756
  %1182 = vmatpush.msra.mxu0 %v753
  %1183 = vmatpush.msra.mxu0 %v750
  %1184 = vmatpush.msra.mxu0 %v747
  %1185 = vmatpush.msra.mxu0 %v744
  %1186 = vmatpush.msra.mxu0 %v741
  %1187 = vmatpush.msra.mxu0 %v738
  %1188 = vmatpush.msra.mxu0 %v735
  %1189 = vmatpush.msra.mxu0 %v732
  %1190 = vmatpush.msra.mxu0 %v729
  %1191 = vmatpush.msra.mxu0 %v726
  %1192 = vmatpush.msra.mxu0 %v723
  %1193 = vmatpush.msra.mxu0 %v720
  %1194 = vmatpush.msra.mxu0 %v717
  %1195 = vmatpush.msra.mxu0 %v714
  %1196 = vmatmul.f32.gmra.mxu0 %v688
  %v1197 = vpop.f32.mrf.mxu0
  %v1198 = vadd.f32 0.0, %v1197
  %1199 = vmatmul.f32.gmra.mxu0 %v689
  %v1200 = vpop.f32.mrf.mxu0
  %v1201 = vadd.f32 0.0, %v1200
  %1202 = vmatmul.f32.gmra.mxu0 %v690
  %v1203 = vpop.f32.mrf.mxu0
  %v1204 = vadd.f32 0.0, %v1203
  %1205 = vmatmul.f32.gmra.mxu0 %v691
  %v1206 = vpop.f32.mrf.mxu0
  %v1207 = vadd.f32 0.0, %v1206
  %1208 = vmatmul.f32.gmra.mxu0 %v692
  %v1209 = vpop.f32.mrf.mxu0
  %v1210 = vadd.f32 0.0, %v1209
  %1211 = vmatmul.f32.gmra.mxu0 %v693
  %v1212 = vpop.f32.mrf.mxu0
  %v1213 = vadd.f32 0.0, %v1212
  %1214 = vmatmul.f32.gmra.mxu0 %v694
  %v1215 = vpop.f32.mrf.mxu0
  %v1216 = vadd.f32 0.0, %v1215
  %1217 = vmatmul.f32.gmra.mxu0 %v695
  %v1218 = vpop.f32.mrf.mxu0
  %v1219 = vadd.f32 0.0, %v1218
  %1220 = vmatmul.f32.gmra.mxu0 %v696
  %v1221 = vpop.f32.mrf.mxu0
  %v1222 = vadd.f32 0.0, %v1221
  %1223 = vmatmul.f32.gmra.mxu0 %v697
  %v1224 = vpop.f32.mrf.mxu0
  %v1225 = vadd.f32 0.0, %v1224
  %1226 = vmatmul.f32.gmra.mxu0 %v698
  %v1227 = vpop.f32.mrf.mxu0
  %v1228 = vadd.f32 0.0, %v1227
  %1229 = vmatmul.f32.gmra.mxu0 %v699
  %v1230 = vpop.f32.mrf.mxu0
  %v1231 = vadd.f32 0.0, %v1230
  %1232 = vmatmul.f32.gmra.mxu0 %v700
  %v1233 = vpop.f32.mrf.mxu0
  %v1234 = vadd.f32 0.0, %v1233
  %1235 = vmatmul.f32.gmra.mxu0 %v701
  %v1236 = vpop.f32.mrf.mxu0
  %v1237 = vadd.f32 0.0, %v1236
  %1238 = vmatmul.f32.gmra.mxu0 %v702
  %v1239 = vpop.f32.mrf.mxu0
  %v1240 = vadd.f32 0.0, %v1239
  %1241 = vmatmul.f32.gmra.mxu0 %v703
  %v1242 = vpop.f32.mrf.mxu0
  %v1243 = vadd.f32 0.0, %v1242
  %1244 = vmatmul.f32.gmra.mxu0 %v704
  %v1245 = vpop.f32.mrf.mxu0
  %v1246 = vadd.f32 0.0, %v1245
  %1247 = vmatmul.f32.gmra.mxu0 %v705
  %v1248 = vpop.f32.mrf.mxu0
  %v1249 = vadd.f32 0.0, %v1248
  %1250 = vmatmul.f32.gmra.mxu0 %v706
  %v1251 = vpop.f32.mrf.mxu0
  %v1252 = vadd.f32 0.0, %v1251
  %1253 = vmatmul.f32.gmra.mxu0 %v707
  %v1254 = vpop.f32.mrf.mxu0
  %v1255 = vadd.f32 0.0, %v1254
  %1256 = vmatmul.f32.gmra.mxu0 %v708
  %v1257 = vpop.f32.mrf.mxu0
  %v1258 = vadd.f32 0.0, %v1257
  %1259 = vmatmul.f32.gmra.mxu0 %v709
  %v1260 = vpop.f32.mrf.mxu0
  %v1261 = vadd.f32 0.0, %v1260
  %1262 = vmatmul.f32.gmra.mxu0 %v710
  %v1263 = vpop.f32.mrf.mxu0
  %v1264 = vadd.f32 0.0, %v1263
  %1265 = vmatmul.f32.gmra.mxu0 %v711
  %v1266 = vpop.f32.mrf.mxu0
  %v1267 = vadd.f32 0.0, %v1266
  %1268 = vdwg.mxu0
  %1269 = vmatpush.msra.mxu0 0.0
  %1270 = vmatpush.msra.mxu0 0.0
  %1271 = vmatpush.msra.mxu0 0.0
  %1272 = vmatpush.msra.mxu0 0.0
  %1273 = vmatpush.msra.mxu0 0.0
  %1274 = vmatpush.msra.mxu0 0.0
  %1275 = vmatpush.msra.mxu0 0.0
  %1276 = vmatpush.msra.mxu0 0.0
  %1277 = vmatpush.msra.mxu0 0.0
  %1278 = vmatpush.msra.mxu0 0.0
  %1279 = vmatpush.msra.mxu0 0.0
  %1280 = vmatpush.msra.mxu0 0.0
  %1281 = vmatpush.msra.mxu0 0.0
  %1282 = vmatpush.msra.mxu0 0.0
  %1283 = vmatpush.msra.mxu0 %v822
  %1284 = vmatpush.msra.mxu0 %v762
  %1285 = vmatmul.f32.gmra.mxu0 %v767
  %v1286 = vpop.f32.mrf.mxu0
  %v1287 = vadd.f32 %v1198, %v1286
  %1288 = vmatmul.f32.gmra.mxu0 %v769
  %v1289 = vpop.f32.mrf.mxu0
  %v1290 = vadd.f32 %v1201, %v1289
  %1291 = vmatmul.f32.gmra.mxu0 %v771
  %v1292 = vpop.f32.mrf.mxu0
  %v1293 = vadd.f32 %v1204, %v1292
  %1294 = vmatmul.f32.gmra.mxu0 %v773
  %v1295 = vpop.f32.mrf.mxu0
  %v1296 = vadd.f32 %v1207, %v1295
  %1297 = vmatmul.f32.gmra.mxu0 %v775
  %v1298 = vpop.f32.mrf.mxu0
  %v1299 = vadd.f32 %v1210, %v1298
  %1300 = vmatmul.f32.gmra.mxu0 %v777
  %v1301 = vpop.f32.mrf.mxu0
  %v1302 = vadd.f32 %v1213, %v1301
  %1303 = vmatmul.f32.gmra.mxu0 %v779
  %v1304 = vpop.f32.mrf.mxu0
  %v1305 = vadd.f32 %v1216, %v1304
  %1306 = vmatmul.f32.gmra.mxu0 %v781
  %v1307 = vpop.f32.mrf.mxu0
  %v1308 = vadd.f32 %v1219, %v1307
  %1309 = vmatmul.f32.gmra.mxu0 %v783
  %v1310 = vpop.f32.mrf.mxu0
  %v1311 = vadd.f32 %v1222, %v1310
  %1312 = vmatmul.f32.gmra.mxu0 %v785
  %v1313 = vpop.f32.mrf.mxu0
  %v1314 = vadd.f32 %v1225, %v1313
  %1315 = vmatmul.f32.gmra.mxu0 %v787
  %v1316 = vpop.f32.mrf.mxu0
  %v1317 = vadd.f32 %v1228, %v1316
  %1318 = vmatmul.f32.gmra.mxu0 %v789
  %v1319 = vpop.f32.mrf.mxu0
  %v1320 = vadd.f32 %v1231, %v1319
  %1321 = vmatmul.f32.gmra.mxu0 %v791
  %v1322 = vpop.f32.mrf.mxu0
  %v1323 = vadd.f32 %v1234, %v1322
  %1324 = vmatmul.f32.gmra.mxu0 %v793
  %v1325 = vpop.f32.mrf.mxu0
  %v1326 = vadd.f32 %v1237, %v1325
  %1327 = vmatmul.f32.gmra.mxu0 %v795
  %v1328 = vpop.f32.mrf.mxu0
  %v1329 = vadd.f32 %v1240, %v1328
  %1330 = vmatmul.f32.gmra.mxu0 %v797
  %v1331 = vpop.f32.mrf.mxu0
  %v1332 = vadd.f32 %v1243, %v1331
  %1333 = vmatmul.f32.gmra.mxu0 %v799
  %v1334 = vpop.f32.mrf.mxu0
  %v1335 = vadd.f32 %v1246, %v1334
  %1336 = vmatmul.f32.gmra.mxu0 %v801
  %v1337 = vpop.f32.mrf.mxu0
  %v1338 = vadd.f32 %v1249, %v1337
  %1339 = vmatmul.f32.gmra.mxu0 %v803
  %v1340 = vpop.f32.mrf.mxu0
  %v1341 = vadd.f32 %v1252, %v1340
  %1342 = vmatmul.f32.gmra.mxu0 %v805
  %v1343 = vpop.f32.mrf.mxu0
  %v1344 = vadd.f32 %v1255, %v1343
  %1345 = vmatmul.f32.gmra.mxu0 %v807
  %v1346 = vpop.f32.mrf.mxu0
  %v1347 = vadd.f32 %v1258, %v1346
  %1348 = vmatmul.f32.gmra.mxu0 %v809
  %v1349 = vpop.f32.mrf.mxu0
  %v1350 = vadd.f32 %v1261, %v1349
  %1351 = vmatmul.f32.gmra.mxu0 %v811
  %v1352 = vpop.f32.mrf.mxu0
  %v1353 = vadd.f32 %v1264, %v1352
  %1354 = vmatmul.f32.gmra.mxu0 %v813
  %v1355 = vpop.f32.mrf.mxu0
  %v1356 = vadd.f32 %v1267, %v1355
  %1357 = vdwg.mxu0
  %1406 = vrot.lane.b32.xlu0 %v1109, 64
  %v1407 = vpop.permute.xlu0 %1406
  %1408 = vrot.lane.b32.xlu0 %v1287, 64
  %v1409 = vpop.permute.xlu0 %1408
  %1410 = vrot.lane.b32.xlu0 %v1112, 64
  %v1411 = vpop.permute.xlu0 %1410
  %1412 = vrot.lane.b32.xlu0 %v1290, 64
  %v1413 = vpop.permute.xlu0 %1412
  %1414 = vrot.lane.b32.xlu0 %v1115, 64
  %v1415 = vpop.permute.xlu0 %1414
  %1416 = vrot.lane.b32.xlu0 %v1293, 64
  %v1417 = vpop.permute.xlu0 %1416
  %1418 = vrot.lane.b32.xlu0 %v1118, 64
  %v1419 = vpop.permute.xlu0 %1418
  %1420 = vrot.lane.b32.xlu0 %v1296, 64
  %v1421 = vpop.permute.xlu0 %1420
  %1422 = vrot.lane.b32.xlu0 %v1121, 64
  %v1423 = vpop.permute.xlu0 %1422
  %1424 = vrot.lane.b32.xlu0 %v1299, 64
  %v1425 = vpop.permute.xlu0 %1424
  %1426 = vrot.lane.b32.xlu0 %v1124, 64
  %v1427 = vpop.permute.xlu0 %1426
  %1428 = vrot.lane.b32.xlu0 %v1302, 64
  %v1429 = vpop.permute.xlu0 %1428
  %1430 = vrot.lane.b32.xlu0 %v1127, 64
  %v1431 = vpop.permute.xlu0 %1430
  %1432 = vrot.lane.b32.xlu0 %v1305, 64
  %v1433 = vpop.permute.xlu0 %1432
  %1434 = vrot.lane.b32.xlu0 %v1130, 64
  %v1435 = vpop.permute.xlu0 %1434
  %1436 = vrot.lane.b32.xlu0 %v1308, 64
  %v1437 = vpop.permute.xlu0 %1436
  %1438 = vrot.lane.b32.xlu0 %v1133, 64
  %v1439 = vpop.permute.xlu0 %1438
  %1440 = vrot.lane.b32.xlu0 %v1311, 64
  %v1441 = vpop.permute.xlu0 %1440
  %1442 = vrot.lane.b32.xlu0 %v1136, 64
  %v1443 = vpop.permute.xlu0 %1442
  %1444 = vrot.lane.b32.xlu0 %v1314, 64
  %v1445 = vpop.permute.xlu0 %1444
  %1446 = vrot.lane.b32.xlu0 %v1139, 64
  %v1447 = vpop.permute.xlu0 %1446
  %1448 = vrot.lane.b32.xlu0 %v1317, 64
  %v1449 = vpop.permute.xlu0 %1448
  %1450 = vrot.lane.b32.xlu0 %v1142, 64
  %v1451 = vpop.permute.xlu0 %1450
  %1452 = vrot.lane.b32.xlu0 %v1320, 64
  %v1453 = vpop.permute.xlu0 %1452
  %1454 = vrot.lane.b32.xlu0 %v1145, 64
  %v1455 = vpop.permute.xlu0 %1454
  %1456 = vrot.lane.b32.xlu0 %v1323, 64
  %v1457 = vpop.permute.xlu0 %1456
  %1458 = vrot.lane.b32.xlu0 %v1148, 64
  %v1459 = vpop.permute.xlu0 %1458
  %1460 = vrot.lane.b32.xlu0 %v1326, 64
  %v1461 = vpop.permute.xlu0 %1460
  %1462 = vrot.lane.b32.xlu0 %v1151, 64
  %v1463 = vpop.permute.xlu0 %1462
  %1464 = vrot.lane.b32.xlu0 %v1329, 64
  %v1465 = vpop.permute.xlu0 %1464
  %1466 = vrot.lane.b32.xlu0 %v1154, 64
  %v1467 = vpop.permute.xlu0 %1466
  %1468 = vrot.lane.b32.xlu0 %v1332, 64
  %v1469 = vpop.permute.xlu0 %1468
  %1470 = vrot.lane.b32.xlu0 %v1157, 64
  %v1471 = vpop.permute.xlu0 %1470
  %1472 = vrot.lane.b32.xlu0 %v1335, 64
  %v1473 = vpop.permute.xlu0 %1472
  %1474 = vrot.lane.b32.xlu0 %v1160, 64
  %v1475 = vpop.permute.xlu0 %1474
  %1476 = vrot.lane.b32.xlu0 %v1338, 64
  %v1477 = vpop.permute.xlu0 %1476
  %1478 = vrot.lane.b32.xlu0 %v1163, 64
  %v1479 = vpop.permute.xlu0 %1478
  %1480 = vrot.lane.b32.xlu0 %v1341, 64
  %v1481 = vpop.permute.xlu0 %1480
  %1482 = vrot.lane.b32.xlu0 %v1166, 64
  %v1483 = vpop.permute.xlu0 %1482
  %1484 = vrot.lane.b32.xlu0 %v1344, 64
  %v1485 = vpop.permute.xlu0 %1484
  %1486 = vrot.lane.b32.xlu0 %v1169, 64
  %v1487 = vpop.permute.xlu0 %1486
  %1488 = vrot.lane.b32.xlu0 %v1347, 64
  %v1489 = vpop.permute.xlu0 %1488
  %1490 = vrot.lane.b32.xlu0 %v1172, 64
  %v1491 = vpop.permute.xlu0 %1490
  %1492 = vrot.lane.b32.xlu0 %v1350, 64
  %v1493 = vpop.permute.xlu0 %1492
  %1494 = vrot.lane.b32.xlu0 %v1175, 64
  %v1495 = vpop.permute.xlu0 %1494
  %1496 = vrot.lane.b32.xlu0 %v1353, 64
  %v1497 = vpop.permute.xlu0 %1496
  %1498 = vrot.lane.b32.xlu0 %v1178, 64
  %v1499 = vpop.permute.xlu0 %1498
  %1500 = vrot.lane.b32.xlu0 %v1356, 64
  %v1501 = vpop.permute.xlu0 %1500
  %vm1502 = vcmask 523264
  %v1503 = vsel %vm1502, %v1407, %v1409
  %v1504 = vsel %vm1502, %v1411, %v1413
  %v1505 = vsel %vm1502, %v1415, %v1417
  %v1506 = vsel %vm1502, %v1419, %v1421
  %v1507 = vsel %vm1502, %v1423, %v1425
  %v1508 = vsel %vm1502, %v1427, %v1429
  %v1509 = vsel %vm1502, %v1431, %v1433
  %v1510 = vsel %vm1502, %v1435, %v1437
  %v1511 = vsel %vm1502, %v1439, %v1441
  %v1512 = vsel %vm1502, %v1443, %v1445
  %v1513 = vsel %vm1502, %v1447, %v1449
  %v1514 = vsel %vm1502, %v1451, %v1453
  %v1515 = vsel %vm1502, %v1455, %v1457
  %v1516 = vsel %vm1502, %v1459, %v1461
  %v1517 = vsel %vm1502, %v1463, %v1465
  %v1518 = vsel %vm1502, %v1467, %v1469
  %v1519 = vsel %vm1502, %v1471, %v1473
  %v1520 = vsel %vm1502, %v1475, %v1477
  %v1521 = vsel %vm1502, %v1479, %v1481
  %v1522 = vsel %vm1502, %v1483, %v1485
  %v1523 = vsel %vm1502, %v1487, %v1489
  %v1524 = vsel %vm1502, %v1491, %v1493
  %v1525 = vsel %vm1502, %v1495, %v1497
  %v1526 = vsel %vm1502, %v1499, %v1501
  %v1575 = vmax.f32 %v931, %v1503
  %v1576 = vmax.f32 %v1109, %v1409
  %v1577 = vmax.f32 %v934, %v1504
  %v1578 = vmax.f32 %v1112, %v1413
  %v1579 = vmax.f32 %v937, %v1505
  %v1580 = vmax.f32 %v1115, %v1417
  %v1581 = vmax.f32 %v940, %v1506
  %v1582 = vmax.f32 %v1118, %v1421
  %v1583 = vmax.f32 %v943, %v1507
  %v1584 = vmax.f32 %v1121, %v1425
  %v1585 = vmax.f32 %v946, %v1508
  %v1586 = vmax.f32 %v1124, %v1429
  %v1587 = vmax.f32 %v949, %v1509
  %v1588 = vmax.f32 %v1127, %v1433
  %v1589 = vmax.f32 %v952, %v1510
  %v1590 = vmax.f32 %v1130, %v1437
  %v1591 = vmax.f32 %v955, %v1511
  %v1592 = vmax.f32 %v1133, %v1441
  %v1593 = vmax.f32 %v958, %v1512
  %v1594 = vmax.f32 %v1136, %v1445
  %v1595 = vmax.f32 %v961, %v1513
  %v1596 = vmax.f32 %v1139, %v1449
  %v1597 = vmax.f32 %v964, %v1514
  %v1598 = vmax.f32 %v1142, %v1453
  %v1599 = vmax.f32 %v967, %v1515
  %v1600 = vmax.f32 %v1145, %v1457
  %v1601 = vmax.f32 %v970, %v1516
  %v1602 = vmax.f32 %v1148, %v1461
  %v1603 = vmax.f32 %v973, %v1517
  %v1604 = vmax.f32 %v1151, %v1465
  %v1605 = vmax.f32 %v976, %v1518
  %v1606 = vmax.f32 %v1154, %v1469
  %v1607 = vmax.f32 %v979, %v1519
  %v1608 = vmax.f32 %v1157, %v1473
  %v1609 = vmax.f32 %v982, %v1520
  %v1610 = vmax.f32 %v1160, %v1477
  %v1611 = vmax.f32 %v985, %v1521
  %v1612 = vmax.f32 %v1163, %v1481
  %v1613 = vmax.f32 %v988, %v1522
  %v1614 = vmax.f32 %v1166, %v1485
  %v1615 = vmax.f32 %v991, %v1523
  %v1616 = vmax.f32 %v1169, %v1489
  %v1617 = vmax.f32 %v994, %v1524
  %v1618 = vmax.f32 %v1172, %v1493
  %v1619 = vmax.f32 %v997, %v1525
  %v1620 = vmax.f32 %v1175, %v1497
  %v1621 = vmax.f32 %v1000, %v1526
  %v1622 = vmax.f32 %v1178, %v1501
  %v1671 = vrot.slane %v1576, 6
  %v1672 = vrot.slane %v1578, 6
  %v1673 = vrot.slane %v1580, 6
  %v1674 = vrot.slane %v1582, 6
  %v1675 = vrot.slane %v1584, 6
  %v1676 = vrot.slane %v1586, 6
  %v1677 = vrot.slane %v1588, 6
  %v1678 = vrot.slane %v1590, 6
  %v1679 = vrot.slane %v1592, 6
  %v1680 = vrot.slane %v1594, 6
  %v1681 = vrot.slane %v1596, 6
  %v1682 = vrot.slane %v1598, 6
  %v1683 = vrot.slane %v1600, 6
  %v1684 = vrot.slane %v1602, 6
  %v1685 = vrot.slane %v1604, 6
  %v1686 = vrot.slane %v1606, 6
  %v1687 = vrot.slane %v1608, 6
  %v1688 = vrot.slane %v1610, 6
  %v1689 = vrot.slane %v1612, 6
  %v1690 = vrot.slane %v1614, 6
  %v1691 = vrot.slane %v1616, 6
  %v1692 = vrot.slane %v1618, 6
  %v1693 = vrot.slane %v1620, 6
  %v1694 = vrot.slane %v1622, 6
  %vm1695 = vcmask 1041408
  %v1696 = vsel %vm1695, %v1575, %v1671
  %vm1697 = vcmask 1043458
  %v1698 = vsel %vm1697, %v1575, %v1671
  %v1699 = vrot.slane %v1698, 2
  %vm1700 = vcmask 1045508
  %v1701 = vsel %vm1700, %v1575, %v1671
  %v1702 = vrot.slane %v1701, 4
  %v1703 = vsel %vm153, %v1671, %v1575
  %v1704 = vrot.slane %v1703, 6
  %v1705 = vsel %vm1695, %v1577, %v1672
  %v1706 = vsel %vm1697, %v1577, %v1672
  %v1707 = vrot.slane %v1706, 2
  %v1708 = vsel %vm1700, %v1577, %v1672
  %v1709 = vrot.slane %v1708, 4
  %v1710 = vsel %vm153, %v1672, %v1577
  %v1711 = vrot.slane %v1710, 6
  %v1712 = vsel %vm1695, %v1579, %v1673
  %v1713 = vsel %vm1697, %v1579, %v1673
  %v1714 = vrot.slane %v1713, 2
  %v1715 = vsel %vm1700, %v1579, %v1673
  %v1716 = vrot.slane %v1715, 4
  %v1717 = vsel %vm153, %v1673, %v1579
  %v1718 = vrot.slane %v1717, 6
  %v1719 = vsel %vm1695, %v1581, %v1674
  %v1720 = vsel %vm1697, %v1581, %v1674
  %v1721 = vrot.slane %v1720, 2
  %v1722 = vsel %vm1700, %v1581, %v1674
  %v1723 = vrot.slane %v1722, 4
  %v1724 = vsel %vm153, %v1674, %v1581
  %v1725 = vrot.slane %v1724, 6
  %v1726 = vsel %vm1695, %v1583, %v1675
  %v1727 = vsel %vm1697, %v1583, %v1675
  %v1728 = vrot.slane %v1727, 2
  %v1729 = vsel %vm1700, %v1583, %v1675
  %v1730 = vrot.slane %v1729, 4
  %v1731 = vsel %vm153, %v1675, %v1583
  %v1732 = vrot.slane %v1731, 6
  %v1733 = vsel %vm1695, %v1585, %v1676
  %v1734 = vsel %vm1697, %v1585, %v1676
  %v1735 = vrot.slane %v1734, 2
  %v1736 = vsel %vm1700, %v1585, %v1676
  %v1737 = vrot.slane %v1736, 4
  %v1738 = vsel %vm153, %v1676, %v1585
  %v1739 = vrot.slane %v1738, 6
  %v1740 = vsel %vm1695, %v1587, %v1677
  %v1741 = vsel %vm1697, %v1587, %v1677
  %v1742 = vrot.slane %v1741, 2
  %v1743 = vsel %vm1700, %v1587, %v1677
  %v1744 = vrot.slane %v1743, 4
  %v1745 = vsel %vm153, %v1677, %v1587
  %v1746 = vrot.slane %v1745, 6
  %v1747 = vsel %vm1695, %v1589, %v1678
  %v1748 = vsel %vm1697, %v1589, %v1678
  %v1749 = vrot.slane %v1748, 2
  %v1750 = vsel %vm1700, %v1589, %v1678
  %v1751 = vrot.slane %v1750, 4
  %v1752 = vsel %vm153, %v1678, %v1589
  %v1753 = vrot.slane %v1752, 6
  %v1754 = vsel %vm1695, %v1591, %v1679
  %v1755 = vsel %vm1697, %v1591, %v1679
  %v1756 = vrot.slane %v1755, 2
  %v1757 = vsel %vm1700, %v1591, %v1679
  %v1758 = vrot.slane %v1757, 4
  %v1759 = vsel %vm153, %v1679, %v1591
  %v1760 = vrot.slane %v1759, 6
  %v1761 = vsel %vm1695, %v1593, %v1680
  %v1762 = vsel %vm1697, %v1593, %v1680
  %v1763 = vrot.slane %v1762, 2
  %v1764 = vsel %vm1700, %v1593, %v1680
  %v1765 = vrot.slane %v1764, 4
  %v1766 = vsel %vm153, %v1680, %v1593
  %v1767 = vrot.slane %v1766, 6
  %v1768 = vsel %vm1695, %v1595, %v1681
  %v1769 = vsel %vm1697, %v1595, %v1681
  %v1770 = vrot.slane %v1769, 2
  %v1771 = vsel %vm1700, %v1595, %v1681
  %v1772 = vrot.slane %v1771, 4
  %v1773 = vsel %vm153, %v1681, %v1595
  %v1774 = vrot.slane %v1773, 6
  %v1775 = vsel %vm1695, %v1597, %v1682
  %v1776 = vsel %vm1697, %v1597, %v1682
  %v1777 = vrot.slane %v1776, 2
  %v1778 = vsel %vm1700, %v1597, %v1682
  %v1779 = vrot.slane %v1778, 4
  %v1780 = vsel %vm153, %v1682, %v1597
  %v1781 = vrot.slane %v1780, 6
  %v1782 = vsel %vm1695, %v1599, %v1683
  %v1783 = vsel %vm1697, %v1599, %v1683
  %v1784 = vrot.slane %v1783, 2
  %v1785 = vsel %vm1700, %v1599, %v1683
  %v1786 = vrot.slane %v1785, 4
  %v1787 = vsel %vm153, %v1683, %v1599
  %v1788 = vrot.slane %v1787, 6
  %v1789 = vsel %vm1695, %v1601, %v1684
  %v1790 = vsel %vm1697, %v1601, %v1684
  %v1791 = vrot.slane %v1790, 2
  %v1792 = vsel %vm1700, %v1601, %v1684
  %v1793 = vrot.slane %v1792, 4
  %v1794 = vsel %vm153, %v1684, %v1601
  %v1795 = vrot.slane %v1794, 6
  %v1796 = vsel %vm1695, %v1603, %v1685
  %v1797 = vsel %vm1697, %v1603, %v1685
  %v1798 = vrot.slane %v1797, 2
  %v1799 = vsel %vm1700, %v1603, %v1685
  %v1800 = vrot.slane %v1799, 4
  %v1801 = vsel %vm153, %v1685, %v1603
  %v1802 = vrot.slane %v1801, 6
  %v1803 = vsel %vm1695, %v1605, %v1686
  %v1804 = vsel %vm1697, %v1605, %v1686
  %v1805 = vrot.slane %v1804, 2
  %v1806 = vsel %vm1700, %v1605, %v1686
  %v1807 = vrot.slane %v1806, 4
  %v1808 = vsel %vm153, %v1686, %v1605
  %v1809 = vrot.slane %v1808, 6
  %v1810 = vsel %vm1695, %v1607, %v1687
  %v1811 = vsel %vm1697, %v1607, %v1687
  %v1812 = vrot.slane %v1811, 2
  %v1813 = vsel %vm1700, %v1607, %v1687
  %v1814 = vrot.slane %v1813, 4
  %v1815 = vsel %vm153, %v1687, %v1607
  %v1816 = vrot.slane %v1815, 6
  %v1817 = vsel %vm1695, %v1609, %v1688
  %v1818 = vsel %vm1697, %v1609, %v1688
  %v1819 = vrot.slane %v1818, 2
  %v1820 = vsel %vm1700, %v1609, %v1688
  %v1821 = vrot.slane %v1820, 4
  %v1822 = vsel %vm153, %v1688, %v1609
  %v1823 = vrot.slane %v1822, 6
  %v1824 = vsel %vm1695, %v1611, %v1689
  %v1825 = vsel %vm1697, %v1611, %v1689
  %v1826 = vrot.slane %v1825, 2
  %v1827 = vsel %vm1700, %v1611, %v1689
  %v1828 = vrot.slane %v1827, 4
  %v1829 = vsel %vm153, %v1689, %v1611
  %v1830 = vrot.slane %v1829, 6
  %v1831 = vsel %vm1695, %v1613, %v1690
  %v1832 = vsel %vm1697, %v1613, %v1690
  %v1833 = vrot.slane %v1832, 2
  %v1834 = vsel %vm1700, %v1613, %v1690
  %v1835 = vrot.slane %v1834, 4
  %v1836 = vsel %vm153, %v1690, %v1613
  %v1837 = vrot.slane %v1836, 6
  %v1838 = vsel %vm1695, %v1615, %v1691
  %v1839 = vsel %vm1697, %v1615, %v1691
  %v1840 = vrot.slane %v1839, 2
  %v1841 = vsel %vm1700, %v1615, %v1691
  %v1842 = vrot.slane %v1841, 4
  %v1843 = vsel %vm153, %v1691, %v1615
  %v1844 = vrot.slane %v1843, 6
  %v1845 = vsel %vm1695, %v1617, %v1692
  %v1846 = vsel %vm1697, %v1617, %v1692
  %v1847 = vrot.slane %v1846, 2
  %v1848 = vsel %vm1700, %v1617, %v1692
  %v1849 = vrot.slane %v1848, 4
  %v1850 = vsel %vm153, %v1692, %v1617
  %v1851 = vrot.slane %v1850, 6
  %v1852 = vsel %vm1695, %v1619, %v1693
  %v1853 = vsel %vm1697, %v1619, %v1693
  %v1854 = vrot.slane %v1853, 2
  %v1855 = vsel %vm1700, %v1619, %v1693
  %v1856 = vrot.slane %v1855, 4
  %v1857 = vsel %vm153, %v1693, %v1619
  %v1858 = vrot.slane %v1857, 6
  %v1859 = vsel %vm1695, %v1621, %v1694
  %v1860 = vsel %vm1697, %v1621, %v1694
  %v1861 = vrot.slane %v1860, 2
  %v1862 = vsel %vm1700, %v1621, %v1694
  %v1863 = vrot.slane %v1862, 4
  %v1864 = vsel %vm153, %v1694, %v1621
  %v1865 = vrot.slane %v1864, 6
  %v1962 = vrot.slane %v1696, 7
  %v1963 = vrot.slane %v1962, 2
  %v1964 = vrot.slane %v1699, 7
  %v1965 = vrot.slane %v1964, 2
  %v1966 = vrot.slane %v1702, 7
  %v1967 = vrot.slane %v1966, 2
  %v1968 = vrot.slane %v1704, 7
  %v1969 = vrot.slane %v1968, 2
  %v1970 = vrot.slane %v1705, 7
  %v1971 = vrot.slane %v1970, 2
  %v1972 = vrot.slane %v1707, 7
  %v1973 = vrot.slane %v1972, 2
  %v1974 = vrot.slane %v1709, 7
  %v1975 = vrot.slane %v1974, 2
  %v1976 = vrot.slane %v1711, 7
  %v1977 = vrot.slane %v1976, 2
  %v1978 = vrot.slane %v1712, 7
  %v1979 = vrot.slane %v1978, 2
  %v1980 = vrot.slane %v1714, 7
  %v1981 = vrot.slane %v1980, 2
  %v1982 = vrot.slane %v1716, 7
  %v1983 = vrot.slane %v1982, 2
  %v1984 = vrot.slane %v1718, 7
  %v1985 = vrot.slane %v1984, 2
  %v1986 = vrot.slane %v1719, 7
  %v1987 = vrot.slane %v1986, 2
  %v1988 = vrot.slane %v1721, 7
  %v1989 = vrot.slane %v1988, 2
  %v1990 = vrot.slane %v1723, 7
  %v1991 = vrot.slane %v1990, 2
  %v1992 = vrot.slane %v1725, 7
  %v1993 = vrot.slane %v1992, 2
  %v1994 = vrot.slane %v1726, 7
  %v1995 = vrot.slane %v1994, 2
  %v1996 = vrot.slane %v1728, 7
  %v1997 = vrot.slane %v1996, 2
  %v1998 = vrot.slane %v1730, 7
  %v1999 = vrot.slane %v1998, 2
  %v2000 = vrot.slane %v1732, 7
  %v2001 = vrot.slane %v2000, 2
  %v2002 = vrot.slane %v1733, 7
  %v2003 = vrot.slane %v2002, 2
  %v2004 = vrot.slane %v1735, 7
  %v2005 = vrot.slane %v2004, 2
  %v2006 = vrot.slane %v1737, 7
  %v2007 = vrot.slane %v2006, 2
  %v2008 = vrot.slane %v1739, 7
  %v2009 = vrot.slane %v2008, 2
  %v2010 = vrot.slane %v1740, 7
  %v2011 = vrot.slane %v2010, 2
  %v2012 = vrot.slane %v1742, 7
  %v2013 = vrot.slane %v2012, 2
  %v2014 = vrot.slane %v1744, 7
  %v2015 = vrot.slane %v2014, 2
  %v2016 = vrot.slane %v1746, 7
  %v2017 = vrot.slane %v2016, 2
  %v2018 = vrot.slane %v1747, 7
  %v2019 = vrot.slane %v2018, 2
  %v2020 = vrot.slane %v1749, 7
  %v2021 = vrot.slane %v2020, 2
  %v2022 = vrot.slane %v1751, 7
  %v2023 = vrot.slane %v2022, 2
  %v2024 = vrot.slane %v1753, 7
  %v2025 = vrot.slane %v2024, 2
  %v2026 = vrot.slane %v1754, 7
  %v2027 = vrot.slane %v2026, 2
  %v2028 = vrot.slane %v1756, 7
  %v2029 = vrot.slane %v2028, 2
  %v2030 = vrot.slane %v1758, 7
  %v2031 = vrot.slane %v2030, 2
  %v2032 = vrot.slane %v1760, 7
  %v2033 = vrot.slane %v2032, 2
  %v2034 = vrot.slane %v1761, 7
  %v2035 = vrot.slane %v2034, 2
  %v2036 = vrot.slane %v1763, 7
  %v2037 = vrot.slane %v2036, 2
  %v2038 = vrot.slane %v1765, 7
  %v2039 = vrot.slane %v2038, 2
  %v2040 = vrot.slane %v1767, 7
  %v2041 = vrot.slane %v2040, 2
  %v2042 = vrot.slane %v1768, 7
  %v2043 = vrot.slane %v2042, 2
  %v2044 = vrot.slane %v1770, 7
  %v2045 = vrot.slane %v2044, 2
  %v2046 = vrot.slane %v1772, 7
  %v2047 = vrot.slane %v2046, 2
  %v2048 = vrot.slane %v1774, 7
  %v2049 = vrot.slane %v2048, 2
  %v2050 = vrot.slane %v1775, 7
  %v2051 = vrot.slane %v2050, 2
  %v2052 = vrot.slane %v1777, 7
  %v2053 = vrot.slane %v2052, 2
  %v2054 = vrot.slane %v1779, 7
  %v2055 = vrot.slane %v2054, 2
  %v2056 = vrot.slane %v1781, 7
  %v2057 = vrot.slane %v2056, 2
  %v2058 = vrot.slane %v1782, 7
  %v2059 = vrot.slane %v2058, 2
  %v2060 = vrot.slane %v1784, 7
  %v2061 = vrot.slane %v2060, 2
  %v2062 = vrot.slane %v1786, 7
  %v2063 = vrot.slane %v2062, 2
  %v2064 = vrot.slane %v1788, 7
  %v2065 = vrot.slane %v2064, 2
  %v2066 = vrot.slane %v1789, 7
  %v2067 = vrot.slane %v2066, 2
  %v2068 = vrot.slane %v1791, 7
  %v2069 = vrot.slane %v2068, 2
  %v2070 = vrot.slane %v1793, 7
  %v2071 = vrot.slane %v2070, 2
  %v2072 = vrot.slane %v1795, 7
  %v2073 = vrot.slane %v2072, 2
  %v2074 = vrot.slane %v1796, 7
  %v2075 = vrot.slane %v2074, 2
  %v2076 = vrot.slane %v1798, 7
  %v2077 = vrot.slane %v2076, 2
  %v2078 = vrot.slane %v1800, 7
  %v2079 = vrot.slane %v2078, 2
  %v2080 = vrot.slane %v1802, 7
  %v2081 = vrot.slane %v2080, 2
  %v2082 = vrot.slane %v1803, 7
  %v2083 = vrot.slane %v2082, 2
  %v2084 = vrot.slane %v1805, 7
  %v2085 = vrot.slane %v2084, 2
  %v2086 = vrot.slane %v1807, 7
  %v2087 = vrot.slane %v2086, 2
  %v2088 = vrot.slane %v1809, 7
  %v2089 = vrot.slane %v2088, 2
  %v2090 = vrot.slane %v1810, 7
  %v2091 = vrot.slane %v2090, 2
  %v2092 = vrot.slane %v1812, 7
  %v2093 = vrot.slane %v2092, 2
  %v2094 = vrot.slane %v1814, 7
  %v2095 = vrot.slane %v2094, 2
  %v2096 = vrot.slane %v1816, 7
  %v2097 = vrot.slane %v2096, 2
  %v2098 = vrot.slane %v1817, 7
  %v2099 = vrot.slane %v2098, 2
  %v2100 = vrot.slane %v1819, 7
  %v2101 = vrot.slane %v2100, 2
  %v2102 = vrot.slane %v1821, 7
  %v2103 = vrot.slane %v2102, 2
  %v2104 = vrot.slane %v1823, 7
  %v2105 = vrot.slane %v2104, 2
  %v2106 = vrot.slane %v1824, 7
  %v2107 = vrot.slane %v2106, 2
  %v2108 = vrot.slane %v1826, 7
  %v2109 = vrot.slane %v2108, 2
  %v2110 = vrot.slane %v1828, 7
  %v2111 = vrot.slane %v2110, 2
  %v2112 = vrot.slane %v1830, 7
  %v2113 = vrot.slane %v2112, 2
  %v2114 = vrot.slane %v1831, 7
  %v2115 = vrot.slane %v2114, 2
  %v2116 = vrot.slane %v1833, 7
  %v2117 = vrot.slane %v2116, 2
  %v2118 = vrot.slane %v1835, 7
  %v2119 = vrot.slane %v2118, 2
  %v2120 = vrot.slane %v1837, 7
  %v2121 = vrot.slane %v2120, 2
  %v2122 = vrot.slane %v1838, 7
  %v2123 = vrot.slane %v2122, 2
  %v2124 = vrot.slane %v1840, 7
  %v2125 = vrot.slane %v2124, 2
  %v2126 = vrot.slane %v1842, 7
  %v2127 = vrot.slane %v2126, 2
  %v2128 = vrot.slane %v1844, 7
  %v2129 = vrot.slane %v2128, 2
  %v2130 = vrot.slane %v1845, 7
  %v2131 = vrot.slane %v2130, 2
  %v2132 = vrot.slane %v1847, 7
  %v2133 = vrot.slane %v2132, 2
  %v2134 = vrot.slane %v1849, 7
  %v2135 = vrot.slane %v2134, 2
  %v2136 = vrot.slane %v1851, 7
  %v2137 = vrot.slane %v2136, 2
  %v2138 = vrot.slane %v1852, 7
  %v2139 = vrot.slane %v2138, 2
  %v2140 = vrot.slane %v1854, 7
  %v2141 = vrot.slane %v2140, 2
  %v2142 = vrot.slane %v1856, 7
  %v2143 = vrot.slane %v2142, 2
  %v2144 = vrot.slane %v1858, 7
  %v2145 = vrot.slane %v2144, 2
  %v2146 = vrot.slane %v1859, 7
  %v2147 = vrot.slane %v2146, 2
  %v2148 = vrot.slane %v1861, 7
  %v2149 = vrot.slane %v2148, 2
  %v2150 = vrot.slane %v1863, 7
  %v2151 = vrot.slane %v2150, 2
  %v2152 = vrot.slane %v1865, 7
  %v2153 = vrot.slane %v2152, 2
  %v2250 = vmax.f32 %v1696, %v1963
  %v2251 = vmax.f32 %v1699, %v1965
  %v2252 = vmax.f32 %v1702, %v1967
  %v2253 = vmax.f32 %v1704, %v1969
  %v2254 = vmax.f32 %v1705, %v1971
  %v2255 = vmax.f32 %v1707, %v1973
  %v2256 = vmax.f32 %v1709, %v1975
  %v2257 = vmax.f32 %v1711, %v1977
  %v2258 = vmax.f32 %v1712, %v1979
  %v2259 = vmax.f32 %v1714, %v1981
  %v2260 = vmax.f32 %v1716, %v1983
  %v2261 = vmax.f32 %v1718, %v1985
  %v2262 = vmax.f32 %v1719, %v1987
  %v2263 = vmax.f32 %v1721, %v1989
  %v2264 = vmax.f32 %v1723, %v1991
  %v2265 = vmax.f32 %v1725, %v1993
  %v2266 = vmax.f32 %v1726, %v1995
  %v2267 = vmax.f32 %v1728, %v1997
  %v2268 = vmax.f32 %v1730, %v1999
  %v2269 = vmax.f32 %v1732, %v2001
  %v2270 = vmax.f32 %v1733, %v2003
  %v2271 = vmax.f32 %v1735, %v2005
  %v2272 = vmax.f32 %v1737, %v2007
  %v2273 = vmax.f32 %v1739, %v2009
  %v2274 = vmax.f32 %v1740, %v2011
  %v2275 = vmax.f32 %v1742, %v2013
  %v2276 = vmax.f32 %v1744, %v2015
  %v2277 = vmax.f32 %v1746, %v2017
  %v2278 = vmax.f32 %v1747, %v2019
  %v2279 = vmax.f32 %v1749, %v2021
  %v2280 = vmax.f32 %v1751, %v2023
  %v2281 = vmax.f32 %v1753, %v2025
  %v2282 = vmax.f32 %v1754, %v2027
  %v2283 = vmax.f32 %v1756, %v2029
  %v2284 = vmax.f32 %v1758, %v2031
  %v2285 = vmax.f32 %v1760, %v2033
  %v2286 = vmax.f32 %v1761, %v2035
  %v2287 = vmax.f32 %v1763, %v2037
  %v2288 = vmax.f32 %v1765, %v2039
  %v2289 = vmax.f32 %v1767, %v2041
  %v2290 = vmax.f32 %v1768, %v2043
  %v2291 = vmax.f32 %v1770, %v2045
  %v2292 = vmax.f32 %v1772, %v2047
  %v2293 = vmax.f32 %v1774, %v2049
  %v2294 = vmax.f32 %v1775, %v2051
  %v2295 = vmax.f32 %v1777, %v2053
  %v2296 = vmax.f32 %v1779, %v2055
  %v2297 = vmax.f32 %v1781, %v2057
  %v2298 = vmax.f32 %v1782, %v2059
  %v2299 = vmax.f32 %v1784, %v2061
  %v2300 = vmax.f32 %v1786, %v2063
  %v2301 = vmax.f32 %v1788, %v2065
  %v2302 = vmax.f32 %v1789, %v2067
  %v2303 = vmax.f32 %v1791, %v2069
  %v2304 = vmax.f32 %v1793, %v2071
  %v2305 = vmax.f32 %v1795, %v2073
  %v2306 = vmax.f32 %v1796, %v2075
  %v2307 = vmax.f32 %v1798, %v2077
  %v2308 = vmax.f32 %v1800, %v2079
  %v2309 = vmax.f32 %v1802, %v2081
  %v2310 = vmax.f32 %v1803, %v2083
  %v2311 = vmax.f32 %v1805, %v2085
  %v2312 = vmax.f32 %v1807, %v2087
  %v2313 = vmax.f32 %v1809, %v2089
  %v2314 = vmax.f32 %v1810, %v2091
  %v2315 = vmax.f32 %v1812, %v2093
  %v2316 = vmax.f32 %v1814, %v2095
  %v2317 = vmax.f32 %v1816, %v2097
  %v2318 = vmax.f32 %v1817, %v2099
  %v2319 = vmax.f32 %v1819, %v2101
  %v2320 = vmax.f32 %v1821, %v2103
  %v2321 = vmax.f32 %v1823, %v2105
  %v2322 = vmax.f32 %v1824, %v2107
  %v2323 = vmax.f32 %v1826, %v2109
  %v2324 = vmax.f32 %v1828, %v2111
  %v2325 = vmax.f32 %v1830, %v2113
  %v2326 = vmax.f32 %v1831, %v2115
  %v2327 = vmax.f32 %v1833, %v2117
  %v2328 = vmax.f32 %v1835, %v2119
  %v2329 = vmax.f32 %v1837, %v2121
  %v2330 = vmax.f32 %v1838, %v2123
  %v2331 = vmax.f32 %v1840, %v2125
  %v2332 = vmax.f32 %v1842, %v2127
  %v2333 = vmax.f32 %v1844, %v2129
  %v2334 = vmax.f32 %v1845, %v2131
  %v2335 = vmax.f32 %v1847, %v2133
  %v2336 = vmax.f32 %v1849, %v2135
  %v2337 = vmax.f32 %v1851, %v2137
  %v2338 = vmax.f32 %v1852, %v2139
  %v2339 = vmax.f32 %v1854, %v2141
  %v2340 = vmax.f32 %v1856, %v2143
  %v2341 = vmax.f32 %v1858, %v2145
  %v2342 = vmax.f32 %v1859, %v2147
  %v2343 = vmax.f32 %v1861, %v2149
  %v2344 = vmax.f32 %v1863, %v2151
  %v2345 = vmax.f32 %v1865, %v2153
  %v2346 = vld [vmem:[%s2] sm:$0x3]
  %v2348 = vperm.slane %v2346, 0
  %v2349 = vperm.slane %v2346, 1
  %v2350 = vrot.slane %v2349, 6
  %v2351 = vsel %vm1695, %v2348, %v2350
  %v2352 = vsel %vm1697, %v2348, %v2350
  %v2353 = vrot.slane %v2352, 2
  %v2354 = vsel %vm1700, %v2348, %v2350
  %v2355 = vrot.slane %v2354, 4
  %v2356 = vsel %vm153, %v2350, %v2348
  %v2357 = vrot.slane %v2356, 6
  %v2358 = vrot.slane %v2351, 1
  %v2359 = vrot.slane %v2353, 1
  %v2360 = vrot.slane %v2355, 1
  %v2361 = vrot.slane %v2357, 1
  %v2370 = vadd.f32 %v2250, %v2351
  %v2371 = vadd.f32 %v2251, %v2358
  %v2372 = vadd.f32 %v2252, %v2353
  %v2373 = vadd.f32 %v2253, %v2359
  %v2374 = vadd.f32 %v2254, %v2355
  %v2375 = vadd.f32 %v2255, %v2360
  %v2376 = vadd.f32 %v2256, %v2357
  %v2377 = vadd.f32 %v2257, %v2361
  %v2378 = vadd.f32 %v2258, %v2351
  %v2379 = vadd.f32 %v2259, %v2358
  %v2380 = vadd.f32 %v2260, %v2353
  %v2381 = vadd.f32 %v2261, %v2359
  %v2382 = vadd.f32 %v2262, %v2355
  %v2383 = vadd.f32 %v2263, %v2360
  %v2384 = vadd.f32 %v2264, %v2357
  %v2385 = vadd.f32 %v2265, %v2361
  %v2386 = vadd.f32 %v2266, %v2351
  %v2387 = vadd.f32 %v2267, %v2358
  %v2388 = vadd.f32 %v2268, %v2353
  %v2389 = vadd.f32 %v2269, %v2359
  %v2390 = vadd.f32 %v2270, %v2355
  %v2391 = vadd.f32 %v2271, %v2360
  %v2392 = vadd.f32 %v2272, %v2357
  %v2393 = vadd.f32 %v2273, %v2361
  %v2394 = vadd.f32 %v2274, %v2351
  %v2395 = vadd.f32 %v2275, %v2358
  %v2396 = vadd.f32 %v2276, %v2353
  %v2397 = vadd.f32 %v2277, %v2359
  %v2398 = vadd.f32 %v2278, %v2355
  %v2399 = vadd.f32 %v2279, %v2360
  %v2400 = vadd.f32 %v2280, %v2357
  %v2401 = vadd.f32 %v2281, %v2361
  %v2402 = vadd.f32 %v2282, %v2351
  %v2403 = vadd.f32 %v2283, %v2358
  %v2404 = vadd.f32 %v2284, %v2353
  %v2405 = vadd.f32 %v2285, %v2359
  %v2406 = vadd.f32 %v2286, %v2355
  %v2407 = vadd.f32 %v2287, %v2360
  %v2408 = vadd.f32 %v2288, %v2357
  %v2409 = vadd.f32 %v2289, %v2361
  %v2410 = vadd.f32 %v2290, %v2351
  %v2411 = vadd.f32 %v2291, %v2358
  %v2412 = vadd.f32 %v2292, %v2353
  %v2413 = vadd.f32 %v2293, %v2359
  %v2414 = vadd.f32 %v2294, %v2355
  %v2415 = vadd.f32 %v2295, %v2360
  %v2416 = vadd.f32 %v2296, %v2357
  %v2417 = vadd.f32 %v2297, %v2361
  %v2418 = vadd.f32 %v2298, %v2351
  %v2419 = vadd.f32 %v2299, %v2358
  %v2420 = vadd.f32 %v2300, %v2353
  %v2421 = vadd.f32 %v2301, %v2359
  %v2422 = vadd.f32 %v2302, %v2355
  %v2423 = vadd.f32 %v2303, %v2360
  %v2424 = vadd.f32 %v2304, %v2357
  %v2425 = vadd.f32 %v2305, %v2361
  %v2426 = vadd.f32 %v2306, %v2351
  %v2427 = vadd.f32 %v2307, %v2358
  %v2428 = vadd.f32 %v2308, %v2353
  %v2429 = vadd.f32 %v2309, %v2359
  %v2430 = vadd.f32 %v2310, %v2355
  %v2431 = vadd.f32 %v2311, %v2360
  %v2432 = vadd.f32 %v2312, %v2357
  %v2433 = vadd.f32 %v2313, %v2361
  %v2434 = vadd.f32 %v2314, %v2351
  %v2435 = vadd.f32 %v2315, %v2358
  %v2436 = vadd.f32 %v2316, %v2353
  %v2437 = vadd.f32 %v2317, %v2359
  %v2438 = vadd.f32 %v2318, %v2355
  %v2439 = vadd.f32 %v2319, %v2360
  %v2440 = vadd.f32 %v2320, %v2357
  %v2441 = vadd.f32 %v2321, %v2361
  %v2442 = vadd.f32 %v2322, %v2351
  %v2443 = vadd.f32 %v2323, %v2358
  %v2444 = vadd.f32 %v2324, %v2353
  %v2445 = vadd.f32 %v2325, %v2359
  %v2446 = vadd.f32 %v2326, %v2355
  %v2447 = vadd.f32 %v2327, %v2360
  %v2448 = vadd.f32 %v2328, %v2357
  %v2449 = vadd.f32 %v2329, %v2361
  %v2450 = vadd.f32 %v2330, %v2351
  %v2451 = vadd.f32 %v2331, %v2358
  %v2452 = vadd.f32 %v2332, %v2353
  %v2453 = vadd.f32 %v2333, %v2359
  %v2454 = vadd.f32 %v2334, %v2355
  %v2455 = vadd.f32 %v2335, %v2360
  %v2456 = vadd.f32 %v2336, %v2357
  %v2457 = vadd.f32 %v2337, %v2361
  %v2458 = vadd.f32 %v2338, %v2351
  %v2459 = vadd.f32 %v2339, %v2358
  %v2460 = vadd.f32 %v2340, %v2353
  %v2461 = vadd.f32 %v2341, %v2359
  %v2462 = vadd.f32 %v2342, %v2355
  %v2463 = vadd.f32 %v2343, %v2360
  %v2464 = vadd.f32 %v2344, %v2357
  %v2465 = vadd.f32 %v2345, %v2361
  %v2466 = vmax.f32 %v2370, 0.0
  %v2467 = vmax.f32 %v2371, 0.0
  %v2468 = vmax.f32 %v2372, 0.0
  %v2469 = vmax.f32 %v2373, 0.0
  %v2470 = vmax.f32 %v2374, 0.0
  %v2471 = vmax.f32 %v2375, 0.0
  %v2472 = vmax.f32 %v2376, 0.0
  %v2473 = vmax.f32 %v2377, 0.0
  %v2474 = vmax.f32 %v2378, 0.0
  %v2475 = vmax.f32 %v2379, 0.0
  %v2476 = vmax.f32 %v2380, 0.0
  %v2477 = vmax.f32 %v2381, 0.0
  %v2478 = vmax.f32 %v2382, 0.0
  %v2479 = vmax.f32 %v2383, 0.0
  %v2480 = vmax.f32 %v2384, 0.0
  %v2481 = vmax.f32 %v2385, 0.0
  %v2482 = vmax.f32 %v2386, 0.0
  %v2483 = vmax.f32 %v2387, 0.0
  %v2484 = vmax.f32 %v2388, 0.0
  %v2485 = vmax.f32 %v2389, 0.0
  %v2486 = vmax.f32 %v2390, 0.0
  %v2487 = vmax.f32 %v2391, 0.0
  %v2488 = vmax.f32 %v2392, 0.0
  %v2489 = vmax.f32 %v2393, 0.0
  %v2490 = vmax.f32 %v2394, 0.0
  %v2491 = vmax.f32 %v2395, 0.0
  %v2492 = vmax.f32 %v2396, 0.0
  %v2493 = vmax.f32 %v2397, 0.0
  %v2494 = vmax.f32 %v2398, 0.0
  %v2495 = vmax.f32 %v2399, 0.0
  %v2496 = vmax.f32 %v2400, 0.0
  %v2497 = vmax.f32 %v2401, 0.0
  %v2498 = vmax.f32 %v2402, 0.0
  %v2499 = vmax.f32 %v2403, 0.0
  %v2500 = vmax.f32 %v2404, 0.0
  %v2501 = vmax.f32 %v2405, 0.0
  %v2502 = vmax.f32 %v2406, 0.0
  %v2503 = vmax.f32 %v2407, 0.0
  %v2504 = vmax.f32 %v2408, 0.0
  %v2505 = vmax.f32 %v2409, 0.0
  %v2506 = vmax.f32 %v2410, 0.0
  %v2507 = vmax.f32 %v2411, 0.0
  %v2508 = vmax.f32 %v2412, 0.0
  %v2509 = vmax.f32 %v2413, 0.0
  %v2510 = vmax.f32 %v2414, 0.0
  %v2511 = vmax.f32 %v2415, 0.0
  %v2512 = vmax.f32 %v2416, 0.0
  %v2513 = vmax.f32 %v2417, 0.0
  %v2514 = vmax.f32 %v2418, 0.0
  %v2515 = vmax.f32 %v2419, 0.0
  %v2516 = vmax.f32 %v2420, 0.0
  %v2517 = vmax.f32 %v2421, 0.0
  %v2518 = vmax.f32 %v2422, 0.0
  %v2519 = vmax.f32 %v2423, 0.0
  %v2520 = vmax.f32 %v2424, 0.0
  %v2521 = vmax.f32 %v2425, 0.0
  %v2522 = vmax.f32 %v2426, 0.0
  %v2523 = vmax.f32 %v2427, 0.0
  %v2524 = vmax.f32 %v2428, 0.0
  %v2525 = vmax.f32 %v2429, 0.0
  %v2526 = vmax.f32 %v2430, 0.0
  %v2527 = vmax.f32 %v2431, 0.0
  %v2528 = vmax.f32 %v2432, 0.0
  %v2529 = vmax.f32 %v2433, 0.0
  %v2530 = vmax.f32 %v2434, 0.0
  %v2531 = vmax.f32 %v2435, 0.0
  %v2532 = vmax.f32 %v2436, 0.0
  %v2533 = vmax.f32 %v2437, 0.0
  %v2534 = vmax.f32 %v2438, 0.0
  %v2535 = vmax.f32 %v2439, 0.0
  %v2536 = vmax.f32 %v2440, 0.0
  %v2537 = vmax.f32 %v2441, 0.0
  %v2538 = vmax.f32 %v2442, 0.0
  %v2539 = vmax.f32 %v2443, 0.0
  %v2540 = vmax.f32 %v2444, 0.0
  %v2541 = vmax.f32 %v2445, 0.0
  %v2542 = vmax.f32 %v2446, 0.0
  %v2543 = vmax.f32 %v2447, 0.0
  %v2544 = vmax.f32 %v2448, 0.0
  %v2545 = vmax.f32 %v2449, 0.0
  %v2546 = vmax.f32 %v2450, 0.0
  %v2547 = vmax.f32 %v2451, 0.0
  %v2548 = vmax.f32 %v2452, 0.0
  %v2549 = vmax.f32 %v2453, 0.0
  %v2550 = vmax.f32 %v2454, 0.0
  %v2551 = vmax.f32 %v2455, 0.0
  %v2552 = vmax.f32 %v2456, 0.0
  %v2553 = vmax.f32 %v2457, 0.0
  %v2554 = vmax.f32 %v2458, 0.0
  %v2555 = vmax.f32 %v2459, 0.0
  %v2556 = vmax.f32 %v2460, 0.0
  %v2557 = vmax.f32 %v2461, 0.0
  %v2558 = vmax.f32 %v2462, 0.0
  %v2559 = vmax.f32 %v2463, 0.0
  %v2560 = vmax.f32 %v2464, 0.0
  %v2561 = vmax.f32 %v2465, 0.0
  %v2626 = vperm.slane %v2466, 0
  %v2627 = vperm.slane %v2466, 2
  %v2628 = vperm.slane %v2467, 0
  %v2629 = vperm.slane %v2467, 2
  %v2630 = vperm.slane %v2468, 0
  %v2631 = vperm.slane %v2468, 2
  %v2632 = vperm.slane %v2469, 0
  %v2633 = vperm.slane %v2469, 2
  %v2634 = vperm.slane %v2470, 0
  %v2635 = vperm.slane %v2470, 2
  %v2636 = vperm.slane %v2471, 0
  %v2637 = vperm.slane %v2471, 2
  %v2638 = vperm.slane %v2472, 0
  %v2639 = vperm.slane %v2472, 2
  %v2640 = vperm.slane %v2473, 0
  %v2641 = vperm.slane %v2473, 2
  %v2642 = vperm.slane %v2478, 0
  %v2643 = vperm.slane %v2478, 2
  %v2644 = vperm.slane %v2479, 0
  %v2645 = vperm.slane %v2479, 2
  %v2646 = vperm.slane %v2480, 0
  %v2647 = vperm.slane %v2480, 2
  %v2648 = vperm.slane %v2481, 0
  %v2649 = vperm.slane %v2481, 2
  %v2650 = vperm.slane %v2482, 0
  %v2651 = vperm.slane %v2482, 2
  %v2652 = vperm.slane %v2483, 0
  %v2653 = vperm.slane %v2483, 2
  %v2654 = vperm.slane %v2484, 0
  %v2655 = vperm.slane %v2484, 2
  %v2656 = vperm.slane %v2485, 0
  %v2657 = vperm.slane %v2485, 2
  %v2658 = vperm.slane %v2490, 0
  %v2659 = vperm.slane %v2490, 2
  %v2660 = vperm.slane %v2491, 0
  %v2661 = vperm.slane %v2491, 2
  %v2662 = vperm.slane %v2492, 0
  %v2663 = vperm.slane %v2492, 2
  %v2664 = vperm.slane %v2493, 0
  %v2665 = vperm.slane %v2493, 2
  %v2666 = vperm.slane %v2494, 0
  %v2667 = vperm.slane %v2494, 2
  %v2668 = vperm.slane %v2495, 0
  %v2669 = vperm.slane %v2495, 2
  %v2670 = vperm.slane %v2496, 0
  %v2671 = vperm.slane %v2496, 2
  %v2672 = vperm.slane %v2497, 0
  %v2673 = vperm.slane %v2497, 2
  %v2674 = vperm.slane %v2502, 0
  %v2675 = vperm.slane %v2502, 2
  %v2676 = vperm.slane %v2503, 0
  %v2677 = vperm.slane %v2503, 2
  %v2678 = vperm.slane %v2504, 0
  %v2679 = vperm.slane %v2504, 2
  %v2680 = vperm.slane %v2505, 0
  %v2681 = vperm.slane %v2505, 2
  %v2682 = vperm.slane %v2506, 0
  %v2683 = vperm.slane %v2506, 2
  %v2684 = vperm.slane %v2507, 0
  %v2685 = vperm.slane %v2507, 2
  %v2686 = vperm.slane %v2508, 0
  %v2687 = vperm.slane %v2508, 2
  %v2688 = vperm.slane %v2509, 0
  %v2689 = vperm.slane %v2509, 2
  %v2690 = vperm.slane %v2514, 0
  %v2691 = vperm.slane %v2514, 2
  %v2692 = vperm.slane %v2515, 0
  %v2693 = vperm.slane %v2515, 2
  %v2694 = vperm.slane %v2516, 0
  %v2695 = vperm.slane %v2516, 2
  %v2696 = vperm.slane %v2517, 0
  %v2697 = vperm.slane %v2517, 2
  %v2698 = vperm.slane %v2518, 0
  %v2699 = vperm.slane %v2518, 2
  %v2700 = vperm.slane %v2519, 0
  %v2701 = vperm.slane %v2519, 2
  %v2702 = vperm.slane %v2520, 0
  %v2703 = vperm.slane %v2520, 2
  %v2704 = vperm.slane %v2521, 0
  %v2705 = vperm.slane %v2521, 2
  %v2706 = vperm.slane %v2526, 0
  %v2707 = vperm.slane %v2526, 2
  %v2708 = vperm.slane %v2527, 0
  %v2709 = vperm.slane %v2527, 2
  %v2710 = vperm.slane %v2528, 0
  %v2711 = vperm.slane %v2528, 2
  %v2712 = vperm.slane %v2529, 0
  %v2713 = vperm.slane %v2529, 2
  %v2714 = vperm.slane %v2530, 0
  %v2715 = vperm.slane %v2530, 2
  %v2716 = vperm.slane %v2531, 0
  %v2717 = vperm.slane %v2531, 2
  %v2718 = vperm.slane %v2532, 0
  %v2719 = vperm.slane %v2532, 2
  %v2720 = vperm.slane %v2533, 0
  %v2721 = vperm.slane %v2533, 2
  %v2722 = vperm.slane %v2538, 0
  %v2723 = vperm.slane %v2538, 2
  %v2724 = vperm.slane %v2539, 0
  %v2725 = vperm.slane %v2539, 2
  %v2726 = vperm.slane %v2540, 0
  %v2727 = vperm.slane %v2540, 2
  %v2728 = vperm.slane %v2541, 0
  %v2729 = vperm.slane %v2541, 2
  %v2730 = vperm.slane %v2542, 0
  %v2731 = vperm.slane %v2542, 2
  %v2732 = vperm.slane %v2543, 0
  %v2733 = vperm.slane %v2543, 2
  %v2734 = vperm.slane %v2544, 0
  %v2735 = vperm.slane %v2544, 2
  %v2736 = vperm.slane %v2545, 0
  %v2737 = vperm.slane %v2545, 2
  %v2738 = vperm.slane %v2550, 0
  %v2739 = vperm.slane %v2550, 2
  %v2740 = vperm.slane %v2551, 0
  %v2741 = vperm.slane %v2551, 2
  %v2742 = vperm.slane %v2552, 0
  %v2743 = vperm.slane %v2552, 2
  %v2744 = vperm.slane %v2553, 0
  %v2745 = vperm.slane %v2553, 2
  %v2746 = vperm.slane %v2554, 0
  %v2747 = vperm.slane %v2554, 2
  %v2748 = vperm.slane %v2555, 0
  %v2749 = vperm.slane %v2555, 2
  %v2750 = vperm.slane %v2556, 0
  %v2751 = vperm.slane %v2556, 2
  %v2752 = vperm.slane %v2557, 0
  %v2753 = vperm.slane %v2557, 2
  %vm2754 = vcmask 1041409
  %v2755 = vsel %vm2754, %v2628, %v2626
  %vm2756 = vcmask 1042434
  %v2757 = vsel %vm2756, %v2630, %v2755
  %vm2758 = vcmask 1043459
  %v2759 = vsel %vm2758, %v2632, %v2757
  %vm2760 = vcmask 1044484
  %v2761 = vsel %vm2760, %v2634, %v2759
  %vm2762 = vcmask 1045509
  %v2763 = vsel %vm2762, %v2636, %v2761
  %vm2764 = vcmask 1046534
  %v2765 = vsel %vm2764, %v2638, %v2763
  %vm2766 = vcmask 1047559
  %v2767 = vsel %vm2766, %v2640, %v2765
  %v2768 = vsel %vm2754, %v2629, %v2627
  %v2769 = vsel %vm2756, %v2631, %v2768
  %v2770 = vsel %vm2758, %v2633, %v2769
  %v2771 = vsel %vm2760, %v2635, %v2770
  %v2772 = vsel %vm2762, %v2637, %v2771
  %v2773 = vsel %vm2764, %v2639, %v2772
  %v2774 = vsel %vm2766, %v2641, %v2773
  %v2775 = vsel %vm2754, %v2644, %v2642
  %v2776 = vsel %vm2756, %v2646, %v2775
  %v2777 = vsel %vm2758, %v2648, %v2776
  %v2778 = vsel %vm2760, %v2650, %v2777
  %v2779 = vsel %vm2762, %v2652, %v2778
  %v2780 = vsel %vm2764, %v2654, %v2779
  %v2781 = vsel %vm2766, %v2656, %v2780
  %v2782 = vsel %vm2754, %v2645, %v2643
  %v2783 = vsel %vm2756, %v2647, %v2782
  %v2784 = vsel %vm2758, %v2649, %v2783
  %v2785 = vsel %vm2760, %v2651, %v2784
  %v2786 = vsel %vm2762, %v2653, %v2785
  %v2787 = vsel %vm2764, %v2655, %v2786
  %v2788 = vsel %vm2766, %v2657, %v2787
  %v2789 = vsel %vm2754, %v2660, %v2658
  %v2790 = vsel %vm2756, %v2662, %v2789
  %v2791 = vsel %vm2758, %v2664, %v2790
  %v2792 = vsel %vm2760, %v2666, %v2791
  %v2793 = vsel %vm2762, %v2668, %v2792
  %v2794 = vsel %vm2764, %v2670, %v2793
  %v2795 = vsel %vm2766, %v2672, %v2794
  %v2796 = vsel %vm2754, %v2661, %v2659
  %v2797 = vsel %vm2756, %v2663, %v2796
  %v2798 = vsel %vm2758, %v2665, %v2797
  %v2799 = vsel %vm2760, %v2667, %v2798
  %v2800 = vsel %vm2762, %v2669, %v2799
  %v2801 = vsel %vm2764, %v2671, %v2800
  %v2802 = vsel %vm2766, %v2673, %v2801
  %v2803 = vsel %vm2754, %v2676, %v2674
  %v2804 = vsel %vm2756, %v2678, %v2803
  %v2805 = vsel %vm2758, %v2680, %v2804
  %v2806 = vsel %vm2760, %v2682, %v2805
  %v2807 = vsel %vm2762, %v2684, %v2806
  %v2808 = vsel %vm2764, %v2686, %v2807
  %v2809 = vsel %vm2766, %v2688, %v2808
  %v2810 = vsel %vm2754, %v2677, %v2675
  %v2811 = vsel %vm2756, %v2679, %v2810
  %v2812 = vsel %vm2758, %v2681, %v2811
  %v2813 = vsel %vm2760, %v2683, %v2812
  %v2814 = vsel %vm2762, %v2685, %v2813
  %v2815 = vsel %vm2764, %v2687, %v2814
  %v2816 = vsel %vm2766, %v2689, %v2815
  %v2817 = vsel %vm2754, %v2692, %v2690
  %v2818 = vsel %vm2756, %v2694, %v2817
  %v2819 = vsel %vm2758, %v2696, %v2818
  %v2820 = vsel %vm2760, %v2698, %v2819
  %v2821 = vsel %vm2762, %v2700, %v2820
  %v2822 = vsel %vm2764, %v2702, %v2821
  %v2823 = vsel %vm2766, %v2704, %v2822
  %v2824 = vsel %vm2754, %v2693, %v2691
  %v2825 = vsel %vm2756, %v2695, %v2824
  %v2826 = vsel %vm2758, %v2697, %v2825
  %v2827 = vsel %vm2760, %v2699, %v2826
  %v2828 = vsel %vm2762, %v2701, %v2827
  %v2829 = vsel %vm2764, %v2703, %v2828
  %v2830 = vsel %vm2766, %v2705, %v2829
  %v2831 = vsel %vm2754, %v2708, %v2706
  %v2832 = vsel %vm2756, %v2710, %v2831
  %v2833 = vsel %vm2758, %v2712, %v2832
  %v2834 = vsel %vm2760, %v2714, %v2833
  %v2835 = vsel %vm2762, %v2716, %v2834
  %v2836 = vsel %vm2764, %v2718, %v2835
  %v2837 = vsel %vm2766, %v2720, %v2836
  %v2838 = vsel %vm2754, %v2709, %v2707
  %v2839 = vsel %vm2756, %v2711, %v2838
  %v2840 = vsel %vm2758, %v2713, %v2839
  %v2841 = vsel %vm2760, %v2715, %v2840
  %v2842 = vsel %vm2762, %v2717, %v2841
  %v2843 = vsel %vm2764, %v2719, %v2842
  %v2844 = vsel %vm2766, %v2721, %v2843
  %v2845 = vsel %vm2754, %v2724, %v2722
  %v2846 = vsel %vm2756, %v2726, %v2845
  %v2847 = vsel %vm2758, %v2728, %v2846
  %v2848 = vsel %vm2760, %v2730, %v2847
  %v2849 = vsel %vm2762, %v2732, %v2848
  %v2850 = vsel %vm2764, %v2734, %v2849
  %v2851 = vsel %vm2766, %v2736, %v2850
  %v2852 = vsel %vm2754, %v2725, %v2723
  %v2853 = vsel %vm2756, %v2727, %v2852
  %v2854 = vsel %vm2758, %v2729, %v2853
  %v2855 = vsel %vm2760, %v2731, %v2854
  %v2856 = vsel %vm2762, %v2733, %v2855
  %v2857 = vsel %vm2764, %v2735, %v2856
  %v2858 = vsel %vm2766, %v2737, %v2857
  %v2859 = vsel %vm2754, %v2740, %v2738
  %v2860 = vsel %vm2756, %v2742, %v2859
  %v2861 = vsel %vm2758, %v2744, %v2860
  %v2862 = vsel %vm2760, %v2746, %v2861
  %v2863 = vsel %vm2762, %v2748, %v2862
  %v2864 = vsel %vm2764, %v2750, %v2863
  %v2865 = vsel %vm2766, %v2752, %v2864
  %v2866 = vsel %vm2754, %v2741, %v2739
  %v2867 = vsel %vm2756, %v2743, %v2866
  %v2868 = vsel %vm2758, %v2745, %v2867
  %v2869 = vsel %vm2760, %v2747, %v2868
  %v2870 = vsel %vm2762, %v2749, %v2869
  %v2871 = vsel %vm2764, %v2751, %v2870
  %v2872 = vsel %vm2766, %v2753, %v2871
  %v2897 = vperm.slane %v2474, 0
  %v2898 = vperm.slane %v2474, 2
  %v2899 = vperm.slane %v2486, 0
  %v2900 = vperm.slane %v2486, 2
  %v2901 = vperm.slane %v2498, 0
  %v2902 = vperm.slane %v2498, 2
  %v2903 = vperm.slane %v2510, 0
  %v2904 = vperm.slane %v2510, 2
  %v2905 = vperm.slane %v2522, 0
  %v2906 = vperm.slane %v2522, 2
  %v2907 = vperm.slane %v2534, 0
  %v2908 = vperm.slane %v2534, 2
  %v2909 = vperm.slane %v2546, 0
  %v2910 = vperm.slane %v2546, 2
  %v2911 = vperm.slane %v2558, 0
  %v2912 = vperm.slane %v2558, 2
  %v2913 = vsel %vm2754, %v2630, %v2628
  %v2914 = vsel %vm2756, %v2632, %v2913
  %v2915 = vsel %vm2758, %v2634, %v2914
  %v2916 = vsel %vm2760, %v2636, %v2915
  %v2917 = vsel %vm2762, %v2638, %v2916
  %v2918 = vsel %vm2764, %v2640, %v2917
  %v2919 = vsel %vm2766, %v2897, %v2918
  %v2920 = vsel %vm2754, %v2631, %v2629
  %v2921 = vsel %vm2756, %v2633, %v2920
  %v2922 = vsel %vm2758, %v2635, %v2921
  %v2923 = vsel %vm2760, %v2637, %v2922
  %v2924 = vsel %vm2762, %v2639, %v2923
  %v2925 = vsel %vm2764, %v2641, %v2924
  %v2926 = vsel %vm2766, %v2898, %v2925
  %v2927 = vsel %vm2754, %v2646, %v2644
  %v2928 = vsel %vm2756, %v2648, %v2927
  %v2929 = vsel %vm2758, %v2650, %v2928
  %v2930 = vsel %vm2760, %v2652, %v2929
  %v2931 = vsel %vm2762, %v2654, %v2930
  %v2932 = vsel %vm2764, %v2656, %v2931
  %v2933 = vsel %vm2766, %v2899, %v2932
  %v2934 = vsel %vm2754, %v2647, %v2645
  %v2935 = vsel %vm2756, %v2649, %v2934
  %v2936 = vsel %vm2758, %v2651, %v2935
  %v2937 = vsel %vm2760, %v2653, %v2936
  %v2938 = vsel %vm2762, %v2655, %v2937
  %v2939 = vsel %vm2764, %v2657, %v2938
  %v2940 = vsel %vm2766, %v2900, %v2939
  %v2941 = vsel %vm2754, %v2662, %v2660
  %v2942 = vsel %vm2756, %v2664, %v2941
  %v2943 = vsel %vm2758, %v2666, %v2942
  %v2944 = vsel %vm2760, %v2668, %v2943
  %v2945 = vsel %vm2762, %v2670, %v2944
  %v2946 = vsel %vm2764, %v2672, %v2945
  %v2947 = vsel %vm2766, %v2901, %v2946
  %v2948 = vsel %vm2754, %v2663, %v2661
  %v2949 = vsel %vm2756, %v2665, %v2948
  %v2950 = vsel %vm2758, %v2667, %v2949
  %v2951 = vsel %vm2760, %v2669, %v2950
  %v2952 = vsel %vm2762, %v2671, %v2951
  %v2953 = vsel %vm2764, %v2673, %v2952
  %v2954 = vsel %vm2766, %v2902, %v2953
  %v2955 = vsel %vm2754, %v2678, %v2676
  %v2956 = vsel %vm2756, %v2680, %v2955
  %v2957 = vsel %vm2758, %v2682, %v2956
  %v2958 = vsel %vm2760, %v2684, %v2957
  %v2959 = vsel %vm2762, %v2686, %v2958
  %v2960 = vsel %vm2764, %v2688, %v2959
  %v2961 = vsel %vm2766, %v2903, %v2960
  %v2962 = vsel %vm2754, %v2679, %v2677
  %v2963 = vsel %vm2756, %v2681, %v2962
  %v2964 = vsel %vm2758, %v2683, %v2963
  %v2965 = vsel %vm2760, %v2685, %v2964
  %v2966 = vsel %vm2762, %v2687, %v2965
  %v2967 = vsel %vm2764, %v2689, %v2966
  %v2968 = vsel %vm2766, %v2904, %v2967
  %v2969 = vsel %vm2754, %v2694, %v2692
  %v2970 = vsel %vm2756, %v2696, %v2969
  %v2971 = vsel %vm2758, %v2698, %v2970
  %v2972 = vsel %vm2760, %v2700, %v2971
  %v2973 = vsel %vm2762, %v2702, %v2972
  %v2974 = vsel %vm2764, %v2704, %v2973
  %v2975 = vsel %vm2766, %v2905, %v2974
  %v2976 = vsel %vm2754, %v2695, %v2693
  %v2977 = vsel %vm2756, %v2697, %v2976
  %v2978 = vsel %vm2758, %v2699, %v2977
  %v2979 = vsel %vm2760, %v2701, %v2978
  %v2980 = vsel %vm2762, %v2703, %v2979
  %v2981 = vsel %vm2764, %v2705, %v2980
  %v2982 = vsel %vm2766, %v2906, %v2981
  %v2983 = vsel %vm2754, %v2710, %v2708
  %v2984 = vsel %vm2756, %v2712, %v2983
  %v2985 = vsel %vm2758, %v2714, %v2984
  %v2986 = vsel %vm2760, %v2716, %v2985
  %v2987 = vsel %vm2762, %v2718, %v2986
  %v2988 = vsel %vm2764, %v2720, %v2987
  %v2989 = vsel %vm2766, %v2907, %v2988
  %v2990 = vsel %vm2754, %v2711, %v2709
  %v2991 = vsel %vm2756, %v2713, %v2990
  %v2992 = vsel %vm2758, %v2715, %v2991
  %v2993 = vsel %vm2760, %v2717, %v2992
  %v2994 = vsel %vm2762, %v2719, %v2993
  %v2995 = vsel %vm2764, %v2721, %v2994
  %v2996 = vsel %vm2766, %v2908, %v2995
  %v2997 = vsel %vm2754, %v2726, %v2724
  %v2998 = vsel %vm2756, %v2728, %v2997
  %v2999 = vsel %vm2758, %v2730, %v2998
  %v3000 = vsel %vm2760, %v2732, %v2999
  %v3001 = vsel %vm2762, %v2734, %v3000
  %v3002 = vsel %vm2764, %v2736, %v3001
  %v3003 = vsel %vm2766, %v2909, %v3002
  %v3004 = vsel %vm2754, %v2727, %v2725
  %v3005 = vsel %vm2756, %v2729, %v3004
  %v3006 = vsel %vm2758, %v2731, %v3005
  %v3007 = vsel %vm2760, %v2733, %v3006
  %v3008 = vsel %vm2762, %v2735, %v3007
  %v3009 = vsel %vm2764, %v2737, %v3008
  %v3010 = vsel %vm2766, %v2910, %v3009
  %v3011 = vsel %vm2754, %v2742, %v2740
  %v3012 = vsel %vm2756, %v2744, %v3011
  %v3013 = vsel %vm2758, %v2746, %v3012
  %v3014 = vsel %vm2760, %v2748, %v3013
  %v3015 = vsel %vm2762, %v2750, %v3014
  %v3016 = vsel %vm2764, %v2752, %v3015
  %v3017 = vsel %vm2766, %v2911, %v3016
  %v3018 = vsel %vm2754, %v2743, %v2741
  %v3019 = vsel %vm2756, %v2745, %v3018
  %v3020 = vsel %vm2758, %v2747, %v3019
  %v3021 = vsel %vm2760, %v2749, %v3020
  %v3022 = vsel %vm2762, %v2751, %v3021
  %v3023 = vsel %vm2764, %v2753, %v3022
  %v3024 = vsel %vm2766, %v2912, %v3023
  %3025 = vrot.lane.b32.xlu0 %v2919, 64
  %v3026 = vpop.permute.xlu0 %3025
  %3027 = vrot.lane.b32.xlu0 %v2926, 64
  %v3028 = vpop.permute.xlu0 %3027
  %3029 = vrot.lane.b32.xlu0 %v2933, 64
  %v3030 = vpop.permute.xlu0 %3029
  %3031 = vrot.lane.b32.xlu0 %v2940, 64
  %v3032 = vpop.permute.xlu0 %3031
  %3033 = vrot.lane.b32.xlu0 %v2947, 64
  %v3034 = vpop.permute.xlu0 %3033
  %3035 = vrot.lane.b32.xlu0 %v2954, 64
  %v3036 = vpop.permute.xlu0 %3035
  %3037 = vrot.lane.b32.xlu0 %v2961, 64
  %v3038 = vpop.permute.xlu0 %3037
  %3039 = vrot.lane.b32.xlu0 %v2968, 64
  %v3040 = vpop.permute.xlu0 %3039
  %3041 = vrot.lane.b32.xlu0 %v2975, 64
  %v3042 = vpop.permute.xlu0 %3041
  %3043 = vrot.lane.b32.xlu0 %v2982, 64
  %v3044 = vpop.permute.xlu0 %3043
  %3045 = vrot.lane.b32.xlu0 %v2989, 64
  %v3046 = vpop.permute.xlu0 %3045
  %3047 = vrot.lane.b32.xlu0 %v2996, 64
  %v3048 = vpop.permute.xlu0 %3047
  %3049 = vrot.lane.b32.xlu0 %v3003, 64
  %v3050 = vpop.permute.xlu0 %3049
  %3051 = vrot.lane.b32.xlu0 %v3010, 64
  %v3052 = vpop.permute.xlu0 %3051
  %3053 = vrot.lane.b32.xlu0 %v3017, 64
  %v3054 = vpop.permute.xlu0 %3053
  %3055 = vrot.lane.b32.xlu0 %v3024, 64
  %v3056 = vpop.permute.xlu0 %3055
  %v3057 = vsel %vm1502, %v3026, %v3028
  %v3058 = vsel %vm1502, %v3030, %v3032
  %v3059 = vsel %vm1502, %v3034, %v3036
  %v3060 = vsel %vm1502, %v3038, %v3040
  %v3061 = vsel %vm1502, %v3042, %v3044
  %v3062 = vsel %vm1502, %v3046, %v3048
  %v3063 = vsel %vm1502, %v3050, %v3052
  %v3064 = vsel %vm1502, %v3054, %v3056
  %v3089 = vperm.slane %v2475, 0
  %v3090 = vperm.slane %v2475, 2
  %v3091 = vperm.slane %v2487, 0
  %v3092 = vperm.slane %v2487, 2
  %v3093 = vperm.slane %v2499, 0
  %v3094 = vperm.slane %v2499, 2
  %v3095 = vperm.slane %v2511, 0
  %v3096 = vperm.slane %v2511, 2
  %v3097 = vperm.slane %v2523, 0
  %v3098 = vperm.slane %v2523, 2
  %v3099 = vperm.slane %v2535, 0
  %v3100 = vperm.slane %v2535, 2
  %v3101 = vperm.slane %v2547, 0
  %v3102 = vperm.slane %v2547, 2
  %v3103 = vperm.slane %v2559, 0
  %v3104 = vperm.slane %v2559, 2
  %v3105 = vsel %vm2754, %v2632, %v2630
  %v3106 = vsel %vm2756, %v2634, %v3105
  %v3107 = vsel %vm2758, %v2636, %v3106
  %v3108 = vsel %vm2760, %v2638, %v3107
  %v3109 = vsel %vm2762, %v2640, %v3108
  %v3110 = vsel %vm2764, %v2897, %v3109
  %v3111 = vsel %vm2766, %v3089, %v3110
  %v3112 = vsel %vm2754, %v2633, %v2631
  %v3113 = vsel %vm2756, %v2635, %v3112
  %v3114 = vsel %vm2758, %v2637, %v3113
  %v3115 = vsel %vm2760, %v2639, %v3114
  %v3116 = vsel %vm2762, %v2641, %v3115
  %v3117 = vsel %vm2764, %v2898, %v3116
  %v3118 = vsel %vm2766, %v3090, %v3117
  %v3119 = vsel %vm2754, %v2648, %v2646
  %v3120 = vsel %vm2756, %v2650, %v3119
  %v3121 = vsel %vm2758, %v2652, %v3120
  %v3122 = vsel %vm2760, %v2654, %v3121
  %v3123 = vsel %vm2762, %v2656, %v3122
  %v3124 = vsel %vm2764, %v2899, %v3123
  %v3125 = vsel %vm2766, %v3091, %v3124
  %v3126 = vsel %vm2754, %v2649, %v2647
  %v3127 = vsel %vm2756, %v2651, %v3126
  %v3128 = vsel %vm2758, %v2653, %v3127
  %v3129 = vsel %vm2760, %v2655, %v3128
  %v3130 = vsel %vm2762, %v2657, %v3129
  %v3131 = vsel %vm2764, %v2900, %v3130
  %v3132 = vsel %vm2766, %v3092, %v3131
  %v3133 = vsel %vm2754, %v2664, %v2662
  %v3134 = vsel %vm2756, %v2666, %v3133
  %v3135 = vsel %vm2758, %v2668, %v3134
  %v3136 = vsel %vm2760, %v2670, %v3135
  %v3137 = vsel %vm2762, %v2672, %v3136
  %v3138 = vsel %vm2764, %v2901, %v3137
  %v3139 = vsel %vm2766, %v3093, %v3138
  %v3140 = vsel %vm2754, %v2665, %v2663
  %v3141 = vsel %vm2756, %v2667, %v3140
  %v3142 = vsel %vm2758, %v2669, %v3141
  %v3143 = vsel %vm2760, %v2671, %v3142
  %v3144 = vsel %vm2762, %v2673, %v3143
  %v3145 = vsel %vm2764, %v2902, %v3144
  %v3146 = vsel %vm2766, %v3094, %v3145
  %v3147 = vsel %vm2754, %v2680, %v2678
  %v3148 = vsel %vm2756, %v2682, %v3147
  %v3149 = vsel %vm2758, %v2684, %v3148
  %v3150 = vsel %vm2760, %v2686, %v3149
  %v3151 = vsel %vm2762, %v2688, %v3150
  %v3152 = vsel %vm2764, %v2903, %v3151
  %v3153 = vsel %vm2766, %v3095, %v3152
  %v3154 = vsel %vm2754, %v2681, %v2679
  %v3155 = vsel %vm2756, %v2683, %v3154
  %v3156 = vsel %vm2758, %v2685, %v3155
  %v3157 = vsel %vm2760, %v2687, %v3156
  %v3158 = vsel %vm2762, %v2689, %v3157
  %v3159 = vsel %vm2764, %v2904, %v3158
  %v3160 = vsel %vm2766, %v3096, %v3159
  %v3161 = vsel %vm2754, %v2696, %v2694
  %v3162 = vsel %vm2756, %v2698, %v3161
  %v3163 = vsel %vm2758, %v2700, %v3162
  %v3164 = vsel %vm2760, %v2702, %v3163
  %v3165 = vsel %vm2762, %v2704, %v3164
  %v3166 = vsel %vm2764, %v2905, %v3165
  %v3167 = vsel %vm2766, %v3097, %v3166
  %v3168 = vsel %vm2754, %v2697, %v2695
  %v3169 = vsel %vm2756, %v2699, %v3168
  %v3170 = vsel %vm2758, %v2701, %v3169
  %v3171 = vsel %vm2760, %v2703, %v3170
  %v3172 = vsel %vm2762, %v2705, %v3171
  %v3173 = vsel %vm2764, %v2906, %v3172
  %v3174 = vsel %vm2766, %v3098, %v3173
  %v3175 = vsel %vm2754, %v2712, %v2710
  %v3176 = vsel %vm2756, %v2714, %v3175
  %v3177 = vsel %vm2758, %v2716, %v3176
  %v3178 = vsel %vm2760, %v2718, %v3177
  %v3179 = vsel %vm2762, %v2720, %v3178
  %v3180 = vsel %vm2764, %v2907, %v3179
  %v3181 = vsel %vm2766, %v3099, %v3180
  %v3182 = vsel %vm2754, %v2713, %v2711
  %v3183 = vsel %vm2756, %v2715, %v3182
  %v3184 = vsel %vm2758, %v2717, %v3183
  %v3185 = vsel %vm2760, %v2719, %v3184
  %v3186 = vsel %vm2762, %v2721, %v3185
  %v3187 = vsel %vm2764, %v2908, %v3186
  %v3188 = vsel %vm2766, %v3100, %v3187
  %v3189 = vsel %vm2754, %v2728, %v2726
  %v3190 = vsel %vm2756, %v2730, %v3189
  %v3191 = vsel %vm2758, %v2732, %v3190
  %v3192 = vsel %vm2760, %v2734, %v3191
  %v3193 = vsel %vm2762, %v2736, %v3192
  %v3194 = vsel %vm2764, %v2909, %v3193
  %v3195 = vsel %vm2766, %v3101, %v3194
  %v3196 = vsel %vm2754, %v2729, %v2727
  %v3197 = vsel %vm2756, %v2731, %v3196
  %v3198 = vsel %vm2758, %v2733, %v3197
  %v3199 = vsel %vm2760, %v2735, %v3198
  %v3200 = vsel %vm2762, %v2737, %v3199
  %v3201 = vsel %vm2764, %v2910, %v3200
  %v3202 = vsel %vm2766, %v3102, %v3201
  %v3203 = vsel %vm2754, %v2744, %v2742
  %v3204 = vsel %vm2756, %v2746, %v3203
  %v3205 = vsel %vm2758, %v2748, %v3204
  %v3206 = vsel %vm2760, %v2750, %v3205
  %v3207 = vsel %vm2762, %v2752, %v3206
  %v3208 = vsel %vm2764, %v2911, %v3207
  %v3209 = vsel %vm2766, %v3103, %v3208
  %v3210 = vsel %vm2754, %v2745, %v2743
  %v3211 = vsel %vm2756, %v2747, %v3210
  %v3212 = vsel %vm2758, %v2749, %v3211
  %v3213 = vsel %vm2760, %v2751, %v3212
  %v3214 = vsel %vm2762, %v2753, %v3213
  %v3215 = vsel %vm2764, %v2912, %v3214
  %v3216 = vsel %vm2766, %v3104, %v3215
  %v3241 = vperm.slane %v2476, 0
  %v3242 = vperm.slane %v2476, 2
  %v3243 = vperm.slane %v2488, 0
  %v3244 = vperm.slane %v2488, 2
  %v3245 = vperm.slane %v2500, 0
  %v3246 = vperm.slane %v2500, 2
  %v3247 = vperm.slane %v2512, 0
  %v3248 = vperm.slane %v2512, 2
  %v3249 = vperm.slane %v2524, 0
  %v3250 = vperm.slane %v2524, 2
  %v3251 = vperm.slane %v2536, 0
  %v3252 = vperm.slane %v2536, 2
  %v3253 = vperm.slane %v2548, 0
  %v3254 = vperm.slane %v2548, 2
  %v3255 = vperm.slane %v2560, 0
  %v3256 = vperm.slane %v2560, 2
  %v3257 = vsel %vm2754, %v2634, %v2632
  %v3258 = vsel %vm2756, %v2636, %v3257
  %v3259 = vsel %vm2758, %v2638, %v3258
  %v3260 = vsel %vm2760, %v2640, %v3259
  %v3261 = vsel %vm2762, %v2897, %v3260
  %v3262 = vsel %vm2764, %v3089, %v3261
  %v3263 = vsel %vm2766, %v3241, %v3262
  %v3264 = vsel %vm2754, %v2635, %v2633
  %v3265 = vsel %vm2756, %v2637, %v3264
  %v3266 = vsel %vm2758, %v2639, %v3265
  %v3267 = vsel %vm2760, %v2641, %v3266
  %v3268 = vsel %vm2762, %v2898, %v3267
  %v3269 = vsel %vm2764, %v3090, %v3268
  %v3270 = vsel %vm2766, %v3242, %v3269
  %v3271 = vsel %vm2754, %v2650, %v2648
  %v3272 = vsel %vm2756, %v2652, %v3271
  %v3273 = vsel %vm2758, %v2654, %v3272
  %v3274 = vsel %vm2760, %v2656, %v3273
  %v3275 = vsel %vm2762, %v2899, %v3274
  %v3276 = vsel %vm2764, %v3091, %v3275
  %v3277 = vsel %vm2766, %v3243, %v3276
  %v3278 = vsel %vm2754, %v2651, %v2649
  %v3279 = vsel %vm2756, %v2653, %v3278
  %v3280 = vsel %vm2758, %v2655, %v3279
  %v3281 = vsel %vm2760, %v2657, %v3280
  %v3282 = vsel %vm2762, %v2900, %v3281
  %v3283 = vsel %vm2764, %v3092, %v3282
  %v3284 = vsel %vm2766, %v3244, %v3283
  %v3285 = vsel %vm2754, %v2666, %v2664
  %v3286 = vsel %vm2756, %v2668, %v3285
  %v3287 = vsel %vm2758, %v2670, %v3286
  %v3288 = vsel %vm2760, %v2672, %v3287
  %v3289 = vsel %vm2762, %v2901, %v3288
  %v3290 = vsel %vm2764, %v3093, %v3289
  %v3291 = vsel %vm2766, %v3245, %v3290
  %v3292 = vsel %vm2754, %v2667, %v2665
  %v3293 = vsel %vm2756, %v2669, %v3292
  %v3294 = vsel %vm2758, %v2671, %v3293
  %v3295 = vsel %vm2760, %v2673, %v3294
  %v3296 = vsel %vm2762, %v2902, %v3295
  %v3297 = vsel %vm2764, %v3094, %v3296
  %v3298 = vsel %vm2766, %v3246, %v3297
  %v3299 = vsel %vm2754, %v2682, %v2680
  %v3300 = vsel %vm2756, %v2684, %v3299
  %v3301 = vsel %vm2758, %v2686, %v3300
  %v3302 = vsel %vm2760, %v2688, %v3301
  %v3303 = vsel %vm2762, %v2903, %v3302
  %v3304 = vsel %vm2764, %v3095, %v3303
  %v3305 = vsel %vm2766, %v3247, %v3304
  %v3306 = vsel %vm2754, %v2683, %v2681
  %v3307 = vsel %vm2756, %v2685, %v3306
  %v3308 = vsel %vm2758, %v2687, %v3307
  %v3309 = vsel %vm2760, %v2689, %v3308
  %v3310 = vsel %vm2762, %v2904, %v3309
  %v3311 = vsel %vm2764, %v3096, %v3310
  %v3312 = vsel %vm2766, %v3248, %v3311
  %v3313 = vsel %vm2754, %v2698, %v2696
  %v3314 = vsel %vm2756, %v2700, %v3313
  %v3315 = vsel %vm2758, %v2702, %v3314
  %v3316 = vsel %vm2760, %v2704, %v3315
  %v3317 = vsel %vm2762, %v2905, %v3316
  %v3318 = vsel %vm2764, %v3097, %v3317
  %v3319 = vsel %vm2766, %v3249, %v3318
  %v3320 = vsel %vm2754, %v2699, %v2697
  %v3321 = vsel %vm2756, %v2701, %v3320
  %v3322 = vsel %vm2758, %v2703, %v3321
  %v3323 = vsel %vm2760, %v2705, %v3322
  %v3324 = vsel %vm2762, %v2906, %v3323
  %v3325 = vsel %vm2764, %v3098, %v3324
  %v3326 = vsel %vm2766, %v3250, %v3325
  %v3327 = vsel %vm2754, %v2714, %v2712
  %v3328 = vsel %vm2756, %v2716, %v3327
  %v3329 = vsel %vm2758, %v2718, %v3328
  %v3330 = vsel %vm2760, %v2720, %v3329
  %v3331 = vsel %vm2762, %v2907, %v3330
  %v3332 = vsel %vm2764, %v3099, %v3331
  %v3333 = vsel %vm2766, %v3251, %v3332
  %v3334 = vsel %vm2754, %v2715, %v2713
  %v3335 = vsel %vm2756, %v2717, %v3334
  %v3336 = vsel %vm2758, %v2719, %v3335
  %v3337 = vsel %vm2760, %v2721, %v3336
  %v3338 = vsel %vm2762, %v2908, %v3337
  %v3339 = vsel %vm2764, %v3100, %v3338
  %v3340 = vsel %vm2766, %v3252, %v3339
  %v3341 = vsel %vm2754, %v2730, %v2728
  %v3342 = vsel %vm2756, %v2732, %v3341
  %v3343 = vsel %vm2758, %v2734, %v3342
  %v3344 = vsel %vm2760, %v2736, %v3343
  %v3345 = vsel %vm2762, %v2909, %v3344
  %v3346 = vsel %vm2764, %v3101, %v3345
  %v3347 = vsel %vm2766, %v3253, %v3346
  %v3348 = vsel %vm2754, %v2731, %v2729
  %v3349 = vsel %vm2756, %v2733, %v3348
  %v3350 = vsel %vm2758, %v2735, %v3349
  %v3351 = vsel %vm2760, %v2737, %v3350
  %v3352 = vsel %vm2762, %v2910, %v3351
  %v3353 = vsel %vm2764, %v3102, %v3352
  %v3354 = vsel %vm2766, %v3254, %v3353
  %v3355 = vsel %vm2754, %v2746, %v2744
  %v3356 = vsel %vm2756, %v2748, %v3355
  %v3357 = vsel %vm2758, %v2750, %v3356
  %v3358 = vsel %vm2760, %v2752, %v3357
  %v3359 = vsel %vm2762, %v2911, %v3358
  %v3360 = vsel %vm2764, %v3103, %v3359
  %v3361 = vsel %vm2766, %v3255, %v3360
  %v3362 = vsel %vm2754, %v2747, %v2745
  %v3363 = vsel %vm2756, %v2749, %v3362
  %v3364 = vsel %vm2758, %v2751, %v3363
  %v3365 = vsel %vm2760, %v2753, %v3364
  %v3366 = vsel %vm2762, %v2912, %v3365
  %v3367 = vsel %vm2764, %v3104, %v3366
  %v3368 = vsel %vm2766, %v3256, %v3367
  %3369 = vrot.lane.b32.xlu0 %v3263, 64
  %v3370 = vpop.permute.xlu0 %3369
  %3371 = vrot.lane.b32.xlu0 %v3270, 64
  %v3372 = vpop.permute.xlu0 %3371
  %3373 = vrot.lane.b32.xlu0 %v3277, 64
  %v3374 = vpop.permute.xlu0 %3373
  %3375 = vrot.lane.b32.xlu0 %v3284, 64
  %v3376 = vpop.permute.xlu0 %3375
  %3377 = vrot.lane.b32.xlu0 %v3291, 64
  %v3378 = vpop.permute.xlu0 %3377
  %3379 = vrot.lane.b32.xlu0 %v3298, 64
  %v3380 = vpop.permute.xlu0 %3379
  %3381 = vrot.lane.b32.xlu0 %v3305, 64
  %v3382 = vpop.permute.xlu0 %3381
  %3383 = vrot.lane.b32.xlu0 %v3312, 64
  %v3384 = vpop.permute.xlu0 %3383
  %3385 = vrot.lane.b32.xlu0 %v3319, 64
  %v3386 = vpop.permute.xlu0 %3385
  %3387 = vrot.lane.b32.xlu0 %v3326, 64
  %v3388 = vpop.permute.xlu0 %3387
  %3389 = vrot.lane.b32.xlu0 %v3333, 64
  %v3390 = vpop.permute.xlu0 %3389
  %3391 = vrot.lane.b32.xlu0 %v3340, 64
  %v3392 = vpop.permute.xlu0 %3391
  %3393 = vrot.lane.b32.xlu0 %v3347, 64
  %v3394 = vpop.permute.xlu0 %3393
  %3395 = vrot.lane.b32.xlu0 %v3354, 64
  %v3396 = vpop.permute.xlu0 %3395
  %3397 = vrot.lane.b32.xlu0 %v3361, 64
  %v3398 = vpop.permute.xlu0 %3397
  %3399 = vrot.lane.b32.xlu0 %v3368, 64
  %v3400 = vpop.permute.xlu0 %3399
  %v3401 = vsel %vm1502, %v3370, %v3372
  %v3402 = vsel %vm1502, %v3374, %v3376
  %v3403 = vsel %vm1502, %v3378, %v3380
  %v3404 = vsel %vm1502, %v3382, %v3384
  %v3405 = vsel %vm1502, %v3386, %v3388
  %v3406 = vsel %vm1502, %v3390, %v3392
  %v3407 = vsel %vm1502, %v3394, %v3396
  %v3408 = vsel %vm1502, %v3398, %v3400
  %v3433 = vperm.slane %v2477, 0
  %v3434 = vperm.slane %v2477, 2
  %v3435 = vperm.slane %v2489, 0
  %v3436 = vperm.slane %v2489, 2
  %v3437 = vperm.slane %v2501, 0
  %v3438 = vperm.slane %v2501, 2
  %v3439 = vperm.slane %v2513, 0
  %v3440 = vperm.slane %v2513, 2
  %v3441 = vperm.slane %v2525, 0
  %v3442 = vperm.slane %v2525, 2
  %v3443 = vperm.slane %v2537, 0
  %v3444 = vperm.slane %v2537, 2
  %v3445 = vperm.slane %v2549, 0
  %v3446 = vperm.slane %v2549, 2
  %v3447 = vperm.slane %v2561, 0
  %v3448 = vperm.slane %v2561, 2
  %v3449 = vsel %vm2754, %v2636, %v2634
  %v3450 = vsel %vm2756, %v2638, %v3449
  %v3451 = vsel %vm2758, %v2640, %v3450
  %v3452 = vsel %vm2760, %v2897, %v3451
  %v3453 = vsel %vm2762, %v3089, %v3452
  %v3454 = vsel %vm2764, %v3241, %v3453
  %v3455 = vsel %vm2766, %v3433, %v3454
  %v3456 = vsel %vm2754, %v2637, %v2635
  %v3457 = vsel %vm2756, %v2639, %v3456
  %v3458 = vsel %vm2758, %v2641, %v3457
  %v3459 = vsel %vm2760, %v2898, %v3458
  %v3460 = vsel %vm2762, %v3090, %v3459
  %v3461 = vsel %vm2764, %v3242, %v3460
  %v3462 = vsel %vm2766, %v3434, %v3461
  %v3463 = vsel %vm2754, %v2652, %v2650
  %v3464 = vsel %vm2756, %v2654, %v3463
  %v3465 = vsel %vm2758, %v2656, %v3464
  %v3466 = vsel %vm2760, %v2899, %v3465
  %v3467 = vsel %vm2762, %v3091, %v3466
  %v3468 = vsel %vm2764, %v3243, %v3467
  %v3469 = vsel %vm2766, %v3435, %v3468
  %v3470 = vsel %vm2754, %v2653, %v2651
  %v3471 = vsel %vm2756, %v2655, %v3470
  %v3472 = vsel %vm2758, %v2657, %v3471
  %v3473 = vsel %vm2760, %v2900, %v3472
  %v3474 = vsel %vm2762, %v3092, %v3473
  %v3475 = vsel %vm2764, %v3244, %v3474
  %v3476 = vsel %vm2766, %v3436, %v3475
  %v3477 = vsel %vm2754, %v2668, %v2666
  %v3478 = vsel %vm2756, %v2670, %v3477
  %v3479 = vsel %vm2758, %v2672, %v3478
  %v3480 = vsel %vm2760, %v2901, %v3479
  %v3481 = vsel %vm2762, %v3093, %v3480
  %v3482 = vsel %vm2764, %v3245, %v3481
  %v3483 = vsel %vm2766, %v3437, %v3482
  %v3484 = vsel %vm2754, %v2669, %v2667
  %v3485 = vsel %vm2756, %v2671, %v3484
  %v3486 = vsel %vm2758, %v2673, %v3485
  %v3487 = vsel %vm2760, %v2902, %v3486
  %v3488 = vsel %vm2762, %v3094, %v3487
  %v3489 = vsel %vm2764, %v3246, %v3488
  %v3490 = vsel %vm2766, %v3438, %v3489
  %v3491 = vsel %vm2754, %v2684, %v2682
  %v3492 = vsel %vm2756, %v2686, %v3491
  %v3493 = vsel %vm2758, %v2688, %v3492
  %v3494 = vsel %vm2760, %v2903, %v3493
  %v3495 = vsel %vm2762, %v3095, %v3494
  %v3496 = vsel %vm2764, %v3247, %v3495
  %v3497 = vsel %vm2766, %v3439, %v3496
  %v3498 = vsel %vm2754, %v2685, %v2683
  %v3499 = vsel %vm2756, %v2687, %v3498
  %v3500 = vsel %vm2758, %v2689, %v3499
  %v3501 = vsel %vm2760, %v2904, %v3500
  %v3502 = vsel %vm2762, %v3096, %v3501
  %v3503 = vsel %vm2764, %v3248, %v3502
  %v3504 = vsel %vm2766, %v3440, %v3503
  %v3505 = vsel %vm2754, %v2700, %v2698
  %v3506 = vsel %vm2756, %v2702, %v3505
  %v3507 = vsel %vm2758, %v2704, %v3506
  %v3508 = vsel %vm2760, %v2905, %v3507
  %v3509 = vsel %vm2762, %v3097, %v3508
  %v3510 = vsel %vm2764, %v3249, %v3509
  %v3511 = vsel %vm2766, %v3441, %v3510
  %v3512 = vsel %vm2754, %v2701, %v2699
  %v3513 = vsel %vm2756, %v2703, %v3512
  %v3514 = vsel %vm2758, %v2705, %v3513
  %v3515 = vsel %vm2760, %v2906, %v3514
  %v3516 = vsel %vm2762, %v3098, %v3515
  %v3517 = vsel %vm2764, %v3250, %v3516
  %v3518 = vsel %vm2766, %v3442, %v3517
  %v3519 = vsel %vm2754, %v2716, %v2714
  %v3520 = vsel %vm2756, %v2718, %v3519
  %v3521 = vsel %vm2758, %v2720, %v3520
  %v3522 = vsel %vm2760, %v2907, %v3521
  %v3523 = vsel %vm2762, %v3099, %v3522
  %v3524 = vsel %vm2764, %v3251, %v3523
  %v3525 = vsel %vm2766, %v3443, %v3524
  %v3526 = vsel %vm2754, %v2717, %v2715
  %v3527 = vsel %vm2756, %v2719, %v3526
  %v3528 = vsel %vm2758, %v2721, %v3527
  %v3529 = vsel %vm2760, %v2908, %v3528
  %v3530 = vsel %vm2762, %v3100, %v3529
  %v3531 = vsel %vm2764, %v3252, %v3530
  %v3532 = vsel %vm2766, %v3444, %v3531
  %v3533 = vsel %vm2754, %v2732, %v2730
  %v3534 = vsel %vm2756, %v2734, %v3533
  %v3535 = vsel %vm2758, %v2736, %v3534
  %v3536 = vsel %vm2760, %v2909, %v3535
  %v3537 = vsel %vm2762, %v3101, %v3536
  %v3538 = vsel %vm2764, %v3253, %v3537
  %v3539 = vsel %vm2766, %v3445, %v3538
  %v3540 = vsel %vm2754, %v2733, %v2731
  %v3541 = vsel %vm2756, %v2735, %v3540
  %v3542 = vsel %vm2758, %v2737, %v3541
  %v3543 = vsel %vm2760, %v2910, %v3542
  %v3544 = vsel %vm2762, %v3102, %v3543
  %v3545 = vsel %vm2764, %v3254, %v3544
  %v3546 = vsel %vm2766, %v3446, %v3545
  %v3547 = vsel %vm2754, %v2748, %v2746
  %v3548 = vsel %vm2756, %v2750, %v3547
  %v3549 = vsel %vm2758, %v2752, %v3548
  %v3550 = vsel %vm2760, %v2911, %v3549
  %v3551 = vsel %vm2762, %v3103, %v3550
  %v3552 = vsel %vm2764, %v3255, %v3551
  %v3553 = vsel %vm2766, %v3447, %v3552
  %v3554 = vsel %vm2754, %v2749, %v2747
  %v3555 = vsel %vm2756, %v2751, %v3554
  %v3556 = vsel %vm2758, %v2753, %v3555
  %v3557 = vsel %vm2760, %v2912, %v3556
  %v3558 = vsel %vm2762, %v3104, %v3557
  %v3559 = vsel %vm2764, %v3256, %v3558
  %v3560 = vsel %vm2766, %v3448, %v3559
  %v3569 = vsel %vm1502, %v2774, %v3026
  %v3570 = vsel %vm1502, %v2788, %v3030
  %v3571 = vsel %vm1502, %v2802, %v3034
  %v3572 = vsel %vm1502, %v2816, %v3038
  %v3573 = vsel %vm1502, %v2830, %v3042
  %v3574 = vsel %vm1502, %v2844, %v3046
  %v3575 = vsel %vm1502, %v2858, %v3050
  %v3576 = vsel %vm1502, %v2872, %v3054
  %v3577 = vsel %vm1502, %v3118, %v3370
  %v3578 = vsel %vm1502, %v3132, %v3374
  %v3579 = vsel %vm1502, %v3146, %v3378
  %v3580 = vsel %vm1502, %v3160, %v3382
  %v3581 = vsel %vm1502, %v3174, %v3386
  %v3582 = vsel %vm1502, %v3188, %v3390
  %v3583 = vsel %vm1502, %v3202, %v3394
  %v3584 = vsel %vm1502, %v3216, %v3398
  %v3585 = vld [vmem:[%s3] sm:$0xff]
  %v3586 = vld [vmem:[%s3 + $0x8] sm:$0xff]
  %v3587 = vld [vmem:[%s3 + $0x10] sm:$0xff]
  %v3588 = vld [vmem:[%s3 + $0x18] sm:$0xff]
  %v3589 = vld [vmem:[%s3 + $0x20] sm:$0xff]
  %v3590 = vld [vmem:[%s3 + $0x28] sm:$0xff]
  %v3591 = vld [vmem:[%s3 + $0x30] sm:$0xff]
  %v3592 = vld [vmem:[%s3 + $0x38] sm:$0xff]
  %v3593 = vld [vmem:[%s3 + $0x40] sm:$0xff]
  %v3594 = vld [vmem:[%s3 + $0x48] sm:$0xff]
  %v3595 = vld [vmem:[%s3 + $0x50] sm:$0xff]
  %v3596 = vld [vmem:[%s3 + $0x58] sm:$0xff]
  %v3597 = vld [vmem:[%s3 + $0x60] sm:$0xff]
  %v3598 = vld [vmem:[%s3 + $0x68] sm:$0xff]
  %v3599 = vld [vmem:[%s3 + $0x70] sm:$0xff]
  %v3600 = vld [vmem:[%s3 + $0x78] sm:$0xff]
  %v3601 = vld [vmem:[%s3 + $0x80] sm:$0xff]
  %v3602 = vld [vmem:[%s3 + $0x88] sm:$0xff]
  %v3603 = vld [vmem:[%s3 + $0x90] sm:$0xff]
  %v3604 = vld [vmem:[%s3 + $0x98] sm:$0xff]
  %v3605 = vld [vmem:[%s3 + $0xa0] sm:$0xff]
  %v3606 = vld [vmem:[%s3 + $0xa8] sm:$0xff]
  %v3607 = vld [vmem:[%s3 + $0xb0] sm:$0xff]
  %v3608 = vld [vmem:[%s3 + $0xb8] sm:$0xff]
  %v3609 = vld [vmem:[%s3 + $0xc0] sm:$0xff]
  %v3610 = vld [vmem:[%s3 + $0xc8] sm:$0xff]
  %v3611 = vld [vmem:[%s3 + $0xd0] sm:$0xff]
  %v3612 = vld [vmem:[%s3 + $0xd8] sm:$0xff]
  %v3613 = vld [vmem:[%s3 + $0xe0] sm:$0xff]
  %v3614 = vld [vmem:[%s3 + $0xe8] sm:$0xff]
  %v3615 = vld [vmem:[%s3 + $0xf0] sm:$0xff]
  %v3616 = vld [vmem:[%s3 + $0xf8] sm:$0xff]
  %v3617 = vld [vmem:[%s3 + $0x100] sm:$0xff]
  %v3618 = vld [vmem:[%s3 + $0x108] sm:$0xff]
  %v3619 = vld [vmem:[%s3 + $0x110] sm:$0xff]
  %v3620 = vld [vmem:[%s3 + $0x118] sm:$0xff]
  %v3621 = vld [vmem:[%s3 + $0x120] sm:$0xff]
  %v3622 = vld [vmem:[%s3 + $0x128] sm:$0xff]
  %v3623 = vld [vmem:[%s3 + $0x130] sm:$0xff]
  %v3624 = vld [vmem:[%s3 + $0x138] sm:$0xff]
  %v3625 = vld [vmem:[%s3 + $0x140] sm:$0xff]
  %v3626 = vld [vmem:[%s3 + $0x148] sm:$0xff]
  %v3627 = vld [vmem:[%s3 + $0x150] sm:$0xff]
  %v3628 = vld [vmem:[%s3 + $0x158] sm:$0xff]
  %v3629 = vld [vmem:[%s3 + $0x160] sm:$0xff]
  %v3630 = vld [vmem:[%s3 + $0x168] sm:$0xff]
  %v3631 = vld [vmem:[%s3 + $0x170] sm:$0xff]
  %v3632 = vld [vmem:[%s3 + $0x178] sm:$0xff]
  %v3633 = vld [vmem:[%s3 + $0x180] sm:$0xff]
  %v3634 = vld [vmem:[%s3 + $0x188] sm:$0xff]
  %v3635 = vld [vmem:[%s3 + $0x190] sm:$0xff]
  %v3636 = vld [vmem:[%s3 + $0x198] sm:$0xff]
  %v3637 = vld [vmem:[%s3 + $0x1a0] sm:$0xff]
  %v3638 = vld [vmem:[%s3 + $0x1a8] sm:$0xff]
  %v3639 = vld [vmem:[%s3 + $0x1b0] sm:$0xff]
  %v3640 = vld [vmem:[%s3 + $0x1b8] sm:$0xff]
  %v3641 = vld [vmem:[%s3 + $0x1c0] sm:$0xff]
  %v3642 = vld [vmem:[%s3 + $0x1c8] sm:$0xff]
  %v3643 = vld [vmem:[%s3 + $0x1d0] sm:$0xff]
  %v3644 = vld [vmem:[%s3 + $0x1d8] sm:$0xff]
  %v3645 = vld [vmem:[%s3 + $0x1e0] sm:$0xff]
  %v3646 = vld [vmem:[%s3 + $0x1e8] sm:$0xff]
  %v3647 = vld [vmem:[%s3 + $0x1f0] sm:$0xff]
  %v3648 = vld [vmem:[%s3 + $0x1f8] sm:$0xff]
  %v3649 = vld [vmem:[%s3 + $0x200] sm:$0xff]
  %v3650 = vld [vmem:[%s3 + $0x208] sm:$0xff]
  %v3651 = vld [vmem:[%s3 + $0x210] sm:$0xff]
  %v3652 = vld [vmem:[%s3 + $0x218] sm:$0xff]
  %v3653 = vld [vmem:[%s3 + $0x220] sm:$0xff]
  %v3654 = vld [vmem:[%s3 + $0x228] sm:$0xff]
  %v3655 = vld [vmem:[%s3 + $0x230] sm:$0xff]
  %v3656 = vld [vmem:[%s3 + $0x238] sm:$0xff]
  %v3657 = vld [vmem:[%s3 + $0x240] sm:$0xff]
  %v3658 = vld [vmem:[%s3 + $0x248] sm:$0xff]
  %v3659 = vld [vmem:[%s3 + $0x250] sm:$0xff]
  %v3660 = vld [vmem:[%s3 + $0x258] sm:$0xff]
  %v3661 = vld [vmem:[%s3 + $0x260] sm:$0xff]
  %v3662 = vld [vmem:[%s3 + $0x268] sm:$0xff]
  %v3663 = vld [vmem:[%s3 + $0x270] sm:$0xff]
  %v3664 = vld [vmem:[%s3 + $0x278] sm:$0xff]
  %v3665 = vld [vmem:[%s3 + $0x280] sm:$0xff]
  %v3666 = vld [vmem:[%s3 + $0x288] sm:$0xff]
  %v3667 = vld [vmem:[%s3 + $0x290] sm:$0xff]
  %v3668 = vld [vmem:[%s3 + $0x298] sm:$0xff]
  %v3669 = vld [vmem:[%s3 + $0x2a0] sm:$0xff]
  %v3670 = vld [vmem:[%s3 + $0x2a8] sm:$0xff]
  %v3671 = vld [vmem:[%s3 + $0x2b0] sm:$0xff]
  %v3672 = vld [vmem:[%s3 + $0x2b8] sm:$0xff]
  %v3673 = vld [vmem:[%s3 + $0x2c0] sm:$0xff]
  %v3674 = vld [vmem:[%s3 + $0x2c8] sm:$0xff]
  %v3675 = vld [vmem:[%s3 + $0x2d0] sm:$0xff]
  %v3676 = vld [vmem:[%s3 + $0x2d8] sm:$0xff]
  %v3677 = vld [vmem:[%s3 + $0x2e0] sm:$0xff]
  %v3678 = vld [vmem:[%s3 + $0x2e8] sm:$0xff]
  %v3679 = vld [vmem:[%s3 + $0x2f0] sm:$0xff]
  %v3680 = vld [vmem:[%s3 + $0x2f8] sm:$0xff]
  %v3681 = vld [vmem:[%s3 + $0x300] sm:$0xff]
  %v3682 = vld [vmem:[%s3 + $0x308] sm:$0xff]
  %v3683 = vld [vmem:[%s3 + $0x310] sm:$0xff]
  %v3684 = vld [vmem:[%s3 + $0x318] sm:$0xff]
  %v3685 = vld [vmem:[%s3 + $0x320] sm:$0xff]
  %v3686 = vld [vmem:[%s3 + $0x328] sm:$0xff]
  %v3687 = vld [vmem:[%s3 + $0x330] sm:$0xff]
  %v3688 = vld [vmem:[%s3 + $0x338] sm:$0xff]
  %v3689 = vld [vmem:[%s3 + $0x340] sm:$0xff]
  %v3690 = vld [vmem:[%s3 + $0x348] sm:$0xff]
  %v3691 = vld [vmem:[%s3 + $0x350] sm:$0xff]
  %v3692 = vld [vmem:[%s3 + $0x358] sm:$0xff]
  %v3693 = vld [vmem:[%s3 + $0x360] sm:$0xff]
  %v3694 = vld [vmem:[%s3 + $0x368] sm:$0xff]
  %v3695 = vld [vmem:[%s3 + $0x370] sm:$0xff]
  %v3696 = vld [vmem:[%s3 + $0x378] sm:$0xff]
  %v3697 = vld [vmem:[%s3 + $0x380] sm:$0xff]
  %v3698 = vld [vmem:[%s3 + $0x388] sm:$0xff]
  %v3699 = vld [vmem:[%s3 + $0x390] sm:$0xff]
  %v3700 = vld [vmem:[%s3 + $0x398] sm:$0xff]
  %v3701 = vld [vmem:[%s3 + $0x3a0] sm:$0xff]
  %v3702 = vld [vmem:[%s3 + $0x3a8] sm:$0xff]
  %v3703 = vld [vmem:[%s3 + $0x3b0] sm:$0xff]
  %v3704 = vld [vmem:[%s3 + $0x3b8] sm:$0xff]
  %v3705 = vld [vmem:[%s3 + $0x3c0] sm:$0xff]
  %v3706 = vld [vmem:[%s3 + $0x3c8] sm:$0xff]
  %v3707 = vld [vmem:[%s3 + $0x3d0] sm:$0xff]
  %v3708 = vld [vmem:[%s3 + $0x3d8] sm:$0xff]
  %v3709 = vld [vmem:[%s3 + $0x3e0] sm:$0xff]
  %v3710 = vld [vmem:[%s3 + $0x3e8] sm:$0xff]
  %v3711 = vld [vmem:[%s3 + $0x3f0] sm:$0xff]
  %v3712 = vld [vmem:[%s3 + $0x3f8] sm:$0xff]
  %v3713 = vld [vmem:[%s3 + $0x400] sm:$0xff]
  %v3714 = vld [vmem:[%s3 + $0x408] sm:$0xff]
  %v3715 = vld [vmem:[%s3 + $0x410] sm:$0xff]
  %v3716 = vld [vmem:[%s3 + $0x418] sm:$0xff]
  %v3717 = vld [vmem:[%s3 + $0x420] sm:$0xff]
  %v3718 = vld [vmem:[%s3 + $0x428] sm:$0xff]
  %v3719 = vld [vmem:[%s3 + $0x430] sm:$0xff]
  %v3720 = vld [vmem:[%s3 + $0x438] sm:$0xff]
  %v3721 = vld [vmem:[%s3 + $0x440] sm:$0xff]
  %v3722 = vld [vmem:[%s3 + $0x448] sm:$0xff]
  %v3723 = vld [vmem:[%s3 + $0x450] sm:$0xff]
  %v3724 = vld [vmem:[%s3 + $0x458] sm:$0xff]
  %v3725 = vld [vmem:[%s3 + $0x460] sm:$0xff]
  %v3726 = vld [vmem:[%s3 + $0x468] sm:$0xff]
  %v3727 = vld [vmem:[%s3 + $0x470] sm:$0xff]
  %v3728 = vld [vmem:[%s3 + $0x478] sm:$0xff]
  %v3729 = vld [vmem:[%s3 + $0x480] sm:$0xff]
  %v3730 = vld [vmem:[%s3 + $0x488] sm:$0xff]
  %v3731 = vld [vmem:[%s3 + $0x490] sm:$0xff]
  %v3732 = vld [vmem:[%s3 + $0x498] sm:$0xff]
  %v3733 = vld [vmem:[%s3 + $0x4a0] sm:$0xff]
  %v3734 = vld [vmem:[%s3 + $0x4a8] sm:$0xff]
  %v3735 = vld [vmem:[%s3 + $0x4b0] sm:$0xff]
  %v3736 = vld [vmem:[%s3 + $0x4b8] sm:$0xff]
  %v3737 = vld [vmem:[%s3 + $0x4c0] sm:$0xff]
  %v3738 = vld [vmem:[%s3 + $0x4c8] sm:$0xff]
  %v3739 = vld [vmem:[%s3 + $0x4d0] sm:$0xff]
  %v3740 = vld [vmem:[%s3 + $0x4d8] sm:$0xff]
  %v3741 = vld [vmem:[%s3 + $0x4e0] sm:$0xff]
  %v3742 = vld [vmem:[%s3 + $0x4e8] sm:$0xff]
  %v3743 = vld [vmem:[%s3 + $0x4f0] sm:$0xff]
  %v3744 = vld [vmem:[%s3 + $0x4f8] sm:$0xff]
  %v3745 = vld [vmem:[%s3 + $0x500] sm:$0xff]
  %v3746 = vld [vmem:[%s3 + $0x508] sm:$0xff]
  %v3747 = vld [vmem:[%s3 + $0x510] sm:$0xff]
  %v3748 = vld [vmem:[%s3 + $0x518] sm:$0xff]
  %v3749 = vld [vmem:[%s3 + $0x520] sm:$0xff]
  %v3750 = vld [vmem:[%s3 + $0x528] sm:$0xff]
  %v3751 = vld [vmem:[%s3 + $0x530] sm:$0xff]
  %v3752 = vld [vmem:[%s3 + $0x538] sm:$0xff]
  %v3753 = vld [vmem:[%s3 + $0x540] sm:$0xff]
  %v3754 = vld [vmem:[%s3 + $0x548] sm:$0xff]
  %v3755 = vld [vmem:[%s3 + $0x550] sm:$0xff]
  %v3756 = vld [vmem:[%s3 + $0x558] sm:$0xff]
  %v3757 = vld [vmem:[%s3 + $0x560] sm:$0xff]
  %v3758 = vld [vmem:[%s3 + $0x568] sm:$0xff]
  %v3759 = vld [vmem:[%s3 + $0x570] sm:$0xff]
  %v3760 = vld [vmem:[%s3 + $0x578] sm:$0xff]
  %v3761 = vld [vmem:[%s3 + $0x580] sm:$0xff]
  %v3762 = vld [vmem:[%s3 + $0x588] sm:$0xff]
  %v3763 = vld [vmem:[%s3 + $0x590] sm:$0xff]
  %v3764 = vld [vmem:[%s3 + $0x598] sm:$0xff]
  %v3765 = vld [vmem:[%s3 + $0x5a0] sm:$0xff]
  %v3766 = vld [vmem:[%s3 + $0x5a8] sm:$0xff]
  %v3767 = vld [vmem:[%s3 + $0x5b0] sm:$0xff]
  %v3768 = vld [vmem:[%s3 + $0x5b8] sm:$0xff]
  %v3769 = vld [vmem:[%s3 + $0x5c0] sm:$0xff]
  %v3770 = vld [vmem:[%s3 + $0x5c8] sm:$0xff]
  %v3771 = vld [vmem:[%s3 + $0x5d0] sm:$0xff]
  %v3772 = vld [vmem:[%s3 + $0x5d8] sm:$0xff]
  %v3773 = vld [vmem:[%s3 + $0x5e0] sm:$0xff]
  %v3774 = vld [vmem:[%s3 + $0x5e8] sm:$0xff]
  %v3775 = vld [vmem:[%s3 + $0x5f0] sm:$0xff]
  %v3776 = vld [vmem:[%s3 + $0x5f8] sm:$0xff]
  %v3777 = vld [vmem:[%s3 + $0x600] sm:$0xff]
  %v3778 = vld [vmem:[%s3 + $0x608] sm:$0xff]
  %v3779 = vld [vmem:[%s3 + $0x610] sm:$0xff]
  %v3780 = vld [vmem:[%s3 + $0x618] sm:$0xff]
  %v3781 = vld [vmem:[%s3 + $0x620] sm:$0xff]
  %v3782 = vld [vmem:[%s3 + $0x628] sm:$0xff]
  %v3783 = vld [vmem:[%s3 + $0x630] sm:$0xff]
  %v3784 = vld [vmem:[%s3 + $0x638] sm:$0xff]
  %v3785 = vld [vmem:[%s3 + $0x640] sm:$0xff]
  %v3786 = vld [vmem:[%s3 + $0x648] sm:$0xff]
  %v3787 = vld [vmem:[%s3 + $0x650] sm:$0xff]
  %v3788 = vld [vmem:[%s3 + $0x658] sm:$0xff]
  %v3789 = vld [vmem:[%s3 + $0x660] sm:$0xff]
  %v3790 = vld [vmem:[%s3 + $0x668] sm:$0xff]
  %v3791 = vld [vmem:[%s3 + $0x670] sm:$0xff]
  %v3792 = vld [vmem:[%s3 + $0x678] sm:$0xff]
  %v3793 = vld [vmem:[%s3 + $0x680] sm:$0xff]
  %v3794 = vld [vmem:[%s3 + $0x688] sm:$0xff]
  %v3795 = vld [vmem:[%s3 + $0x690] sm:$0xff]
  %v3796 = vld [vmem:[%s3 + $0x698] sm:$0xff]
  %v3797 = vld [vmem:[%s3 + $0x6a0] sm:$0xff]
  %v3798 = vld [vmem:[%s3 + $0x6a8] sm:$0xff]
  %v3799 = vld [vmem:[%s3 + $0x6b0] sm:$0xff]
  %v3800 = vld [vmem:[%s3 + $0x6b8] sm:$0xff]
  %v3801 = vld [vmem:[%s3 + $0x6c0] sm:$0xff]
  %v3802 = vld [vmem:[%s3 + $0x6c8] sm:$0xff]
  %v3803 = vld [vmem:[%s3 + $0x6d0] sm:$0xff]
  %v3804 = vld [vmem:[%s3 + $0x6d8] sm:$0xff]
  %v3805 = vld [vmem:[%s3 + $0x6e0] sm:$0xff]
  %v3806 = vld [vmem:[%s3 + $0x6e8] sm:$0xff]
  %v3807 = vld [vmem:[%s3 + $0x6f0] sm:$0xff]
  %v3808 = vld [vmem:[%s3 + $0x6f8] sm:$0xff]
  %v3809 = vld [vmem:[%s3 + $0x700] sm:$0xff]
  %v3810 = vld [vmem:[%s3 + $0x708] sm:$0xff]
  %v3811 = vld [vmem:[%s3 + $0x710] sm:$0xff]
  %v3812 = vld [vmem:[%s3 + $0x718] sm:$0xff]
  %v3813 = vld [vmem:[%s3 + $0x720] sm:$0xff]
  %v3814 = vld [vmem:[%s3 + $0x728] sm:$0xff]
  %v3815 = vld [vmem:[%s3 + $0x730] sm:$0xff]
  %v3816 = vld [vmem:[%s3 + $0x738] sm:$0xff]
  %v3817 = vld [vmem:[%s3 + $0x740] sm:$0xff]
  %v3818 = vld [vmem:[%s3 + $0x748] sm:$0xff]
  %v3819 = vld [vmem:[%s3 + $0x750] sm:$0xff]
  %v3820 = vld [vmem:[%s3 + $0x758] sm:$0xff]
  %v3821 = vld [vmem:[%s3 + $0x760] sm:$0xff]
  %v3822 = vld [vmem:[%s3 + $0x768] sm:$0xff]
  %v3823 = vld [vmem:[%s3 + $0x770] sm:$0xff]
  %v3824 = vld [vmem:[%s3 + $0x778] sm:$0xff]
  %v3825 = vsel %vm1502, %v3462, 0
  %v3827 = vsel %vm1502, %v3476, 0
  %v3829 = vsel %vm1502, %v3490, 0
  %v3831 = vsel %vm1502, %v3504, 0
  %v3833 = vsel %vm1502, %v3518, 0
  %v3835 = vsel %vm1502, %v3532, 0
  %v3837 = vsel %vm1502, %v3546, 0
  %v3839 = vsel %vm1502, %v3560, 0
  %3841 = vmatpush.msra.mxu0 %v3615
  %3842 = vmatpush.msra.mxu0 %v3613
  %3843 = vmatpush.msra.mxu0 %v3611
  %3844 = vmatpush.msra.mxu0 %v3609
  %3845 = vmatpush.msra.mxu0 %v3607
  %3846 = vmatpush.msra.mxu0 %v3605
  %3847 = vmatpush.msra.mxu0 %v3603
  %3848 = vmatpush.msra.mxu0 %v3601
  %3849 = vmatpush.msra.mxu0 %v3599
  %3850 = vmatpush.msra.mxu0 %v3597
  %3851 = vmatpush.msra.mxu0 %v3595
  %3852 = vmatpush.msra.mxu0 %v3593
  %3853 = vmatpush.msra.mxu0 %v3591
  %3854 = vmatpush.msra.mxu0 %v3589
  %3855 = vmatpush.msra.mxu0 %v3587
  %3856 = vmatpush.msra.mxu0 %v3585
  %3857 = vmatmul.f32.gmra.mxu0 %v2767
  %v3858 = vpop.f32.mrf.mxu0
  %v3859 = vadd.f32 0.0, %v3858
  %3860 = vmatmul.f32.gmra.mxu0 %v2781
  %v3861 = vpop.f32.mrf.mxu0
  %v3862 = vadd.f32 0.0, %v3861
  %3863 = vmatmul.f32.gmra.mxu0 %v2795
  %v3864 = vpop.f32.mrf.mxu0
  %v3865 = vadd.f32 0.0, %v3864
  %3866 = vmatmul.f32.gmra.mxu0 %v2809
  %v3867 = vpop.f32.mrf.mxu0
  %v3868 = vadd.f32 0.0, %v3867
  %3869 = vmatmul.f32.gmra.mxu0 %v2823
  %v3870 = vpop.f32.mrf.mxu0
  %v3871 = vadd.f32 0.0, %v3870
  %3872 = vmatmul.f32.gmra.mxu0 %v2837
  %v3873 = vpop.f32.mrf.mxu0
  %v3874 = vadd.f32 0.0, %v3873
  %3875 = vmatmul.f32.gmra.mxu0 %v2851
  %v3876 = vpop.f32.mrf.mxu0
  %v3877 = vadd.f32 0.0, %v3876
  %3878 = vmatmul.f32.gmra.mxu0 %v2865
  %v3879 = vpop.f32.mrf.mxu0
  %v3880 = vadd.f32 0.0, %v3879
  %3881 = vdwg.mxu0
  %3882 = vmatpush.msra.mxu0 %v3647
  %3883 = vmatpush.msra.mxu0 %v3645
  %3884 = vmatpush.msra.mxu0 %v3643
  %3885 = vmatpush.msra.mxu0 %v3641
  %3886 = vmatpush.msra.mxu0 %v3639
  %3887 = vmatpush.msra.mxu0 %v3637
  %3888 = vmatpush.msra.mxu0 %v3635
  %3889 = vmatpush.msra.mxu0 %v3633
  %3890 = vmatpush.msra.mxu0 %v3631
  %3891 = vmatpush.msra.mxu0 %v3629
  %3892 = vmatpush.msra.mxu0 %v3627
  %3893 = vmatpush.msra.mxu0 %v3625
  %3894 = vmatpush.msra.mxu0 %v3623
  %3895 = vmatpush.msra.mxu0 %v3621
  %3896 = vmatpush.msra.mxu0 %v3619
  %3897 = vmatpush.msra.mxu0 %v3617
  %3898 = vmatmul.f32.gmra.mxu0 %v3569
  %v3899 = vpop.f32.mrf.mxu0
  %v3900 = vadd.f32 %v3859, %v3899
  %3901 = vmatmul.f32.gmra.mxu0 %v3570
  %v3902 = vpop.f32.mrf.mxu0
  %v3903 = vadd.f32 %v3862, %v3902
  %3904 = vmatmul.f32.gmra.mxu0 %v3571
  %v3905 = vpop.f32.mrf.mxu0
  %v3906 = vadd.f32 %v3865, %v3905
  %3907 = vmatmul.f32.gmra.mxu0 %v3572
  %v3908 = vpop.f32.mrf.mxu0
  %v3909 = vadd.f32 %v3868, %v3908
  %3910 = vmatmul.f32.gmra.mxu0 %v3573
  %v3911 = vpop.f32.mrf.mxu0
  %v3912 = vadd.f32 %v3871, %v3911
  %3913 = vmatmul.f32.gmra.mxu0 %v3574
  %v3914 = vpop.f32.mrf.mxu0
  %v3915 = vadd.f32 %v3874, %v3914
  %3916 = vmatmul.f32.gmra.mxu0 %v3575
  %v3917 = vpop.f32.mrf.mxu0
  %v3918 = vadd.f32 %v3877, %v3917
  %3919 = vmatmul.f32.gmra.mxu0 %v3576
  %v3920 = vpop.f32.mrf.mxu0
  %v3921 = vadd.f32 %v3880, %v3920
  %3922 = vdwg.mxu0
  %3923 = vmatpush.msra.mxu0 %v3679
  %3924 = vmatpush.msra.mxu0 %v3677
  %3925 = vmatpush.msra.mxu0 %v3675
  %3926 = vmatpush.msra.mxu0 %v3673
  %3927 = vmatpush.msra.mxu0 %v3671
  %3928 = vmatpush.msra.mxu0 %v3669
  %3929 = vmatpush.msra.mxu0 %v3667
  %3930 = vmatpush.msra.mxu0 %v3665
  %3931 = vmatpush.msra.mxu0 %v3663
  %3932 = vmatpush.msra.mxu0 %v3661
  %3933 = vmatpush.msra.mxu0 %v3659
  %3934 = vmatpush.msra.mxu0 %v3657
  %3935 = vmatpush.msra.mxu0 %v3655
  %3936 = vmatpush.msra.mxu0 %v3653
  %3937 = vmatpush.msra.mxu0 %v3651
  %3938 = vmatpush.msra.mxu0 %v3649
  %3939 = vmatmul.f32.gmra.mxu0 %v3057
  %v3940 = vpop.f32.mrf.mxu0
  %v3941 = vadd.f32 %v3900, %v3940
  %3942 = vmatmul.f32.gmra.mxu0 %v3058
  %v3943 = vpop.f32.mrf.mxu0
  %v3944 = vadd.f32 %v3903, %v3943
  %3945 = vmatmul.f32.gmra.mxu0 %v3059
  %v3946 = vpop.f32.mrf.mxu0
  %v3947 = vadd.f32 %v3906, %v3946
  %3948 = vmatmul.f32.gmra.mxu0 %v3060
  %v3949 = vpop.f32.mrf.mxu0
  %v3950 = vadd.f32 %v3909, %v3949
  %3951 = vmatmul.f32.gmra.mxu0 %v3061
  %v3952 = vpop.f32.mrf.mxu0
  %v3953 = vadd.f32 %v3912, %v3952
  %3954 = vmatmul.f32.gmra.mxu0 %v3062
  %v3955 = vpop.f32.mrf.mxu0
  %v3956 = vadd.f32 %v3915, %v3955
  %3957 = vmatmul.f32.gmra.mxu0 %v3063
  %v3958 = vpop.f32.mrf.mxu0
  %v3959 = vadd.f32 %v3918, %v3958
  %3960 = vmatmul.f32.gmra.mxu0 %v3064
  %v3961 = vpop.f32.mrf.mxu0
  %v3962 = vadd.f32 %v3921, %v3961
  %3963 = vdwg.mxu0
  %3964 = vmatpush.msra.mxu0 %v3711
  %3965 = vmatpush.msra.mxu0 %v3709
  %3966 = vmatpush.msra.mxu0 %v3707
  %3967 = vmatpush.msra.mxu0 %v3705
  %3968 = vmatpush.msra.mxu0 %v3703
  %3969 = vmatpush.msra.mxu0 %v3701
  %3970 = vmatpush.msra.mxu0 %v3699
  %3971 = vmatpush.msra.mxu0 %v3697
  %3972 = vmatpush.msra.mxu0 %v3695
  %3973 = vmatpush.msra.mxu0 %v3693
  %3974 = vmatpush.msra.mxu0 %v3691
  %3975 = vmatpush.msra.mxu0 %v3689
  %3976 = vmatpush.msra.mxu0 %v3687
  %3977 = vmatpush.msra.mxu0 %v3685
  %3978 = vmatpush.msra.mxu0 %v3683
  %3979 = vmatpush.msra.mxu0 %v3681
  %3980 = vmatmul.f32.gmra.mxu0 %v3111
  %v3981 = vpop.f32.mrf.mxu0
  %v3982 = vadd.f32 %v3941, %v3981
  %3983 = vmatmul.f32.gmra.mxu0 %v3125
  %v3984 = vpop.f32.mrf.mxu0
  %v3985 = vadd.f32 %v3944, %v3984
  %3986 = vmatmul.f32.gmra.mxu0 %v3139
  %v3987 = vpop.f32.mrf.mxu0
  %v3988 = vadd.f32 %v3947, %v3987
  %3989 = vmatmul.f32.gmra.mxu0 %v3153
  %v3990 = vpop.f32.mrf.mxu0
  %v3991 = vadd.f32 %v3950, %v3990
  %3992 = vmatmul.f32.gmra.mxu0 %v3167
  %v3993 = vpop.f32.mrf.mxu0
  %v3994 = vadd.f32 %v3953, %v3993
  %3995 = vmatmul.f32.gmra.mxu0 %v3181
  %v3996 = vpop.f32.mrf.mxu0
  %v3997 = vadd.f32 %v3956, %v3996
  %3998 = vmatmul.f32.gmra.mxu0 %v3195
  %v3999 = vpop.f32.mrf.mxu0
  %v4000 = vadd.f32 %v3959, %v3999
  %4001 = vmatmul.f32.gmra.mxu0 %v3209
  %v4002 = vpop.f32.mrf.mxu0
  %v4003 = vadd.f32 %v3962, %v4002
  %4004 = vdwg.mxu0
  %4005 = vmatpush.msra.mxu0 %v3743
  %4006 = vmatpush.msra.mxu0 %v3741
  %4007 = vmatpush.msra.mxu0 %v3739
  %4008 = vmatpush.msra.mxu0 %v3737
  %4009 = vmatpush.msra.mxu0 %v3735
  %4010 = vmatpush.msra.mxu0 %v3733
  %4011 = vmatpush.msra.mxu0 %v3731
  %4012 = vmatpush.msra.mxu0 %v3729
  %4013 = vmatpush.msra.mxu0 %v3727
  %4014 = vmatpush.msra.mxu0 %v3725
  %4015 = vmatpush.msra.mxu0 %v3723
  %4016 = vmatpush.msra.mxu0 %v3721
  %4017 = vmatpush.msra.mxu0 %v3719
  %4018 = vmatpush.msra.mxu0 %v3717
  %4019 = vmatpush.msra.mxu0 %v3715
  %4020 = vmatpush.msra.mxu0 %v3713
  %4021 = vmatmul.f32.gmra.mxu0 %v3577
  %v4022 = vpop.f32.mrf.mxu0
  %v4023 = vadd.f32 %v3982, %v4022
  %4024 = vmatmul.f32.gmra.mxu0 %v3578
  %v4025 = vpop.f32.mrf.mxu0
  %v4026 = vadd.f32 %v3985, %v4025
  %4027 = vmatmul.f32.gmra.mxu0 %v3579
  %v4028 = vpop.f32.mrf.mxu0
  %v4029 = vadd.f32 %v3988, %v4028
  %4030 = vmatmul.f32.gmra.mxu0 %v3580
  %v4031 = vpop.f32.mrf.mxu0
  %v4032 = vadd.f32 %v3991, %v4031
  %4033 = vmatmul.f32.gmra.mxu0 %v3581
  %v4034 = vpop.f32.mrf.mxu0
  %v4035 = vadd.f32 %v3994, %v4034
  %4036 = vmatmul.f32.gmra.mxu0 %v3582
  %v4037 = vpop.f32.mrf.mxu0
  %v4038 = vadd.f32 %v3997, %v4037
  %4039 = vmatmul.f32.gmra.mxu0 %v3583
  %v4040 = vpop.f32.mrf.mxu0
  %v4041 = vadd.f32 %v4000, %v4040
  %4042 = vmatmul.f32.gmra.mxu0 %v3584
  %v4043 = vpop.f32.mrf.mxu0
  %v4044 = vadd.f32 %v4003, %v4043
  %4045 = vdwg.mxu0
  %4046 = vmatpush.msra.mxu0 %v3775
  %4047 = vmatpush.msra.mxu0 %v3773
  %4048 = vmatpush.msra.mxu0 %v3771
  %4049 = vmatpush.msra.mxu0 %v3769
  %4050 = vmatpush.msra.mxu0 %v3767
  %4051 = vmatpush.msra.mxu0 %v3765
  %4052 = vmatpush.msra.mxu0 %v3763
  %4053 = vmatpush.msra.mxu0 %v3761
  %4054 = vmatpush.msra.mxu0 %v3759
  %4055 = vmatpush.msra.mxu0 %v3757
  %4056 = vmatpush.msra.mxu0 %v3755
  %4057 = vmatpush.msra.mxu0 %v3753
  %4058 = vmatpush.msra.mxu0 %v3751
  %4059 = vmatpush.msra.mxu0 %v3749
  %4060 = vmatpush.msra.mxu0 %v3747
  %4061 = vmatpush.msra.mxu0 %v3745
  %4062 = vmatmul.f32.gmra.mxu0 %v3401
  %v4063 = vpop.f32.mrf.mxu0
  %v4064 = vadd.f32 %v4023, %v4063
  %4065 = vmatmul.f32.gmra.mxu0 %v3402
  %v4066 = vpop.f32.mrf.mxu0
  %v4067 = vadd.f32 %v4026, %v4066
  %4068 = vmatmul.f32.gmra.mxu0 %v3403
  %v4069 = vpop.f32.mrf.mxu0
  %v4070 = vadd.f32 %v4029, %v4069
  %4071 = vmatmul.f32.gmra.mxu0 %v3404
  %v4072 = vpop.f32.mrf.mxu0
  %v4073 = vadd.f32 %v4032, %v4072
  %4074 = vmatmul.f32.gmra.mxu0 %v3405
  %v4075 = vpop.f32.mrf.mxu0
  %v4076 = vadd.f32 %v4035, %v4075
  %4077 = vmatmul.f32.gmra.mxu0 %v3406
  %v4078 = vpop.f32.mrf.mxu0
  %v4079 = vadd.f32 %v4038, %v4078
  %4080 = vmatmul.f32.gmra.mxu0 %v3407
  %v4081 = vpop.f32.mrf.mxu0
  %v4082 = vadd.f32 %v4041, %v4081
  %4083 = vmatmul.f32.gmra.mxu0 %v3408
  %v4084 = vpop.f32.mrf.mxu0
  %v4085 = vadd.f32 %v4044, %v4084
  %4086 = vdwg.mxu0
  %4087 = vmatpush.msra.mxu0 %v3807
  %4088 = vmatpush.msra.mxu0 %v3805
  %4089 = vmatpush.msra.mxu0 %v3803
  %4090 = vmatpush.msra.mxu0 %v3801
  %4091 = vmatpush.msra.mxu0 %v3799
  %4092 = vmatpush.msra.mxu0 %v3797
  %4093 = vmatpush.msra.mxu0 %v3795
  %4094 = vmatpush.msra.mxu0 %v3793
  %4095 = vmatpush.msra.mxu0 %v3791
  %4096 = vmatpush.msra.mxu0 %v3789
  %4097 = vmatpush.msra.mxu0 %v3787
  %4098 = vmatpush.msra.mxu0 %v3785
  %4099 = vmatpush.msra.mxu0 %v3783
  %4100 = vmatpush.msra.mxu0 %v3781
  %4101 = vmatpush.msra.mxu0 %v3779
  %4102 = vmatpush.msra.mxu0 %v3777
  %4103 = vmatmul.f32.gmra.mxu0 %v3455
  %v4104 = vpop.f32.mrf.mxu0
  %v4105 = vadd.f32 %v4064, %v4104
  %4106 = vmatmul.f32.gmra.mxu0 %v3469
  %v4107 = vpop.f32.mrf.mxu0
  %v4108 = vadd.f32 %v4067, %v4107
  %4109 = vmatmul.f32.gmra.mxu0 %v3483
  %v4110 = vpop.f32.mrf.mxu0
  %v4111 = vadd.f32 %v4070, %v4110
  %4112 = vmatmul.f32.gmra.mxu0 %v3497
  %v4113 = vpop.f32.mrf.mxu0
  %v4114 = vadd.f32 %v4073, %v4113
  %4115 = vmatmul.f32.gmra.mxu0 %v3511
  %v4116 = vpop.f32.mrf.mxu0
  %v4117 = vadd.f32 %v4076, %v4116
  %4118 = vmatmul.f32.gmra.mxu0 %v3525
  %v4119 = vpop.f32.mrf.mxu0
  %v4120 = vadd.f32 %v4079, %v4119
  %4121 = vmatmul.f32.gmra.mxu0 %v3539
  %v4122 = vpop.f32.mrf.mxu0
  %v4123 = vadd.f32 %v4082, %v4122
  %4124 = vmatmul.f32.gmra.mxu0 %v3553
  %v4125 = vpop.f32.mrf.mxu0
  %v4126 = vadd.f32 %v4085, %v4125
  %4127 = vdwg.mxu0
  %4128 = vmatpush.msra.mxu0 0.0
  %4129 = vmatpush.msra.mxu0 0.0
  %4130 = vmatpush.msra.mxu0 0.0
  %4131 = vmatpush.msra.mxu0 0.0
  %4132 = vmatpush.msra.mxu0 0.0
  %4133 = vmatpush.msra.mxu0 0.0
  %4134 = vmatpush.msra.mxu0 0.0
  %4135 = vmatpush.msra.mxu0 0.0
  %4136 = vmatpush.msra.mxu0 %v3823
  %4137 = vmatpush.msra.mxu0 %v3821
  %4138 = vmatpush.msra.mxu0 %v3819
  %4139 = vmatpush.msra.mxu0 %v3817
  %4140 = vmatpush.msra.mxu0 %v3815
  %4141 = vmatpush.msra.mxu0 %v3813
  %4142 = vmatpush.msra.mxu0 %v3811
  %4143 = vmatpush.msra.mxu0 %v3809
  %4144 = vmatmul.f32.gmra.mxu0 %v3825
  %v4145 = vpop.f32.mrf.mxu0
  %v4146 = vadd.f32 %v4105, %v4145
  %4147 = vmatmul.f32.gmra.mxu0 %v3827
  %v4148 = vpop.f32.mrf.mxu0
  %v4149 = vadd.f32 %v4108, %v4148
  %4150 = vmatmul.f32.gmra.mxu0 %v3829
  %v4151 = vpop.f32.mrf.mxu0
  %v4152 = vadd.f32 %v4111, %v4151
  %4153 = vmatmul.f32.gmra.mxu0 %v3831
  %v4154 = vpop.f32.mrf.mxu0
  %v4155 = vadd.f32 %v4114, %v4154
  %4156 = vmatmul.f32.gmra.mxu0 %v3833
  %v4157 = vpop.f32.mrf.mxu0
  %v4158 = vadd.f32 %v4117, %v4157
  %4159 = vmatmul.f32.gmra.mxu0 %v3835
  %v4160 = vpop.f32.mrf.mxu0
  %v4161 = vadd.f32 %v4120, %v4160
  %4162 = vmatmul.f32.gmra.mxu0 %v3837
  %v4163 = vpop.f32.mrf.mxu0
  %v4164 = vadd.f32 %v4123, %v4163
  %4165 = vmatmul.f32.gmra.mxu0 %v3839
  %v4166 = vpop.f32.mrf.mxu0
  %v4167 = vadd.f32 %v4126, %v4166
  %4168 = vdwg.mxu0
  %4169 = vmatpush.msra.mxu0 %v3616
  %4170 = vmatpush.msra.mxu0 %v3614
  %4171 = vmatpush.msra.mxu0 %v3612
  %4172 = vmatpush.msra.mxu0 %v3610
  %4173 = vmatpush.msra.mxu0 %v3608
  %4174 = vmatpush.msra.mxu0 %v3606
  %4175 = vmatpush.msra.mxu0 %v3604
  %4176 = vmatpush.msra.mxu0 %v3602
  %4177 = vmatpush.msra.mxu0 %v3600
  %4178 = vmatpush.msra.mxu0 %v3598
  %4179 = vmatpush.msra.mxu0 %v3596
  %4180 = vmatpush.msra.mxu0 %v3594
  %4181 = vmatpush.msra.mxu0 %v3592
  %4182 = vmatpush.msra.mxu0 %v3590
  %4183 = vmatpush.msra.mxu0 %v3588
  %4184 = vmatpush.msra.mxu0 %v3586
  %4185 = vmatmul.f32.gmra.mxu0 %v2767
  %v4186 = vpop.f32.mrf.mxu0
  %v4187 = vadd.f32 0.0, %v4186
  %4188 = vmatmul.f32.gmra.mxu0 %v2781
  %v4189 = vpop.f32.mrf.mxu0
  %v4190 = vadd.f32 0.0, %v4189
  %4191 = vmatmul.f32.gmra.mxu0 %v2795
  %v4192 = vpop.f32.mrf.mxu0
  %v4193 = vadd.f32 0.0, %v4192
  %4194 = vmatmul.f32.gmra.mxu0 %v2809
  %v4195 = vpop.f32.mrf.mxu0
  %v4196 = vadd.f32 0.0, %v4195
  %4197 = vmatmul.f32.gmra.mxu0 %v2823
  %v4198 = vpop.f32.mrf.mxu0
  %v4199 = vadd.f32 0.0, %v4198
  %4200 = vmatmul.f32.gmra.mxu0 %v2837
  %v4201 = vpop.f32.mrf.mxu0
  %v4202 = vadd.f32 0.0, %v4201
  %4203 = vmatmul.f32.gmra.mxu0 %v2851
  %v4204 = vpop.f32.mrf.mxu0
  %v4205 = vadd.f32 0.0, %v4204
  %4206 = vmatmul.f32.gmra.mxu0 %v2865
  %v4207 = vpop.f32.mrf.mxu0
  %v4208 = vadd.f32 0.0, %v4207
  %4209 = vdwg.mxu0
  %4210 = vmatpush.msra.mxu0 %v3648
  %4211 = vmatpush.msra.mxu0 %v3646
  %4212 = vmatpush.msra.mxu0 %v3644
  %4213 = vmatpush.msra.mxu0 %v3642
  %4214 = vmatpush.msra.mxu0 %v3640
  %4215 = vmatpush.msra.mxu0 %v3638
  %4216 = vmatpush.msra.mxu0 %v3636
  %4217 = vmatpush.msra.mxu0 %v3634
  %4218 = vmatpush.msra.mxu0 %v3632
  %4219 = vmatpush.msra.mxu0 %v3630
  %4220 = vmatpush.msra.mxu0 %v3628
  %4221 = vmatpush.msra.mxu0 %v3626
  %4222 = vmatpush.msra.mxu0 %v3624
  %4223 = vmatpush.msra.mxu0 %v3622
  %4224 = vmatpush.msra.mxu0 %v3620
  %4225 = vmatpush.msra.mxu0 %v3618
  %4226 = vmatmul.f32.gmra.mxu0 %v3569
  %v4227 = vpop.f32.mrf.mxu0
  %v4228 = vadd.f32 %v4187, %v4227
  %4229 = vmatmul.f32.gmra.mxu0 %v3570
  %v4230 = vpop.f32.mrf.mxu0
  %v4231 = vadd.f32 %v4190, %v4230
  %4232 = vmatmul.f32.gmra.mxu0 %v3571
  %v4233 = vpop.f32.mrf.mxu0
  %v4234 = vadd.f32 %v4193, %v4233
  %4235 = vmatmul.f32.gmra.mxu0 %v3572
  %v4236 = vpop.f32.mrf.mxu0
  %v4237 = vadd.f32 %v4196, %v4236
  %4238 = vmatmul.f32.gmra.mxu0 %v3573
  %v4239 = vpop.f32.mrf.mxu0
  %v4240 = vadd.f32 %v4199, %v4239
  %4241 = vmatmul.f32.gmra.mxu0 %v3574
  %v4242 = vpop.f32.mrf.mxu0
  %v4243 = vadd.f32 %v4202, %v4242
  %4244 = vmatmul.f32.gmra.mxu0 %v3575
  %v4245 = vpop.f32.mrf.mxu0
  %v4246 = vadd.f32 %v4205, %v4245
  %4247 = vmatmul.f32.gmra.mxu0 %v3576
  %v4248 = vpop.f32.mrf.mxu0
  %v4249 = vadd.f32 %v4208, %v4248
  %4250 = vdwg.mxu0
  %4251 = vmatpush.msra.mxu0 %v3680
  %4252 = vmatpush.msra.mxu0 %v3678
  %4253 = vmatpush.msra.mxu0 %v3676
  %4254 = vmatpush.msra.mxu0 %v3674
  %4255 = vmatpush.msra.mxu0 %v3672
  %4256 = vmatpush.msra.mxu0 %v3670
  %4257 = vmatpush.msra.mxu0 %v3668
  %4258 = vmatpush.msra.mxu0 %v3666
  %4259 = vmatpush.msra.mxu0 %v3664
  %4260 = vmatpush.msra.mxu0 %v3662
  %4261 = vmatpush.msra.mxu0 %v3660
  %4262 = vmatpush.msra.mxu0 %v3658
  %4263 = vmatpush.msra.mxu0 %v3656
  %4264 = vmatpush.msra.mxu0 %v3654
  %4265 = vmatpush.msra.mxu0 %v3652
  %4266 = vmatpush.msra.mxu0 %v3650
  %4267 = vmatmul.f32.gmra.mxu0 %v3057
  %v4268 = vpop.f32.mrf.mxu0
  %v4269 = vadd.f32 %v4228, %v4268
  %4270 = vmatmul.f32.gmra.mxu0 %v3058
  %v4271 = vpop.f32.mrf.mxu0
  %v4272 = vadd.f32 %v4231, %v4271
  %4273 = vmatmul.f32.gmra.mxu0 %v3059
  %v4274 = vpop.f32.mrf.mxu0
  %v4275 = vadd.f32 %v4234, %v4274
  %4276 = vmatmul.f32.gmra.mxu0 %v3060
  %v4277 = vpop.f32.mrf.mxu0
  %v4278 = vadd.f32 %v4237, %v4277
  %4279 = vmatmul.f32.gmra.mxu0 %v3061
  %v4280 = vpop.f32.mrf.mxu0
  %v4281 = vadd.f32 %v4240, %v4280
  %4282 = vmatmul.f32.gmra.mxu0 %v3062
  %v4283 = vpop.f32.mrf.mxu0
  %v4284 = vadd.f32 %v4243, %v4283
  %4285 = vmatmul.f32.gmra.mxu0 %v3063
  %v4286 = vpop.f32.mrf.mxu0
  %v4287 = vadd.f32 %v4246, %v4286
  %4288 = vmatmul.f32.gmra.mxu0 %v3064
  %v4289 = vpop.f32.mrf.mxu0
  %v4290 = vadd.f32 %v4249, %v4289
  %4291 = vdwg.mxu0
  %4292 = vmatpush.msra.mxu0 %v3712
  %4293 = vmatpush.msra.mxu0 %v3710
  %4294 = vmatpush.msra.mxu0 %v3708
  %4295 = vmatpush.msra.mxu0 %v3706
  %4296 = vmatpush.msra.mxu0 %v3704
  %4297 = vmatpush.msra.mxu0 %v3702
  %4298 = vmatpush.msra.mxu0 %v3700
  %4299 = vmatpush.msra.mxu0 %v3698
  %4300 = vmatpush.msra.mxu0 %v3696
  %4301 = vmatpush.msra.mxu0 %v3694
  %4302 = vmatpush.msra.mxu0 %v3692
  %4303 = vmatpush.msra.mxu0 %v3690
  %4304 = vmatpush.msra.mxu0 %v3688
  %4305 = vmatpush.msra.mxu0 %v3686
  %4306 = vmatpush.msra.mxu0 %v3684
  %4307 = vmatpush.msra.mxu0 %v3682
  %4308 = vmatmul.f32.gmra.mxu0 %v3111
  %v4309 = vpop.f32.mrf.mxu0
  %v4310 = vadd.f32 %v4269, %v4309
  %4311 = vmatmul.f32.gmra.mxu0 %v3125
  %v4312 = vpop.f32.mrf.mxu0
  %v4313 = vadd.f32 %v4272, %v4312
  %4314 = vmatmul.f32.gmra.mxu0 %v3139
  %v4315 = vpop.f32.mrf.mxu0
  %v4316 = vadd.f32 %v4275, %v4315
  %4317 = vmatmul.f32.gmra.mxu0 %v3153
  %v4318 = vpop.f32.mrf.mxu0
  %v4319 = vadd.f32 %v4278, %v4318
  %4320 = vmatmul.f32.gmra.mxu0 %v3167
  %v4321 = vpop.f32.mrf.mxu0
  %v4322 = vadd.f32 %v4281, %v4321
  %4323 = vmatmul.f32.gmra.mxu0 %v3181
  %v4324 = vpop.f32.mrf.mxu0
  %v4325 = vadd.f32 %v4284, %v4324
  %4326 = vmatmul.f32.gmra.mxu0 %v3195
  %v4327 = vpop.f32.mrf.mxu0
  %v4328 = vadd.f32 %v4287, %v4327
  %4329 = vmatmul.f32.gmra.mxu0 %v3209
  %v4330 = vpop.f32.mrf.mxu0
  %v4331 = vadd.f32 %v4290, %v4330
  %4332 = vdwg.mxu0
  %4333 = vmatpush.msra.mxu0 %v3744
  %4334 = vmatpush.msra.mxu0 %v3742
  %4335 = vmatpush.msra.mxu0 %v3740
  %4336 = vmatpush.msra.mxu0 %v3738
  %4337 = vmatpush.msra.mxu0 %v3736
  %4338 = vmatpush.msra.mxu0 %v3734
  %4339 = vmatpush.msra.mxu0 %v3732
  %4340 = vmatpush.msra.mxu0 %v3730
  %4341 = vmatpush.msra.mxu0 %v3728
  %4342 = vmatpush.msra.mxu0 %v3726
  %4343 = vmatpush.msra.mxu0 %v3724
  %4344 = vmatpush.msra.mxu0 %v3722
  %4345 = vmatpush.msra.mxu0 %v3720
  %4346 = vmatpush.msra.mxu0 %v3718
  %4347 = vmatpush.msra.mxu0 %v3716
  %4348 = vmatpush.msra.mxu0 %v3714
  %4349 = vmatmul.f32.gmra.mxu0 %v3577
  %v4350 = vpop.f32.mrf.mxu0
  %v4351 = vadd.f32 %v4310, %v4350
  %4352 = vmatmul.f32.gmra.mxu0 %v3578
  %v4353 = vpop.f32.mrf.mxu0
  %v4354 = vadd.f32 %v4313, %v4353
  %4355 = vmatmul.f32.gmra.mxu0 %v3579
  %v4356 = vpop.f32.mrf.mxu0
  %v4357 = vadd.f32 %v4316, %v4356
  %4358 = vmatmul.f32.gmra.mxu0 %v3580
  %v4359 = vpop.f32.mrf.mxu0
  %v4360 = vadd.f32 %v4319, %v4359
  %4361 = vmatmul.f32.gmra.mxu0 %v3581
  %v4362 = vpop.f32.mrf.mxu0
  %v4363 = vadd.f32 %v4322, %v4362
  %4364 = vmatmul.f32.gmra.mxu0 %v3582
  %v4365 = vpop.f32.mrf.mxu0
  %v4366 = vadd.f32 %v4325, %v4365
  %4367 = vmatmul.f32.gmra.mxu0 %v3583
  %v4368 = vpop.f32.mrf.mxu0
  %v4369 = vadd.f32 %v4328, %v4368
  %4370 = vmatmul.f32.gmra.mxu0 %v3584
  %v4371 = vpop.f32.mrf.mxu0
  %v4372 = vadd.f32 %v4331, %v4371
  %4373 = vdwg.mxu0
  %4374 = vmatpush.msra.mxu0 %v3776
  %4375 = vmatpush.msra.mxu0 %v3774
  %4376 = vmatpush.msra.mxu0 %v3772
  %4377 = vmatpush.msra.mxu0 %v3770
  %4378 = vmatpush.msra.mxu0 %v3768
  %4379 = vmatpush.msra.mxu0 %v3766
  %4380 = vmatpush.msra.mxu0 %v3764
  %4381 = vmatpush.msra.mxu0 %v3762
  %4382 = vmatpush.msra.mxu0 %v3760
  %4383 = vmatpush.msra.mxu0 %v3758
  %4384 = vmatpush.msra.mxu0 %v3756
  %4385 = vmatpush.msra.mxu0 %v3754
  %4386 = vmatpush.msra.mxu0 %v3752
  %4387 = vmatpush.msra.mxu0 %v3750
  %4388 = vmatpush.msra.mxu0 %v3748
  %4389 = vmatpush.msra.mxu0 %v3746
  %4390 = vmatmul.f32.gmra.mxu0 %v3401
  %v4391 = vpop.f32.mrf.mxu0
  %v4392 = vadd.f32 %v4351, %v4391
  %4393 = vmatmul.f32.gmra.mxu0 %v3402
  %v4394 = vpop.f32.mrf.mxu0
  %v4395 = vadd.f32 %v4354, %v4394
  %4396 = vmatmul.f32.gmra.mxu0 %v3403
  %v4397 = vpop.f32.mrf.mxu0
  %v4398 = vadd.f32 %v4357, %v4397
  %4399 = vmatmul.f32.gmra.mxu0 %v3404
  %v4400 = vpop.f32.mrf.mxu0
  %v4401 = vadd.f32 %v4360, %v4400
  %4402 = vmatmul.f32.gmra.mxu0 %v3405
  %v4403 = vpop.f32.mrf.mxu0
  %v4404 = vadd.f32 %v4363, %v4403
  %4405 = vmatmul.f32.gmra.mxu0 %v3406
  %v4406 = vpop.f32.mrf.mxu0
  %v4407 = vadd.f32 %v4366, %v4406
  %4408 = vmatmul.f32.gmra.mxu0 %v3407
  %v4409 = vpop.f32.mrf.mxu0
  %v4410 = vadd.f32 %v4369, %v4409
  %4411 = vmatmul.f32.gmra.mxu0 %v3408
  %v4412 = vpop.f32.mrf.mxu0
  %v4413 = vadd.f32 %v4372, %v4412
  %4414 = vdwg.mxu0
  %4415 = vmatpush.msra.mxu0 %v3808
  %4416 = vmatpush.msra.mxu0 %v3806
  %4417 = vmatpush.msra.mxu0 %v3804
  %4418 = vmatpush.msra.mxu0 %v3802
  %4419 = vmatpush.msra.mxu0 %v3800
  %4420 = vmatpush.msra.mxu0 %v3798
  %4421 = vmatpush.msra.mxu0 %v3796
  %4422 = vmatpush.msra.mxu0 %v3794
  %4423 = vmatpush.msra.mxu0 %v3792
  %4424 = vmatpush.msra.mxu0 %v3790
  %4425 = vmatpush.msra.mxu0 %v3788
  %4426 = vmatpush.msra.mxu0 %v3786
  %4427 = vmatpush.msra.mxu0 %v3784
  %4428 = vmatpush.msra.mxu0 %v3782
  %4429 = vmatpush.msra.mxu0 %v3780
  %4430 = vmatpush.msra.mxu0 %v3778
  %4431 = vmatmul.f32.gmra.mxu0 %v3455
  %v4432 = vpop.f32.mrf.mxu0
  %v4433 = vadd.f32 %v4392, %v4432
  %4434 = vmatmul.f32.gmra.mxu0 %v3469
  %v4435 = vpop.f32.mrf.mxu0
  %v4436 = vadd.f32 %v4395, %v4435
  %4437 = vmatmul.f32.gmra.mxu0 %v3483
  %v4438 = vpop.f32.mrf.mxu0
  %v4439 = vadd.f32 %v4398, %v4438
  %4440 = vmatmul.f32.gmra.mxu0 %v3497
  %v4441 = vpop.f32.mrf.mxu0
  %v4442 = vadd.f32 %v4401, %v4441
  %4443 = vmatmul.f32.gmra.mxu0 %v3511
  %v4444 = vpop.f32.mrf.mxu0
  %v4445 = vadd.f32 %v4404, %v4444
  %4446 = vmatmul.f32.gmra.mxu0 %v3525
  %v4447 = vpop.f32.mrf.mxu0
  %v4448 = vadd.f32 %v4407, %v4447
  %4449 = vmatmul.f32.gmra.mxu0 %v3539
  %v4450 = vpop.f32.mrf.mxu0
  %v4451 = vadd.f32 %v4410, %v4450
  %4452 = vmatmul.f32.gmra.mxu0 %v3553
  %v4453 = vpop.f32.mrf.mxu0
  %v4454 = vadd.f32 %v4413, %v4453
  %4455 = vdwg.mxu0
  %4456 = vmatpush.msra.mxu0 0.0
  %4457 = vmatpush.msra.mxu0 0.0
  %4458 = vmatpush.msra.mxu0 0.0
  %4459 = vmatpush.msra.mxu0 0.0
  %4460 = vmatpush.msra.mxu0 0.0
  %4461 = vmatpush.msra.mxu0 0.0
  %4462 = vmatpush.msra.mxu0 0.0
  %4463 = vmatpush.msra.mxu0 0.0
  %4464 = vmatpush.msra.mxu0 %v3824
  %4465 = vmatpush.msra.mxu0 %v3822
  %4466 = vmatpush.msra.mxu0 %v3820
  %4467 = vmatpush.msra.mxu0 %v3818
  %4468 = vmatpush.msra.mxu0 %v3816
  %4469 = vmatpush.msra.mxu0 %v3814
  %4470 = vmatpush.msra.mxu0 %v3812
  %4471 = vmatpush.msra.mxu0 %v3810
  %4472 = vmatmul.f32.gmra.mxu0 %v3825
  %v4473 = vpop.f32.mrf.mxu0
  %v4474 = vadd.f32 %v4433, %v4473
  %4475 = vmatmul.f32.gmra.mxu0 %v3827
  %v4476 = vpop.f32.mrf.mxu0
  %v4477 = vadd.f32 %v4436, %v4476
  %4478 = vmatmul.f32.gmra.mxu0 %v3829
  %v4479 = vpop.f32.mrf.mxu0
  %v4480 = vadd.f32 %v4439, %v4479
  %4481 = vmatmul.f32.gmra.mxu0 %v3831
  %v4482 = vpop.f32.mrf.mxu0
  %v4483 = vadd.f32 %v4442, %v4482
  %4484 = vmatmul.f32.gmra.mxu0 %v3833
  %v4485 = vpop.f32.mrf.mxu0
  %v4486 = vadd.f32 %v4445, %v4485
  %4487 = vmatmul.f32.gmra.mxu0 %v3835
  %v4488 = vpop.f32.mrf.mxu0
  %v4489 = vadd.f32 %v4448, %v4488
  %4490 = vmatmul.f32.gmra.mxu0 %v3837
  %v4491 = vpop.f32.mrf.mxu0
  %v4492 = vadd.f32 %v4451, %v4491
  %4493 = vmatmul.f32.gmra.mxu0 %v3839
  %v4494 = vpop.f32.mrf.mxu0
  %v4495 = vadd.f32 %v4454, %v4494
  %4496 = vdwg.mxu0
  %v4497 = vmax.f32 %v4146, %v4474
  %v4498 = vmax.f32 %v4149, %v4477
  %v4499 = vmax.f32 %v4152, %v4480
  %v4500 = vmax.f32 %v4155, %v4483
  %v4501 = vmax.f32 %v4158, %v4486
  %v4502 = vmax.f32 %v4161, %v4489
  %v4503 = vmax.f32 %v4164, %v4492
  %v4504 = vmax.f32 %v4167, %v4495
  %v4513 = vrot.slane %v4497, 2
  %v4514 = vrot.slane %v4497, 4
  %v4515 = vrot.slane %v4497, 6
  %v4516 = vrot.slane %v4498, 2
  %v4517 = vrot.slane %v4498, 4
  %v4518 = vrot.slane %v4498, 6
  %v4519 = vrot.slane %v4499, 2
  %v4520 = vrot.slane %v4499, 4
  %v4521 = vrot.slane %v4499, 6
  %v4522 = vrot.slane %v4500, 2
  %v4523 = vrot.slane %v4500, 4
  %v4524 = vrot.slane %v4500, 6
  %v4525 = vrot.slane %v4501, 2
  %v4526 = vrot.slane %v4501, 4
  %v4527 = vrot.slane %v4501, 6
  %v4528 = vrot.slane %v4502, 2
  %v4529 = vrot.slane %v4502, 4
  %v4530 = vrot.slane %v4502, 6
  %v4531 = vrot.slane %v4503, 2
  %v4532 = vrot.slane %v4503, 4
  %v4533 = vrot.slane %v4503, 6
  %v4534 = vrot.slane %v4504, 2
  %v4535 = vrot.slane %v4504, 4
  %v4536 = vrot.slane %v4504, 6
  %v4561 = vrot.slane %v4497, 7
  %v4562 = vrot.slane %v4561, 2
  %v4563 = vrot.slane %v4513, 7
  %v4564 = vrot.slane %v4563, 2
  %v4565 = vrot.slane %v4514, 7
  %v4566 = vrot.slane %v4565, 2
  %v4567 = vrot.slane %v4515, 7
  %v4568 = vrot.slane %v4567, 2
  %v4569 = vrot.slane %v4498, 7
  %v4570 = vrot.slane %v4569, 2
  %v4571 = vrot.slane %v4516, 7
  %v4572 = vrot.slane %v4571, 2
  %v4573 = vrot.slane %v4517, 7
  %v4574 = vrot.slane %v4573, 2
  %v4575 = vrot.slane %v4518, 7
  %v4576 = vrot.slane %v4575, 2
  %v4577 = vrot.slane %v4499, 7
  %v4578 = vrot.slane %v4577, 2
  %v4579 = vrot.slane %v4519, 7
  %v4580 = vrot.slane %v4579, 2
  %v4581 = vrot.slane %v4520, 7
  %v4582 = vrot.slane %v4581, 2
  %v4583 = vrot.slane %v4521, 7
  %v4584 = vrot.slane %v4583, 2
  %v4585 = vrot.slane %v4500, 7
  %v4586 = vrot.slane %v4585, 2
  %v4587 = vrot.slane %v4522, 7
  %v4588 = vrot.slane %v4587, 2
  %v4589 = vrot.slane %v4523, 7
  %v4590 = vrot.slane %v4589, 2
  %v4591 = vrot.slane %v4524, 7
  %v4592 = vrot.slane %v4591, 2
  %v4593 = vrot.slane %v4501, 7
  %v4594 = vrot.slane %v4593, 2
  %v4595 = vrot.slane %v4525, 7
  %v4596 = vrot.slane %v4595, 2
  %v4597 = vrot.slane %v4526, 7
  %v4598 = vrot.slane %v4597, 2
  %v4599 = vrot.slane %v4527, 7
  %v4600 = vrot.slane %v4599, 2
  %v4601 = vrot.slane %v4502, 7
  %v4602 = vrot.slane %v4601, 2
  %v4603 = vrot.slane %v4528, 7
  %v4604 = vrot.slane %v4603, 2
  %v4605 = vrot.slane %v4529, 7
  %v4606 = vrot.slane %v4605, 2
  %v4607 = vrot.slane %v4530, 7
  %v4608 = vrot.slane %v4607, 2
  %v4609 = vrot.slane %v4503, 7
  %v4610 = vrot.slane %v4609, 2
  %v4611 = vrot.slane %v4531, 7
  %v4612 = vrot.slane %v4611, 2
  %v4613 = vrot.slane %v4532, 7
  %v4614 = vrot.slane %v4613, 2
  %v4615 = vrot.slane %v4533, 7
  %v4616 = vrot.slane %v4615, 2
  %v4617 = vrot.slane %v4504, 7
  %v4618 = vrot.slane %v4617, 2
  %v4619 = vrot.slane %v4534, 7
  %v4620 = vrot.slane %v4619, 2
  %v4621 = vrot.slane %v4535, 7
  %v4622 = vrot.slane %v4621, 2
  %v4623 = vrot.slane %v4536, 7
  %v4624 = vrot.slane %v4623, 2
  %v4657 = vmax.f32 %v4497, %v4562
  %v4658 = vmax.f32 %v4513, %v4564
  %v4659 = vmax.f32 %v4514, %v4566
  %v4660 = vmax.f32 %v4515, %v4568
  %v4661 = vmax.f32 %v4498, %v4570
  %v4662 = vmax.f32 %v4516, %v4572
  %v4663 = vmax.f32 %v4517, %v4574
  %v4664 = vmax.f32 %v4518, %v4576
  %v4665 = vmax.f32 %v4499, %v4578
  %v4666 = vmax.f32 %v4519, %v4580
  %v4667 = vmax.f32 %v4520, %v4582
  %v4668 = vmax.f32 %v4521, %v4584
  %v4669 = vmax.f32 %v4500, %v4586
  %v4670 = vmax.f32 %v4522, %v4588
  %v4671 = vmax.f32 %v4523, %v4590
  %v4672 = vmax.f32 %v4524, %v4592
  %v4673 = vmax.f32 %v4501, %v4594
  %v4674 = vmax.f32 %v4525, %v4596
  %v4675 = vmax.f32 %v4526, %v4598
  %v4676 = vmax.f32 %v4527, %v4600
  %v4677 = vmax.f32 %v4502, %v4602
  %v4678 = vmax.f32 %v4528, %v4604
  %v4679 = vmax.f32 %v4529, %v4606
  %v4680 = vmax.f32 %v4530, %v4608
  %v4681 = vmax.f32 %v4503, %v4610
  %v4682 = vmax.f32 %v4531, %v4612
  %v4683 = vmax.f32 %v4532, %v4614
  %v4684 = vmax.f32 %v4533, %v4616
  %v4685 = vmax.f32 %v4504, %v4618
  %v4686 = vmax.f32 %v4534, %v4620
  %v4687 = vmax.f32 %v4535, %v4622
  %v4688 = vmax.f32 %v4536, %v4624
  %v4689 = vld [vmem:[%s4] sm:$0x1]
  %v4691 = vperm.slane %v4689, 0
  %v4692 = vrot.slane %v4691, 2
  %v4693 = vrot.slane %v4691, 4
  %v4694 = vrot.slane %v4691, 6
  %v4695 = vrot.slane %v4691, 1
  %v4696 = vrot.slane %v4692, 1
  %v4697 = vrot.slane %v4693, 1
  %v4698 = vrot.slane %v4694, 1
  %v4707 = vadd.f32 %v4657, %v4691
  %v4708 = vadd.f32 %v4658, %v4695
  %v4709 = vadd.f32 %v4659, %v4692
  %v4710 = vadd.f32 %v4660, %v4696
  %v4711 = vadd.f32 %v4661, %v4693
  %v4712 = vadd.f32 %v4662, %v4697
  %v4713 = vadd.f32 %v4663, %v4694
  %v4714 = vadd.f32 %v4664, %v4698
  %v4715 = vadd.f32 %v4665, %v4691
  %v4716 = vadd.f32 %v4666, %v4695
  %v4717 = vadd.f32 %v4667, %v4692
  %v4718 = vadd.f32 %v4668, %v4696
  %v4719 = vadd.f32 %v4669, %v4693
  %v4720 = vadd.f32 %v4670, %v4697
  %v4721 = vadd.f32 %v4671, %v4694
  %v4722 = vadd.f32 %v4672, %v4698
  %v4723 = vadd.f32 %v4673, %v4691
  %v4724 = vadd.f32 %v4674, %v4695
  %v4725 = vadd.f32 %v4675, %v4692
  %v4726 = vadd.f32 %v4676, %v4696
  %v4727 = vadd.f32 %v4677, %v4693
  %v4728 = vadd.f32 %v4678, %v4697
  %v4729 = vadd.f32 %v4679, %v4694
  %v4730 = vadd.f32 %v4680, %v4698
  %v4731 = vadd.f32 %v4681, %v4691
  %v4732 = vadd.f32 %v4682, %v4695
  %v4733 = vadd.f32 %v4683, %v4692
  %v4734 = vadd.f32 %v4684, %v4696
  %v4735 = vadd.f32 %v4685, %v4693
  %v4736 = vadd.f32 %v4686, %v4697
  %v4737 = vadd.f32 %v4687, %v4694
  %v4738 = vadd.f32 %v4688, %v4698
  %v4739 = vmax.f32 %v4707, 0.0
  %v4740 = vmax.f32 %v4708, 0.0
  %v4741 = vmax.f32 %v4709, 0.0
  %v4742 = vmax.f32 %v4710, 0.0
  %v4743 = vmax.f32 %v4711, 0.0
  %v4744 = vmax.f32 %v4712, 0.0
  %v4745 = vmax.f32 %v4713, 0.0
  %v4746 = vmax.f32 %v4714, 0.0
  %v4747 = vmax.f32 %v4715, 0.0
  %v4748 = vmax.f32 %v4716, 0.0
  %v4749 = vmax.f32 %v4717, 0.0
  %v4750 = vmax.f32 %v4718, 0.0
  %v4751 = vmax.f32 %v4719, 0.0
  %v4752 = vmax.f32 %v4720, 0.0
  %v4753 = vmax.f32 %v4721, 0.0
  %v4754 = vmax.f32 %v4722, 0.0
  %v4755 = vmax.f32 %v4723, 0.0
  %v4756 = vmax.f32 %v4724, 0.0
  %v4757 = vmax.f32 %v4725, 0.0
  %v4758 = vmax.f32 %v4726, 0.0
  %v4759 = vmax.f32 %v4727, 0.0
  %v4760 = vmax.f32 %v4728, 0.0
  %v4761 = vmax.f32 %v4729, 0.0
  %v4762 = vmax.f32 %v4730, 0.0
  %v4763 = vmax.f32 %v4731, 0.0
  %v4764 = vmax.f32 %v4732, 0.0
  %v4765 = vmax.f32 %v4733, 0.0
  %v4766 = vmax.f32 %v4734, 0.0
  %v4767 = vmax.f32 %v4735, 0.0
  %v4768 = vmax.f32 %v4736, 0.0
  %v4769 = vmax.f32 %v4737, 0.0
  %v4770 = vmax.f32 %v4738, 0.0
  %v4803 = vperm.slane %v4739, 0
  %v4804 = vperm.slane %v4740, 0
  %v4805 = vperm.slane %v4741, 0
  %v4806 = vperm.slane %v4742, 0
  %v4807 = vperm.slane %v4743, 0
  %v4808 = vperm.slane %v4744, 0
  %v4809 = vperm.slane %v4745, 0
  %v4810 = vperm.slane %v4746, 0
  %v4811 = vperm.slane %v4747, 0
  %v4812 = vperm.slane %v4748, 0
  %v4813 = vperm.slane %v4749, 0
  %v4814 = vperm.slane %v4750, 0
  %v4815 = vperm.slane %v4751, 0
  %v4816 = vperm.slane %v4752, 0
  %v4817 = vperm.slane %v4753, 0
  %v4818 = vperm.slane %v4754, 0
  %v4819 = vperm.slane %v4755, 0
  %v4820 = vperm.slane %v4756, 0
  %v4821 = vperm.slane %v4757, 0
  %v4822 = vperm.slane %v4758, 0
  %v4823 = vperm.slane %v4759, 0
  %v4824 = vperm.slane %v4760, 0
  %v4825 = vperm.slane %v4761, 0
  %v4826 = vperm.slane %v4762, 0
  %v4827 = vperm.slane %v4763, 0
  %v4828 = vperm.slane %v4764, 0
  %v4829 = vperm.slane %v4765, 0
  %v4830 = vperm.slane %v4766, 0
  %v4831 = vperm.slane %v4767, 0
  %v4832 = vperm.slane %v4768, 0
  %v4833 = vperm.slane %v4769, 0
  %v4834 = vperm.slane %v4770, 0
  %v4835 = vsel %vm2754, %v4804, %v4803
  %v4836 = vsel %vm2756, %v4805, %v4835
  %v4837 = vsel %vm2758, %v4806, %v4836
  %v4838 = vsel %vm2760, %v4807, %v4837
  %v4839 = vsel %vm2762, %v4808, %v4838
  %v4840 = vsel %vm2764, %v4809, %v4839
  %v4841 = vsel %vm2766, %v4810, %v4840
  %v4842 = vsel %vm2754, %v4812, %v4811
  %v4843 = vsel %vm2756, %v4813, %v4842
  %v4844 = vsel %vm2758, %v4814, %v4843
  %v4845 = vsel %vm2760, %v4815, %v4844
  %v4846 = vsel %vm2762, %v4816, %v4845
  %v4847 = vsel %vm2764, %v4817, %v4846
  %v4848 = vsel %vm2766, %v4818, %v4847
  %v4849 = vsel %vm2754, %v4820, %v4819
  %v4850 = vsel %vm2756, %v4821, %v4849
  %v4851 = vsel %vm2758, %v4822, %v4850
  %v4852 = vsel %vm2760, %v4823, %v4851
  %v4853 = vsel %vm2762, %v4824, %v4852
  %v4854 = vsel %vm2764, %v4825, %v4853
  %v4855 = vsel %vm2766, %v4826, %v4854
  %v4856 = vsel %vm2754, %v4828, %v4827
  %v4857 = vsel %vm2756, %v4829, %v4856
  %v4858 = vsel %vm2758, %v4830, %v4857
  %v4859 = vsel %vm2760, %v4831, %v4858
  %v4860 = vsel %vm2762, %v4832, %v4859
  %v4861 = vsel %vm2764, %v4833, %v4860
  %v4862 = vsel %vm2766, %v4834, %v4861
  %v4868 = vunpack.c.l.s4 1935823168
  %v4869 = vunpack.c.0.s8 %v4868
  %v4870 = vperm.slane %v4841, %v4869
  %v4872 = vunpack.c.l.s4 1935823168
  %v4873 = vunpack.c.0.s8 %v4872
  %v4874 = vperm.slane %v4848, %v4873
  %v4876 = vunpack.c.l.s4 1935823168
  %v4877 = vunpack.c.0.s8 %v4876
  %v4878 = vperm.slane %v4855, %v4877
  %v4880 = vunpack.c.l.s4 1935823168
  %v4881 = vunpack.c.0.s8 %v4880
  %v4882 = vperm.slane %v4862, %v4881
  %v4883 = vld [vmem:[%s5] sm:$0xff]
  %v4884 = vld [vmem:[%s5 + $0x8] sm:$0xff]
  %v4885 = vld [vmem:[%s5 + $0x10] sm:$0xff]
  %v4886 = vld [vmem:[%s5 + $0x18] sm:$0xff]
  %v4887 = vld [vmem:[%s5 + $0x20] sm:$0xff]
  %v4888 = vld [vmem:[%s5 + $0x28] sm:$0xff]
  %v4889 = vld [vmem:[%s5 + $0x30] sm:$0xff]
  %v4890 = vld [vmem:[%s5 + $0x38] sm:$0xff]
  %v4891 = vld [vmem:[%s5 + $0x40] sm:$0xff]
  %v4892 = vld [vmem:[%s5 + $0x48] sm:$0xff]
  %v4893 = vld [vmem:[%s5 + $0x50] sm:$0xff]
  %v4894 = vld [vmem:[%s5 + $0x58] sm:$0xff]
  %v4895 = vld [vmem:[%s5 + $0x60] sm:$0xff]
  %v4896 = vld [vmem:[%s5 + $0x68] sm:$0xff]
  %v4897 = vld [vmem:[%s5 + $0x70] sm:$0xff]
  %v4898 = vld [vmem:[%s5 + $0x78] sm:$0xff]
  %v4899 = vld [vmem:[%s5 + $0x80] sm:$0xff]
  %v4900 = vld [vmem:[%s5 + $0x88] sm:$0xff]
  %v4901 = vld [vmem:[%s5 + $0x90] sm:$0xff]
  %v4902 = vld [vmem:[%s5 + $0x98] sm:$0xff]
  %v4903 = vld [vmem:[%s5 + $0xa0] sm:$0xff]
  %v4904 = vld [vmem:[%s5 + $0xa8] sm:$0xff]
  %v4905 = vld [vmem:[%s5 + $0xb0] sm:$0xff]
  %v4906 = vld [vmem:[%s5 + $0xb8] sm:$0xff]
  %v4907 = vld [vmem:[%s5 + $0xc0] sm:$0xff]
  %v4908 = vld [vmem:[%s5 + $0xc8] sm:$0xff]
  %v4909 = vld [vmem:[%s5 + $0xd0] sm:$0xff]
  %v4910 = vld [vmem:[%s5 + $0xd8] sm:$0xff]
  %v4911 = vld [vmem:[%s5 + $0xe0] sm:$0xff]
  %v4912 = vld [vmem:[%s5 + $0xe8] sm:$0xff]
  %v4913 = vld [vmem:[%s5 + $0xf0] sm:$0xff]
  %v4914 = vld [vmem:[%s5 + $0xf8] sm:$0xff]
  %v4915 = vld [vmem:[%s5 + $0x100] sm:$0xff]
  %v4916 = vld [vmem:[%s5 + $0x108] sm:$0xff]
  %v4917 = vld [vmem:[%s5 + $0x110] sm:$0xff]
  %v4918 = vld [vmem:[%s5 + $0x118] sm:$0xff]
  %v4919 = vld [vmem:[%s5 + $0x120] sm:$0xff]
  %v4920 = vld [vmem:[%s5 + $0x128] sm:$0xff]
  %v4921 = vld [vmem:[%s5 + $0x130] sm:$0xff]
  %v4922 = vld [vmem:[%s5 + $0x138] sm:$0xff]
  %v4923 = vld [vmem:[%s5 + $0x140] sm:$0xff]
  %v4924 = vld [vmem:[%s5 + $0x148] sm:$0xff]
  %v4925 = vld [vmem:[%s5 + $0x150] sm:$0xff]
  %v4926 = vld [vmem:[%s5 + $0x158] sm:$0xff]
  %v4927 = vld [vmem:[%s5 + $0x160] sm:$0xff]
  %v4928 = vld [vmem:[%s5 + $0x168] sm:$0xff]
  %v4929 = vld [vmem:[%s5 + $0x170] sm:$0xff]
  %v4930 = vld [vmem:[%s5 + $0x178] sm:$0xff]
  %v4931 = vld [vmem:[%s5 + $0x180] sm:$0xff]
  %v4932 = vld [vmem:[%s5 + $0x188] sm:$0xff]
  %v4933 = vld [vmem:[%s5 + $0x190] sm:$0xff]
  %v4934 = vld [vmem:[%s5 + $0x198] sm:$0xff]
  %v4935 = vld [vmem:[%s5 + $0x1a0] sm:$0xff]
  %v4936 = vld [vmem:[%s5 + $0x1a8] sm:$0xff]
  %v4937 = vld [vmem:[%s5 + $0x1b0] sm:$0xff]
  %v4938 = vld [vmem:[%s5 + $0x1b8] sm:$0xff]
  %v4939 = vld [vmem:[%s5 + $0x1c0] sm:$0xff]
  %v4940 = vld [vmem:[%s5 + $0x1c8] sm:$0xff]
  %v4941 = vld [vmem:[%s5 + $0x1d0] sm:$0xff]
  %v4942 = vld [vmem:[%s5 + $0x1d8] sm:$0xff]
  %v4943 = vld [vmem:[%s5 + $0x1e0] sm:$0xff]
  %v4944 = vld [vmem:[%s5 + $0x1e8] sm:$0xff]
  %v4945 = vld [vmem:[%s5 + $0x1f0] sm:$0xff]
  %v4946 = vld [vmem:[%s5 + $0x1f8] sm:$0xff]
  %v4947 = vld [vmem:[%s6] sm:$0x1]
  %v4949 = vperm.slane %v4947, 0
  %4955 = vst [vmem:[#allocation1] ss:$4 sm:$0xff] %v4870
  %s4956 = scalar_lea.vmem [#allocation1], 1
  %4957 = vst [vmem:[%s4956] ss:$4 sm:$0xff] %v4874
  %s4958 = scalar_lea.vmem [#allocation1], 2
  %4959 = vst [vmem:[%s4958] ss:$4 sm:$0xff] %v4878
  %s4960 = scalar_lea.vmem [#allocation1], 3
  %4961 = vst [vmem:[%s4960] ss:$4 sm:$0xff] %v4882
  %v4962 = vld.sshfl [vmem:[#allocation1] sm:$0xff pattern:$0x73625140]
  %v4963 = vld.sshfl [vmem:[#allocation1 + $0x8] sm:$0xff pattern:$0x73625140]
  %v4964 = vld.sshfl [vmem:[#allocation1 + $0x10] sm:$0xff pattern:$0x73625140]
  %v4965 = vld.sshfl [vmem:[#allocation1 + $0x18] sm:$0xff pattern:$0x73625140]
  %4970 = vmatpush.msra.mxu0 %v4898
  %4971 = vmatpush.msra.mxu0 %v4897
  %4972 = vmatpush.msra.mxu0 %v4896
  %4973 = vmatpush.msra.mxu0 %v4895
  %4974 = vmatpush.msra.mxu0 %v4894
  %4975 = vmatpush.msra.mxu0 %v4893
  %4976 = vmatpush.msra.mxu0 %v4892
  %4977 = vmatpush.msra.mxu0 %v4891
  %4978 = vmatpush.msra.mxu0 %v4890
  %4979 = vmatpush.msra.mxu0 %v4889
  %4980 = vmatpush.msra.mxu0 %v4888
  %4981 = vmatpush.msra.mxu0 %v4887
  %4982 = vmatpush.msra.mxu0 %v4886
  %4983 = vmatpush.msra.mxu0 %v4885
  %4984 = vmatpush.msra.mxu0 %v4884
  %4985 = vmatpush.msra.mxu0 %v4883
  %4986 = vmatmul.f32.gmra.mxu0 %v4962
  %v4987 = vpop.f32.mrf.mxu0
  %v4988 = vadd.f32 %v4949, %v4987
  %4989 = vdwg.mxu0
  %4990 = vmatpush.msra.mxu0 %v4914
  %4991 = vmatpush.msra.mxu0 %v4913
  %4992 = vmatpush.msra.mxu0 %v4912
  %4993 = vmatpush.msra.mxu0 %v4911
  %4994 = vmatpush.msra.mxu0 %v4910
  %4995 = vmatpush.msra.mxu0 %v4909
  %4996 = vmatpush.msra.mxu0 %v4908
  %4997 = vmatpush.msra.mxu0 %v4907
  %4998 = vmatpush.msra.mxu0 %v4906
  %4999 = vmatpush.msra.mxu0 %v4905
  %5000 = vmatpush.msra.mxu0 %v4904
  %5001 = vmatpush.msra.mxu0 %v4903
  %5002 = vmatpush.msra.mxu0 %v4902
  %5003 = vmatpush.msra.mxu0 %v4901
  %5004 = vmatpush.msra.mxu0 %v4900
  %5005 = vmatpush.msra.mxu0 %v4899
  %5006 = vmatmul.f32.gmra.mxu0 %v4963
  %v5007 = vpop.f32.mrf.mxu0
  %v5008 = vadd.f32 %v4988, %v5007
  %5009 = vdwg.mxu0
  %5010 = vmatpush.msra.mxu0 %v4930
  %5011 = vmatpush.msra.mxu0 %v4929
  %5012 = vmatpush.msra.mxu0 %v4928
  %5013 = vmatpush.msra.mxu0 %v4927
  %5014 = vmatpush.msra.mxu0 %v4926
  %5015 = vmatpush.msra.mxu0 %v4925
  %5016 = vmatpush.msra.mxu0 %v4924
  %5017 = vmatpush.msra.mxu0 %v4923
  %5018 = vmatpush.msra.mxu0 %v4922
  %5019 = vmatpush.msra.mxu0 %v4921
  %5020 = vmatpush.msra.mxu0 %v4920
  %5021 = vmatpush.msra.mxu0 %v4919
  %5022 = vmatpush.msra.mxu0 %v4918
  %5023 = vmatpush.msra.mxu0 %v4917
  %5024 = vmatpush.msra.mxu0 %v4916
  %5025 = vmatpush.msra.mxu0 %v4915
  %5026 = vmatmul.f32.gmra.mxu0 %v4964
  %v5027 = vpop.f32.mrf.mxu0
  %v5028 = vadd.f32 %v5008, %v5027
  %5029 = vdwg.mxu0
  %5030 = vmatpush.msra.mxu0 %v4946
  %5031 = vmatpush.msra.mxu0 %v4945
  %5032 = vmatpush.msra.mxu0 %v4944
  %5033 = vmatpush.msra.mxu0 %v4943
  %5034 = vmatpush.msra.mxu0 %v4942
  %5035 = vmatpush.msra.mxu0 %v4941
  %5036 = vmatpush.msra.mxu0 %v4940
  %5037 = vmatpush.msra.mxu0 %v4939
  %5038 = vmatpush.msra.mxu0 %v4938
  %5039 = vmatpush.msra.mxu0 %v4937
  %5040 = vmatpush.msra.mxu0 %v4936
  %5041 = vmatpush.msra.mxu0 %v4935
  %5042 = vmatpush.msra.mxu0 %v4934
  %5043 = vmatpush.msra.mxu0 %v4933
  %5044 = vmatpush.msra.mxu0 %v4932
  %5045 = vmatpush.msra.mxu0 %v4931
  %5046 = vmatmul.f32.gmra.mxu0 %v4965
  %v5047 = vpop.f32.mrf.mxu0
  %v5048 = vadd.f32 %v5028, %v5047
  %5049 = vdwg.mxu0
  %v5050 = vmax.f32 %v5048, 0.0
  %v5051 = vld [vmem:[%s7] sm:$0xff]
  %v5052 = vld [vmem:[%s7 + $0x8] sm:$0xff]
  %v5053 = vld [vmem:[%s7 + $0x10] sm:$0xff]
  %v5054 = vld [vmem:[%s7 + $0x18] sm:$0xff]
  %v5055 = vld [vmem:[%s7 + $0x20] sm:$0xff]
  %v5056 = vld [vmem:[%s7 + $0x28] sm:$0xff]
  %v5057 = vld [vmem:[%s7 + $0x30] sm:$0xff]
  %v5058 = vld [vmem:[%s7 + $0x38] sm:$0xff]
  %v5059 = vld [vmem:[%s7 + $0x40] sm:$0xff]
  %v5060 = vld [vmem:[%s7 + $0x48] sm:$0xff]
  %v5061 = vld [vmem:[%s7 + $0x50] sm:$0xff]
  %v5062 = vld [vmem:[%s7 + $0x58] sm:$0xff]
  %v5063 = vld [vmem:[%s7 + $0x60] sm:$0xff]
  %v5064 = vld [vmem:[%s7 + $0x68] sm:$0xff]
  %v5065 = vld [vmem:[%s7 + $0x70] sm:$0xff]
  %v5066 = vld [vmem:[%s7 + $0x78] sm:$0xff]
  %v5067 = vld [vmem:[%s8] sm:$0x1]
  %v5069 = vperm.slane %v5067, 0
  %5071 = vmatpush.msra.mxu0 %v5066
  %5072 = vmatpush.msra.mxu0 %v5065
  %5073 = vmatpush.msra.mxu0 %v5064
  %5074 = vmatpush.msra.mxu0 %v5063
  %5075 = vmatpush.msra.mxu0 %v5062
  %5076 = vmatpush.msra.mxu0 %v5061
  %5077 = vmatpush.msra.mxu0 %v5060
  %5078 = vmatpush.msra.mxu0 %v5059
  %5079 = vmatpush.msra.mxu0 %v5058
  %5080 = vmatpush.msra.mxu0 %v5057
  %5081 = vmatpush.msra.mxu0 %v5056
  %5082 = vmatpush.msra.mxu0 %v5055
  %5083 = vmatpush.msra.mxu0 %v5054
  %5084 = vmatpush.msra.mxu0 %v5053
  %5085 = vmatpush.msra.mxu0 %v5052
  %5086 = vmatpush.msra.mxu0 %v5051
  %5087 = vmatmul.f32.gmra.mxu0 %v5050
  %v5088 = vpop.f32.mrf.mxu0
  %v5089 = vadd.f32 %v5069, %v5088
  %5090 = vdwg.mxu0
  %5091 = vst [vmem:[%s9] sm:$0xff] %v5089
  // Predicated region
  $region38: #{cnn_classifier_forward.1} parent=0 // pred_check
    _
  $region39: #{cnn_classifier_forward.1} parent=0 // pred_check_branch
    %5093 = sbr.rel (0) target = $region41
  $region40: #{cnn_classifier_forward.1} parent=0 // pred_region
    _
  $region41: #{cnn_classifier_forward.1} parent=0 // pred_fallthru
    _
  // Predicated region
  $region42: #{cnn_classifier_forward.1} parent=0 // pred_check
    _
  $region43: #{cnn_classifier_forward.1} parent=0 // pred_check_branch
    %5095 = sbr.rel (0) target = $region45
  $region44: #{cnn_classifier_forward.1} parent=0 // pred_region
    _
  $region45: #{cnn_classifier_forward.1} parent=0 // pred_fallthru
    _

</llo_original>
